<compile_context>
chip_gen: v7x
topology: tpu7x:2x2x1
jax: 0.10.0
libtpu: 0.0.40
codegen_flags: <defaults>
</compile_context>

<pallas_src>
import jax
import jax.numpy as jnp
from jax.experimental import pallas as pl
from jax.experimental.pallas import tpu as pltpu

EPS = 1e-5
LANE = 128
MXU_DTYPE = jnp.bfloat16        # matmul-input dtype (accumulation stays f32)
INTER_DTYPE = jnp.bfloat16      # dtype of inter-pass HBM intermediates
VMEM_LIMIT = 48 * 1024 * 1024   # <= ~48 MiB: safe on v7x (64 MiB), fine on v5e/v6e


def _round_up(x, m):
    return (x + m - 1) // m * m


def _pick_batch_block(n):
    """Largest divisor of n giving >=2 grid steps (keeps both v7x TCs busy)."""
    if n <= 2:
        return 1
    for b in (8, 4, 2):
        if n % b == 0 and n // b >= 2:
            return b
    return 1


def _conv3x3_folded(xpad, w_ref):
    """3x3 conv as 3 MXU matmuls (dx taps folded into the contraction).

    xpad : (B, H+2, W+2, C) value with a zero halo ring, C lane-padded.
    w_ref: (3, 3*C, Cout) ref with w_ref[dy][dx*C + ci, co] = w[co, ci, dy, dx].
    Returns (B*H*W, Cout) float32 accumulator.
    """
    b, hp2, wp2, c = xpad.shape
    h, w = hp2 - 2, wp2 - 2
    cout = w_ref.shape[-1]
    acc = jnp.zeros((b * h * w, cout), jnp.float32)
    for dy in range(3):
        rows = xpad[:, dy:dy + h, :, :]                                # (B,H,W+2,C)
        patch = jnp.concatenate(
            [rows[:, :, dx:dx + w, :] for dx in range(3)], axis=-1)    # (B,H,W,3C)
        acc = acc + jnp.dot(patch.reshape(b * h * w, 3 * c).astype(MXU_DTYPE),
                            w_ref[dy].astype(MXU_DTYPE),
                            preferred_element_type=jnp.float32)
    return acc


def _stage_a_kernel(xpad_ref, w0_ref, b0_ref, y0pad_ref, stat_ref):
    # conv0 (3x3, pad 1) + bias; emit the result already halo-padded (bf16)
    # plus packed BN0 partial statistics (f32).
    b, hp2, wp2, _ = xpad_ref.shape
    h, w = hp2 - 2, wp2 - 2
    acc = _conv3x3_folded(xpad_ref[...], w0_ref) + b0_ref[...]         # (B*H*W, Cp) f32
    s = jnp.sum(acc, axis=0, keepdims=True)
    ss = jnp.sum(acc * acc, axis=0, keepdims=True)
    stat_ref[...] = jnp.concatenate([s, ss], axis=0)[None]             # (1, 2, Cp)

    y = acc.reshape(b, h, w, -1).astype(y0pad_ref.dtype)
    cpad = y.shape[-1]
    zr = jnp.zeros((b, 1, w, cpad), y.dtype)
    y = jnp.concatenate([zr, y, zr], axis=1)                           # (B, H+2, W, Cp)
    zc = jnp.zeros((b, h + 2, 1, cpad), y.dtype)
    y0pad_ref[...] = jnp.concatenate([zc, y, zc], axis=2)              # (B, H+2, W+2, Cp)


def _stage_b_kernel(y0pad_ref, w1_ref, b1_ref, sc0_ref, shm0_ref, y1_ref, stat_ref):
    # BN0 apply + ReLU (shift is pre-masked to the interior, so the zero halo
    # ring stays zero: conv1's implicit padding, no iota/where work), then
    # conv1 (3x3, pad 1) + bias, plus packed BN1 partial statistics.
    yp = y0pad_ref[...].astype(jnp.float32)                            # (B, H+2, W+2, Cp)
    hval = jnp.maximum(yp * sc0_ref[...] + shm0_ref[...], 0.0)
    acc = _conv3x3_folded(hval, w1_ref) + b1_ref[...]                  # (B*H*W, Cp) f32
    s = jnp.sum(acc, axis=0, keepdims=True)
    ss = jnp.sum(acc * acc, axis=0, keepdims=True)
    stat_ref[...] = jnp.concatenate([s, ss], axis=0)[None]
    y1_ref[...] = acc.reshape(y1_ref.shape).astype(y1_ref.dtype)


def _stage_c_kernel(y1_ref, xflat_ref, wsk_ref, sc1_ref, sh1_ref, out_ref):
    # BN1 apply + skip 1x1 conv + residual add + final ReLU, fully fused
    # (the skip tensor never round-trips through HBM).
    b, hw, cin_p = xflat_ref.shape
    skip = jnp.dot(xflat_ref[...].reshape(b * hw, cin_p).astype(MXU_DTYPE),
                   wsk_ref[...].astype(MXU_DTYPE),
                   preferred_element_type=jnp.float32)                 # (B*HW, Cp)
    y1 = y1_ref[...].reshape(b * hw, -1).astype(jnp.float32)
    y = y1 * sc1_ref[...] + sh1_ref[...] + skip
    out_ref[...] = jnp.maximum(y, 0.0).reshape(out_ref.shape)


def residual_block_forward(x_nchw, params):
    n, cin, hh, ww = x_nchw.shape
    cout = params["w0"].shape[0]
    cin_p, cout_p = _round_up(cin, LANE), _round_up(cout, LANE)
    hw = hh * ww
    b_blk = _pick_batch_block(n)
    n_blk = n // b_blk

    cp = pltpu.CompilerParams(dimension_semantics=("parallel",),
                              vmem_limit_bytes=VMEM_LIMIT)

    # ---- layout glue (single 1x pass): NCHW -> NHWC, lane-pad channels,
    #      1-px spatial halo pad, downcast to bf16 for the matmul passes. ----
    x_nhwc = jnp.transpose(x_nchw, (0, 2, 3, 1))
    x_nhwc = jnp.pad(x_nhwc, ((0, 0), (0, 0), (0, 0), (0, cin_p - cin)))
    x_pad = jnp.pad(x_nhwc, ((0, 0), (1, 1), (1, 1), (0, 0))).astype(MXU_DTYPE)
    x_flat = x_nhwc.reshape(n, hw, cin_p).astype(MXU_DTYPE)

    def pack_w3x3(w, ci_p, co_p):
        o, i = w.shape[0], w.shape[1]
        wt = jnp.transpose(w, (2, 3, 1, 0))                            # (kh, kw, I, O)
        wt = jnp.pad(wt, ((0, 0), (0, 0), (0, ci_p - i), (0, co_p - o)))
        return wt.reshape(3, 3 * ci_p, co_p).astype(MXU_DTYPE)         # K = dx*ci_p + i

    def pack_vec(v):
        return jnp.pad(v.reshape(1, cout), ((0, 0), (0, cout_p - cout)))

    w0_k = pack_w3x3(params["w0"], cin_p, cout_p)                      # (3, 3*cin_p, cout_p)
    w1_k = pack_w3x3(params["w1"], cout_p, cout_p)                     # (3, 3*cout_p, cout_p)
    wsk = jnp.pad(params["wskip"].reshape(cout, cin).T,
                  ((0, cin_p - cin), (0, cout_p - cout))).astype(MXU_DTYPE)
    b0, b1 = pack_vec(params["b0"]), pack_vec(params["b1"])
    g0, be0 = pack_vec(params["g0"]), pack_vec(params["be0"])
    g1, be1 = pack_vec(params["g1"]), pack_vec(params["be1"])

    img4 = lambda i: (i, 0, 0, 0)
    img3 = lambda i: (i, 0, 0)
    rep3 = lambda i: (0, 0, 0)
    rep2 = lambda i: (0, 0)

    # ---- pass A: conv0 + bias -> halo-padded bf16 output + BN0 partials ------
    y0_pad, st0 = pl.pallas_call(
        _stage_a_kernel,
        grid=(n_blk,),
        in_specs=[pl.BlockSpec((b_blk, hh + 2, ww + 2, cin_p), img4),
                  pl.BlockSpec((3, 3 * cin_p, cout_p), rep3),
                  pl.BlockSpec((1, cout_p), rep2)],
        out_specs=(pl.BlockSpec((b_blk, hh + 2, ww + 2, cout_p), img4),
                   pl.BlockSpec((1, 2, cout_p), img3)),
        out_shape=(jax.ShapeDtypeStruct((n, hh + 2, ww + 2, cout_p), INTER_DTYPE),
                   jax.ShapeDtypeStruct((n_blk, 2, cout_p), jnp.float32)),
        compiler_params=cp,
    )(x_pad, w0_k, b0)

    # ---- finalize BN0 batch stats (tiny reduction, biased variance) ----------
    cnt = float(n * hw)
    mean0 = jnp.sum(st0[:, 0, :], axis=0) / cnt
    var0 = jnp.maximum(jnp.sum(st0[:, 1, :], axis=0) / cnt - mean0 * mean0, 0.0)
    inv0 = jax.lax.rsqrt(var0 + EPS)
    scale0 = (g0[0] * inv0).reshape(1, cout_p)
    shift0 = be0[0] - mean0 * g0[0] * inv0                             # (cout_p,)
    # Shift masked to the interior => halo ring stays exactly zero in pass B.
    shift0_masked = jnp.pad(
        jnp.broadcast_to(shift0.reshape(1, 1, cout_p), (hh, ww, cout_p)),
        ((1, 1), (1, 1), (0, 0)))

    # ---- pass B: BN0 apply + ReLU + conv1 + bias + BN1 partials --------------
    y1, st1 = pl.pallas_call(
        _stage_b_kernel,
        grid=(n_blk,),
        in_specs=[pl.BlockSpec((b_blk, hh + 2, ww + 2, cout_p), img4),
                  pl.BlockSpec((3, 3 * cout_p, cout_p), rep3),
                  pl.BlockSpec((1, cout_p), rep2),
                  pl.BlockSpec((1, cout_p), rep2),
                  pl.BlockSpec((hh + 2, ww + 2, cout_p), rep3)],
        out_specs=(pl.BlockSpec((b_blk, hw, cout_p), img3),
                   pl.BlockSpec((1, 2, cout_p), img3)),
        out_shape=(jax.ShapeDtypeStruct((n, hw, cout_p), INTER_DTYPE),
                   jax.ShapeDtypeStruct((n_blk, 2, cout_p), jnp.float32)),
        compiler_params=cp,
    )(y0_pad, w1_k, b1, scale0, shift0_masked)

    # ---- finalize BN1 batch stats ---------------------------------------------
    mean1 = jnp.sum(st1[:, 0, :], axis=0) / cnt
    var1 = jnp.maximum(jnp.sum(st1[:, 1, :], axis=0) / cnt - mean1 * mean1, 0.0)
    inv1 = jax.lax.rsqrt(var1 + EPS)
    scale1 = (g1[0] * inv1).reshape(1, cout_p)
    shift1 = (be1[0] - mean1 * g1[0] * inv1).reshape(1, cout_p)

    # ---- pass C: BN1 apply + skip (1x1 conv) + residual add + ReLU -----------
    out = pl.pallas_call(
        _stage_c_kernel,
        grid=(n_blk,),
        in_specs=[pl.BlockSpec((b_blk, hw, cout_p), img3),
                  pl.BlockSpec((b_blk, hw, cin_p), img3),
                  pl.BlockSpec((cin_p, cout_p), rep2),
                  pl.BlockSpec((1, cout_p), rep2),
                  pl.BlockSpec((1, cout_p), rep2)],
        out_specs=pl.BlockSpec((b_blk, hw, cout_p), img3),
        out_shape=jax.ShapeDtypeStruct((n, hw, cout_p), jnp.float32),
        compiler_params=cp,
    )(y1, x_flat, wsk, scale1, shift1)

    out = out[:, :, :cout].reshape(n, hh, ww, cout)
    return jnp.transpose(out, (0, 3, 1, 2))          # back to NCHW like PyTorch


def init_params(key, cin, cout):
    """Deterministic synthetic params matching the PyTorch __init__ shapes."""
    ks = jax.random.split(key, 5)
    k0 = 1.0 / jnp.sqrt(cin * 9.0)
    k1 = 1.0 / jnp.sqrt(cout * 9.0)
    kskip = 1.0 / jnp.sqrt(float(cin))
    return {
        "w0": jax.random.uniform(ks[0], (cout, cin, 3, 3), jnp.float32, -k0, k0),
        "b0": jax.random.uniform(ks[1], (cout,), jnp.float32, -k0, k0),
        "w1": jax.random.uniform(ks[2], (cout, cout, 3, 3), jnp.float32, -k1, k1),
        "b1": jax.random.uniform(ks[3], (cout,), jnp.float32, -k1, k1),
        "wskip": jax.random.uniform(ks[4], (cout, cin, 1, 1), jnp.float32, -kskip, kskip),
        # BatchNorm2d default init: weight=1, bias=0
        "g0": jnp.ones((cout,), jnp.float32),
        "be0": jnp.zeros((cout,), jnp.float32),
        "g1": jnp.ones((cout,), jnp.float32),
        "be1": jnp.zeros((cout,), jnp.float32),
    }


def reference_forward(x, p):
    """Pure-JAX f32 reference mirroring the PyTorch forward (training-mode BN)."""
    def conv(x, w, pad):
        return jax.lax.conv_general_dilated(
            x, w, window_strides=(1, 1), padding=[(pad, pad), (pad, pad)],
            dimension_numbers=("NCHW", "OIHW", "NCHW"))

    def bn(x, g, b):
        mean = jnp.mean(x, axis=(0, 2, 3), keepdims=True)
        var = jnp.mean(jnp.square(x - mean), axis=(0, 2, 3), keepdims=True)
        return ((x - mean) * jax.lax.rsqrt(var + EPS)
                * g[None, :, None, None] + b[None, :, None, None])

    skip = conv(x, p["wskip"], 0)
    h = jax.nn.relu(bn(conv(x, p["w0"], 1) + p["b0"][None, :, None, None],
                       p["g0"], p["be0"]))
    y = bn(conv(h, p["w1"], 1) + p["b1"][None, :, None, None], p["g1"], p["be1"])
    return jax.nn.relu(y + skip)


if __name__ == "__main__":
    key = jax.random.PRNGKey(0)
    kx, kp = jax.random.split(key)
    N, CIN, COUT, H, W = 2, 4, 16, 16, 16  # noqa: shadows below intentionally
    N, CIN, COUT, H, W = 2, 4, 8, 16, 16

    x = jax.random.normal(kx, (N, CIN, H, W), jnp.float32)
    params = init_params(kp, CIN, COUT)

    out = jax.jit(residual_block_forward)(x, params)
    out = jax.block_until_ready(out)
    assert out.shape == (N, COUT, H, W)

    ref = reference_forward(x, params)
    max_err = float(jnp.max(jnp.abs(out - ref)))
    # bf16 MXU inputs + bf16 intermediates vs f32 reference; with
    # MXU_DTYPE = INTER_DTYPE = jnp.float32 this passes at 1e-3.
    fp32_mode = (MXU_DTYPE == jnp.float32) and (INTER_DTYPE == jnp.float32)
    tol = 1e-3 if fp32_mode else 4e-2
    assert max_err < tol, f"max abs error {max_err}"

    print("KERNEL_OK")
</pallas_src>

<mosaic_0001>
module attributes {stable_mosaic.version = 11 : i64} {
  func.func @_stage_a_kernel(%arg0: i32, %arg1: memref<1x18x18x128xbf16, #tpu.memory_space<vmem>>, %arg2: memref<3x384x128xbf16, #tpu.memory_space<vmem>>, %arg3: memref<1x128xf32, #tpu.memory_space<vmem>>, %arg4: memref<1x18x18x128xbf16, #tpu.memory_space<vmem>>, %arg5: memref<1x2x128xf32, #tpu.memory_space<vmem>>) attributes {dimension_semantics = [#tpu.dimension_semantics<parallel>], iteration_bounds = array<i64: 2>, scalar_prefetch = 0 : i64, scratch_operands = 0 : i64, tpu.core_type = #tpu.core_type<tc>, window_params = [{transform_indices = @transform_0, window_bounds = array<i64: 1, 18, 18, 128>}, {pipeline_mode = #tpu.pipeline_mode<synchronous>, transform_indices = @transform_1, window_bounds = array<i64: 3, 384, 128>}, {pipeline_mode = #tpu.pipeline_mode<synchronous>, transform_indices = @transform_2, window_bounds = array<i64: 1, 128>}, {transform_indices = @transform_3, window_bounds = array<i64: 1, 18, 18, 128>}, {transform_indices = @transform_4, window_bounds = array<i64: 1, 2, 128>}]} {
    %c0 = arith.constant 0 : index
    %c0_0 = arith.constant 0 : index
    %c0_1 = arith.constant 0 : index
    %c0_2 = arith.constant 0 : index
    %0 = vector.load %arg1[%c0, %c0_0, %c0_1, %c0_2] : memref<1x18x18x128xbf16, #tpu.memory_space<vmem>>, vector<1x18x18x128xbf16>
    %cst = arith.constant 0.000000e+00 : f32
    %1 = vector.broadcast %cst : f32 to vector<256x128xf32>
    %2 = vector.extract_strided_slice %0 {offsets = [0, 0, 0, 0], sizes = [1, 16, 18, 128], strides = [1, 1, 1, 1]} : vector<1x18x18x128xbf16> to vector<1x16x18x128xbf16>
    %3 = vector.extract_strided_slice %2 {offsets = [0, 0, 0, 0], sizes = [1, 16, 16, 128], strides = [1, 1, 1, 1]} : vector<1x16x18x128xbf16> to vector<1x16x16x128xbf16>
    %4 = vector.extract_strided_slice %2 {offsets = [0, 0, 1, 0], sizes = [1, 16, 16, 128], strides = [1, 1, 1, 1]} : vector<1x16x18x128xbf16> to vector<1x16x16x128xbf16>
    %5 = vector.extract_strided_slice %2 {offsets = [0, 0, 2, 0], sizes = [1, 16, 16, 128], strides = [1, 1, 1, 1]} : vector<1x16x18x128xbf16> to vector<1x16x16x128xbf16>
    %6 = tpu.concatenate %3, %4, %5 in 3 : vector<1x16x16x128xbf16>, vector<1x16x16x128xbf16>, vector<1x16x16x128xbf16> -> vector<1x16x16x384xbf16>
    %7 = vector.shape_cast %6 : vector<1x16x16x384xbf16> to vector<256x384xbf16>
    %c0_3 = arith.constant 0 : index
    %c0_4 = arith.constant 0 : index
    %c0_5 = arith.constant 0 : index
    %8 = vector.load %arg2[%c0_3, %c0_4, %c0_5] : memref<3x384x128xbf16, #tpu.memory_space<vmem>>, vector<1x384x128xbf16>
    %9 = vector.shape_cast %8 : vector<1x384x128xbf16> to vector<384x128xbf16>
    %cst_6 = arith.constant dense<0.000000e+00> : vector<256x128xf32>
    %10 = tpu.matmul %7, %9, %cst_6 {dimension_numbers = #tpu.dot_dimension_numbers<[1], [0], [0], [1], [0, 0, 1, 1], [], []>} : vector<256x384xbf16>, vector<384x128xbf16>, vector<256x128xf32> -> vector<256x128xf32>
    %11 = arith.addf %1, %10 : vector<256x128xf32>
    %12 = vector.extract_strided_slice %0 {offsets = [0, 1, 0, 0], sizes = [1, 16, 18, 128], strides = [1, 1, 1, 1]} : vector<1x18x18x128xbf16> to vector<1x16x18x128xbf16>
    %13 = vector.extract_strided_slice %12 {offsets = [0, 0, 0, 0], sizes = [1, 16, 16, 128], strides = [1, 1, 1, 1]} : vector<1x16x18x128xbf16> to vector<1x16x16x128xbf16>
    %14 = vector.extract_strided_slice %12 {offsets = [0, 0, 1, 0], sizes = [1, 16, 16, 128], strides = [1, 1, 1, 1]} : vector<1x16x18x128xbf16> to vector<1x16x16x128xbf16>
    %15 = vector.extract_strided_slice %12 {offsets = [0, 0, 2, 0], sizes = [1, 16, 16, 128], strides = [1, 1, 1, 1]} : vector<1x16x18x128xbf16> to vector<1x16x16x128xbf16>
    %16 = tpu.concatenate %13, %14, %15 in 3 : vector<1x16x16x128xbf16>, vector<1x16x16x128xbf16>, vector<1x16x16x128xbf16> -> vector<1x16x16x384xbf16>
    %17 = vector.shape_cast %16 : vector<1x16x16x384xbf16> to vector<256x384xbf16>
    %c1 = arith.constant 1 : index
    %c0_7 = arith.constant 0 : index
    %c0_8 = arith.constant 0 : index
    %18 = vector.load %arg2[%c1, %c0_7, %c0_8] : memref<3x384x128xbf16, #tpu.memory_space<vmem>>, vector<1x384x128xbf16>
    %19 = vector.shape_cast %18 : vector<1x384x128xbf16> to vector<384x128xbf16>
    %cst_9 = arith.constant dense<0.000000e+00> : vector<256x128xf32>
    %20 = tpu.matmul %17, %19, %cst_9 {dimension_numbers = #tpu.dot_dimension_numbers<[1], [0], [0], [1], [0, 0, 1, 1], [], []>} : vector<256x384xbf16>, vector<384x128xbf16>, vector<256x128xf32> -> vector<256x128xf32>
    %21 = arith.addf %11, %20 : vector<256x128xf32>
    %22 = vector.extract_strided_slice %0 {offsets = [0, 2, 0, 0], sizes = [1, 16, 18, 128], strides = [1, 1, 1, 1]} : vector<1x18x18x128xbf16> to vector<1x16x18x128xbf16>
    %23 = vector.extract_strided_slice %22 {offsets = [0, 0, 0, 0], sizes = [1, 16, 16, 128], strides = [1, 1, 1, 1]} : vector<1x16x18x128xbf16> to vector<1x16x16x128xbf16>
    %24 = vector.extract_strided_slice %22 {offsets = [0, 0, 1, 0], sizes = [1, 16, 16, 128], strides = [1, 1, 1, 1]} : vector<1x16x18x128xbf16> to vector<1x16x16x128xbf16>
    %25 = vector.extract_strided_slice %22 {offsets = [0, 0, 2, 0], sizes = [1, 16, 16, 128], strides = [1, 1, 1, 1]} : vector<1x16x18x128xbf16> to vector<1x16x16x128xbf16>
    %26 = tpu.concatenate %23, %24, %25 in 3 : vector<1x16x16x128xbf16>, vector<1x16x16x128xbf16>, vector<1x16x16x128xbf16> -> vector<1x16x16x384xbf16>
    %27 = vector.shape_cast %26 : vector<1x16x16x384xbf16> to vector<256x384xbf16>
    %c2 = arith.constant 2 : index
    %c0_10 = arith.constant 0 : index
    %c0_11 = arith.constant 0 : index
    %28 = vector.load %arg2[%c2, %c0_10, %c0_11] : memref<3x384x128xbf16, #tpu.memory_space<vmem>>, vector<1x384x128xbf16>
    %29 = vector.shape_cast %28 : vector<1x384x128xbf16> to vector<384x128xbf16>
    %cst_12 = arith.constant dense<0.000000e+00> : vector<256x128xf32>
    %30 = tpu.matmul %27, %29, %cst_12 {dimension_numbers = #tpu.dot_dimension_numbers<[1], [0], [0], [1], [0, 0, 1, 1], [], []>} : vector<256x384xbf16>, vector<384x128xbf16>, vector<256x128xf32> -> vector<256x128xf32>
    %31 = arith.addf %21, %30 : vector<256x128xf32>
    %c0_13 = arith.constant 0 : index
    %c0_14 = arith.constant 0 : index
    %32 = vector.load %arg3[%c0_13, %c0_14] : memref<1x128xf32, #tpu.memory_space<vmem>>, vector<1x128xf32>
    %33 = vector.broadcast %32 : vector<1x128xf32> to vector<256x128xf32>
    %34 = arith.addf %31, %33 : vector<256x128xf32>
    %cst_15 = arith.constant dense<0.000000e+00> : vector<128xf32>
    %35 = vector.multi_reduction <add>, %34, %cst_15 [0] : vector<256x128xf32> to vector<128xf32>
    %36 = vector.shape_cast %35 : vector<128xf32> to vector<1x128xf32>
    %37 = arith.mulf %34, %34 : vector<256x128xf32>
    %cst_16 = arith.constant dense<0.000000e+00> : vector<128xf32>
    %38 = vector.multi_reduction <add>, %37, %cst_16 [0] : vector<256x128xf32> to vector<128xf32>
    %39 = vector.shape_cast %38 : vector<128xf32> to vector<1x128xf32>
    %40 = tpu.concatenate %36, %39 in 0 : vector<1x128xf32>, vector<1x128xf32> -> vector<2x128xf32>
    %41 = vector.shape_cast %40 : vector<2x128xf32> to vector<1x2x128xf32>
    %c0_17 = arith.constant 0 : index
    %c0_18 = arith.constant 0 : index
    %c0_19 = arith.constant 0 : index
    %42 = vector.load %arg5[%c0_17, %c0_18, %c0_19] : memref<1x2x128xf32, #tpu.memory_space<vmem>>, vector<1x2x128xf32>
    tpu.vector_store %arg5[%c0_17, %c0_18, %c0_19], %41 {strides = array<i32>} : memref<1x2x128xf32, #tpu.memory_space<vmem>>, vector<1x2x128xf32>,
    %43 = vector.shape_cast %34 : vector<256x128xf32> to vector<1x16x16x128xf32>
    %44 = arith.truncf %43 : vector<1x16x16x128xf32> to vector<1x16x16x128xbf16>
    %cst_20 = arith.constant 0.000000e+00 : bf16
    %45 = vector.broadcast %cst_20 : bf16 to vector<1x1x16x128xbf16>
    %46 = tpu.concatenate %45, %44, %45 in 1 : vector<1x1x16x128xbf16>, vector<1x16x16x128xbf16>, vector<1x1x16x128xbf16> -> vector<1x18x16x128xbf16>
    %cst_21 = arith.constant 0.000000e+00 : bf16
    %47 = vector.broadcast %cst_21 : bf16 to vector<1x18x1x128xbf16>
    %48 = tpu.concatenate %47, %46, %47 in 2 : vector<1x18x1x128xbf16>, vector<1x18x16x128xbf16>, vector<1x18x1x128xbf16> -> vector<1x18x18x128xbf16>
    %c0_22 = arith.constant 0 : index
    %c0_23 = arith.constant 0 : index
    %c0_24 = arith.constant 0 : index
    %c0_25 = arith.constant 0 : index
    %49 = vector.load %arg4[%c0_22, %c0_23, %c0_24, %c0_25] : memref<1x18x18x128xbf16, #tpu.memory_space<vmem>>, vector<1x18x18x128xbf16>
    tpu.vector_store %arg4[%c0_22, %c0_23, %c0_24, %c0_25], %48 {strides = array<i32>} : memref<1x18x18x128xbf16, #tpu.memory_space<vmem>>, vector<1x18x18x128xbf16>,
    return
  }
  func.func @transform_0(%arg0: i32) -> (i32, i32, i32, i32) {
    %c0_i32 = arith.constant 0 : i32
    %c0_i32_0 = arith.constant 0 : i32
    %c0_i32_1 = arith.constant 0 : i32
    %c0_i32_2 = arith.constant 0 : i32
    return %arg0, %c0_i32, %c0_i32_0, %c0_i32_1 : i32, i32, i32, i32
  }
  func.func @transform_1(%arg0: i32) -> (i32, i32, i32) {
    %c0_i32 = arith.constant 0 : i32
    %c0_i32_0 = arith.constant 0 : i32
    %c0_i32_1 = arith.constant 0 : i32
    %c0_i32_2 = arith.constant 0 : i32
    return %c0_i32, %c0_i32_0, %c0_i32_1 : i32, i32, i32
  }
  func.func @transform_2(%arg0: i32) -> (i32, i32) {
    %c0_i32 = arith.constant 0 : i32
    %c0_i32_0 = arith.constant 0 : i32
    %c0_i32_1 = arith.constant 0 : i32
    return %c0_i32, %c0_i32_0 : i32, i32
  }
  func.func @transform_3(%arg0: i32) -> (i32, i32, i32, i32) {
    %c0_i32 = arith.constant 0 : i32
    %c0_i32_0 = arith.constant 0 : i32
    %c0_i32_1 = arith.constant 0 : i32
    %c0_i32_2 = arith.constant 0 : i32
    return %arg0, %c0_i32, %c0_i32_0, %c0_i32_1 : i32, i32, i32, i32
  }
  func.func @transform_4(%arg0: i32) -> (i32, i32, i32) {
    %c0_i32 = arith.constant 0 : i32
    %c0_i32_0 = arith.constant 0 : i32
    %c0_i32_1 = arith.constant 0 : i32
    return %arg0, %c0_i32, %c0_i32_0 : i32, i32, i32
  }
}

module attributes {stable_mosaic.version = 11 : i64} {
  func.func @_stage_b_kernel(%arg0: i32, %arg1: memref<1x18x18x128xbf16, #tpu.memory_space<vmem>>, %arg2: memref<3x384x128xbf16, #tpu.memory_space<vmem>>, %arg3: memref<1x128xf32, #tpu.memory_space<vmem>>, %arg4: memref<1x128xf32, #tpu.memory_space<vmem>>, %arg5: memref<18x18x128xf32, #tpu.memory_space<vmem>>, %arg6: memref<1x256x128xbf16, #tpu.memory_space<vmem>>, %arg7: memref<1x2x128xf32, #tpu.memory_space<vmem>>) attributes {dimension_semantics = [#tpu.dimension_semantics<parallel>], iteration_bounds = array<i64: 2>, scalar_prefetch = 0 : i64, scratch_operands = 0 : i64, tpu.core_type = #tpu.core_type<tc>, window_params = [{transform_indices = @transform_0, window_bounds = array<i64: 1, 18, 18, 128>}, {pipeline_mode = #tpu.pipeline_mode<synchronous>, transform_indices = @transform_1, window_bounds = array<i64: 3, 384, 128>}, {pipeline_mode = #tpu.pipeline_mode<synchronous>, transform_indices = @transform_2, window_bounds = array<i64: 1, 128>}, {pipeline_mode = #tpu.pipeline_mode<synchronous>, transform_indices = @transform_3, window_bounds = array<i64: 1, 128>}, {pipeline_mode = #tpu.pipeline_mode<synchronous>, transform_indices = @transform_4, window_bounds = array<i64: 18, 18, 128>}, {transform_indices = @transform_5, window_bounds = array<i64: 1, 256, 128>}, {transform_indices = @transform_6, window_bounds = array<i64: 1, 2, 128>}]} {
    %c0 = arith.constant 0 : index
    %c0_0 = arith.constant 0 : index
    %c0_1 = arith.constant 0 : index
    %c0_2 = arith.constant 0 : index
    %0 = vector.load %arg1[%c0, %c0_0, %c0_1, %c0_2] : memref<1x18x18x128xbf16, #tpu.memory_space<vmem>>, vector<1x18x18x128xbf16>
    %1 = arith.extf %0 : vector<1x18x18x128xbf16> to vector<1x18x18x128xf32>
    %c0_3 = arith.constant 0 : index
    %c0_4 = arith.constant 0 : index
    %2 = vector.load %arg4[%c0_3, %c0_4] : memref<1x128xf32, #tpu.memory_space<vmem>>, vector<1x128xf32>
    %3 = vector.shape_cast %2 : vector<1x128xf32> to vector<1x1x1x128xf32>
    %4 = vector.broadcast %3 : vector<1x1x1x128xf32> to vector<1x18x18x128xf32>
    %5 = arith.mulf %1, %4 : vector<1x18x18x128xf32>
    %c0_5 = arith.constant 0 : index
    %c0_6 = arith.constant 0 : index
    %c0_7 = arith.constant 0 : index
    %6 = vector.load %arg5[%c0_5, %c0_6, %c0_7] : memref<18x18x128xf32, #tpu.memory_space<vmem>>, vector<18x18x128xf32>
    %7 = vector.shape_cast %6 : vector<18x18x128xf32> to vector<1x18x18x128xf32>
    %8 = arith.addf %5, %7 : vector<1x18x18x128xf32>
    %cst = arith.constant 0.000000e+00 : f32
    %9 = vector.broadcast %cst : f32 to vector<1x18x18x128xf32>
    %10 = arith.maximumf %8, %9 : vector<1x18x18x128xf32>
    %cst_8 = arith.constant 0.000000e+00 : f32
    %11 = vector.broadcast %cst_8 : f32 to vector<256x128xf32>
    %12 = vector.extract_strided_slice %10 {offsets = [0, 0, 0, 0], sizes = [1, 16, 18, 128], strides = [1, 1, 1, 1]} : vector<1x18x18x128xf32> to vector<1x16x18x128xf32>
    %13 = vector.extract_strided_slice %12 {offsets = [0, 0, 0, 0], sizes = [1, 16, 16, 128], strides = [1, 1, 1, 1]} : vector<1x16x18x128xf32> to vector<1x16x16x128xf32>
    %14 = vector.extract_strided_slice %12 {offsets = [0, 0, 1, 0], sizes = [1, 16, 16, 128], strides = [1, 1, 1, 1]} : vector<1x16x18x128xf32> to vector<1x16x16x128xf32>
    %15 = vector.extract_strided_slice %12 {offsets = [0, 0, 2, 0], sizes = [1, 16, 16, 128], strides = [1, 1, 1, 1]} : vector<1x16x18x128xf32> to vector<1x16x16x128xf32>
    %16 = tpu.concatenate %13, %14, %15 in 3 : vector<1x16x16x128xf32>, vector<1x16x16x128xf32>, vector<1x16x16x128xf32> -> vector<1x16x16x384xf32>
    %17 = vector.shape_cast %16 : vector<1x16x16x384xf32> to vector<256x384xf32>
    %18 = arith.truncf %17 : vector<256x384xf32> to vector<256x384xbf16>
    %c0_9 = arith.constant 0 : index
    %c0_10 = arith.constant 0 : index
    %c0_11 = arith.constant 0 : index
    %19 = vector.load %arg2[%c0_9, %c0_10, %c0_11] : memref<3x384x128xbf16, #tpu.memory_space<vmem>>, vector<1x384x128xbf16>
    %20 = vector.shape_cast %19 : vector<1x384x128xbf16> to vector<384x128xbf16>
    %cst_12 = arith.constant dense<0.000000e+00> : vector<256x128xf32>
    %21 = tpu.matmul %18, %20, %cst_12 {dimension_numbers = #tpu.dot_dimension_numbers<[1], [0], [0], [1], [0, 0, 1, 1], [], []>} : vector<256x384xbf16>, vector<384x128xbf16>, vector<256x128xf32> -> vector<256x128xf32>
    %22 = arith.addf %11, %21 : vector<256x128xf32>
    %23 = vector.extract_strided_slice %10 {offsets = [0, 1, 0, 0], sizes = [1, 16, 18, 128], strides = [1, 1, 1, 1]} : vector<1x18x18x128xf32> to vector<1x16x18x128xf32>
    %24 = vector.extract_strided_slice %23 {offsets = [0, 0, 0, 0], sizes = [1, 16, 16, 128], strides = [1, 1, 1, 1]} : vector<1x16x18x128xf32> to vector<1x16x16x128xf32>
    %25 = vector.extract_strided_slice %23 {offsets = [0, 0, 1, 0], sizes = [1, 16, 16, 128], strides = [1, 1, 1, 1]} : vector<1x16x18x128xf32> to vector<1x16x16x128xf32>
    %26 = vector.extract_strided_slice %23 {offsets = [0, 0, 2, 0], sizes = [1, 16, 16, 128], strides = [1, 1, 1, 1]} : vector<1x16x18x128xf32> to vector<1x16x16x128xf32>
    %27 = tpu.concatenate %24, %25, %26 in 3 : vector<1x16x16x128xf32>, vector<1x16x16x128xf32>, vector<1x16x16x128xf32> -> vector<1x16x16x384xf32>
    %28 = vector.shape_cast %27 : vector<1x16x16x384xf32> to vector<256x384xf32>
    %29 = arith.truncf %28 : vector<256x384xf32> to vector<256x384xbf16>
    %c1 = arith.constant 1 : index
    %c0_13 = arith.constant 0 : index
    %c0_14 = arith.constant 0 : index
    %30 = vector.load %arg2[%c1, %c0_13, %c0_14] : memref<3x384x128xbf16, #tpu.memory_space<vmem>>, vector<1x384x128xbf16>
    %31 = vector.shape_cast %30 : vector<1x384x128xbf16> to vector<384x128xbf16>
    %cst_15 = arith.constant dense<0.000000e+00> : vector<256x128xf32>
    %32 = tpu.matmul %29, %31, %cst_15 {dimension_numbers = #tpu.dot_dimension_numbers<[1], [0], [0], [1], [0, 0, 1, 1], [], []>} : vector<256x384xbf16>, vector<384x128xbf16>, vector<256x128xf32> -> vector<256x128xf32>
    %33 = arith.addf %22, %32 : vector<256x128xf32>
    %34 = vector.extract_strided_slice %10 {offsets = [0, 2, 0, 0], sizes = [1, 16, 18, 128], strides = [1, 1, 1, 1]} : vector<1x18x18x128xf32> to vector<1x16x18x128xf32>
    %35 = vector.extract_strided_slice %34 {offsets = [0, 0, 0, 0], sizes = [1, 16, 16, 128], strides = [1, 1, 1, 1]} : vector<1x16x18x128xf32> to vector<1x16x16x128xf32>
    %36 = vector.extract_strided_slice %34 {offsets = [0, 0, 1, 0], sizes = [1, 16, 16, 128], strides = [1, 1, 1, 1]} : vector<1x16x18x128xf32> to vector<1x16x16x128xf32>
    %37 = vector.extract_strided_slice %34 {offsets = [0, 0, 2, 0], sizes = [1, 16, 16, 128], strides = [1, 1, 1, 1]} : vector<1x16x18x128xf32> to vector<1x16x16x128xf32>
    %38 = tpu.concatenate %35, %36, %37 in 3 : vector<1x16x16x128xf32>, vector<1x16x16x128xf32>, vector<1x16x16x128xf32> -> vector<1x16x16x384xf32>
    %39 = vector.shape_cast %38 : vector<1x16x16x384xf32> to vector<256x384xf32>
    %40 = arith.truncf %39 : vector<256x384xf32> to vector<256x384xbf16>
    %c2 = arith.constant 2 : index
    %c0_16 = arith.constant 0 : index
    %c0_17 = arith.constant 0 : index
    %41 = vector.load %arg2[%c2, %c0_16, %c0_17] : memref<3x384x128xbf16, #tpu.memory_space<vmem>>, vector<1x384x128xbf16>
    %42 = vector.shape_cast %41 : vector<1x384x128xbf16> to vector<384x128xbf16>
    %cst_18 = arith.constant dense<0.000000e+00> : vector<256x128xf32>
    %43 = tpu.matmul %40, %42, %cst_18 {dimension_numbers = #tpu.dot_dimension_numbers<[1], [0], [0], [1], [0, 0, 1, 1], [], []>} : vector<256x384xbf16>, vector<384x128xbf16>, vector<256x128xf32> -> vector<256x128xf32>
    %44 = arith.addf %33, %43 : vector<256x128xf32>
    %c0_19 = arith.constant 0 : index
    %c0_20 = arith.constant 0 : index
    %45 = vector.load %arg3[%c0_19, %c0_20] : memref<1x128xf32, #tpu.memory_space<vmem>>, vector<1x128xf32>
    %46 = vector.broadcast %45 : vector<1x128xf32> to vector<256x128xf32>
    %47 = arith.addf %44, %46 : vector<256x128xf32>
    %cst_21 = arith.constant dense<0.000000e+00> : vector<128xf32>
    %48 = vector.multi_reduction <add>, %47, %cst_21 [0] : vector<256x128xf32> to vector<128xf32>
    %49 = vector.shape_cast %48 : vector<128xf32> to vector<1x128xf32>
    %50 = arith.mulf %47, %47 : vector<256x128xf32>
    %cst_22 = arith.constant dense<0.000000e+00> : vector<128xf32>
    %51 = vector.multi_reduction <add>, %50, %cst_22 [0] : vector<256x128xf32> to vector<128xf32>
    %52 = vector.shape_cast %51 : vector<128xf32> to vector<1x128xf32>
    %53 = tpu.concatenate %49, %52 in 0 : vector<1x128xf32>, vector<1x128xf32> -> vector<2x128xf32>
    %54 = vector.shape_cast %53 : vector<2x128xf32> to vector<1x2x128xf32>
    %c0_23 = arith.constant 0 : index
    %c0_24 = arith.constant 0 : index
    %c0_25 = arith.constant 0 : index
    %55 = vector.load %arg7[%c0_23, %c0_24, %c0_25] : memref<1x2x128xf32, #tpu.memory_space<vmem>>, vector<1x2x128xf32>
    tpu.vector_store %arg7[%c0_23, %c0_24, %c0_25], %54 {strides = array<i32>} : memref<1x2x128xf32, #tpu.memory_space<vmem>>, vector<1x2x128xf32>,
    %56 = vector.shape_cast %47 : vector<256x128xf32> to vector<1x256x128xf32>
    %57 = arith.truncf %56 : vector<1x256x128xf32> to vector<1x256x128xbf16>
    %c0_26 = arith.constant 0 : index
    %c0_27 = arith.constant 0 : index
    %c0_28 = arith.constant 0 : index
    %58 = vector.load %arg6[%c0_26, %c0_27, %c0_28] : memref<1x256x128xbf16, #tpu.memory_space<vmem>>, vector<1x256x128xbf16>
    tpu.vector_store %arg6[%c0_26, %c0_27, %c0_28], %57 {strides = array<i32>} : memref<1x256x128xbf16, #tpu.memory_space<vmem>>, vector<1x256x128xbf16>,
    return
  }
  func.func @transform_0(%arg0: i32) -> (i32, i32, i32, i32) {
    %c0_i32 = arith.constant 0 : i32
    %c0_i32_0 = arith.constant 0 : i32
    %c0_i32_1 = arith.constant 0 : i32
    %c0_i32_2 = arith.constant 0 : i32
    return %arg0, %c0_i32, %c0_i32_0, %c0_i32_1 : i32, i32, i32, i32
  }
  func.func @transform_1(%arg0: i32) -> (i32, i32, i32) {
    %c0_i32 = arith.constant 0 : i32
    %c0_i32_0 = arith.constant 0 : i32
    %c0_i32_1 = arith.constant 0 : i32
    %c0_i32_2 = arith.constant 0 : i32
    return %c0_i32, %c0_i32_0, %c0_i32_1 : i32, i32, i32
  }
  func.func @transform_2(%arg0: i32) -> (i32, i32) {
    %c0_i32 = arith.constant 0 : i32
    %c0_i32_0 = arith.constant 0 : i32
    %c0_i32_1 = arith.constant 0 : i32
    return %c0_i32, %c0_i32_0 : i32, i32
  }
  func.func @transform_3(%arg0: i32) -> (i32, i32) {
    %c0_i32 = arith.constant 0 : i32
    %c0_i32_0 = arith.constant 0 : i32
    %c0_i32_1 = arith.constant 0 : i32
    return %c0_i32, %c0_i32_0 : i32, i32
  }
  func.func @transform_4(%arg0: i32) -> (i32, i32, i32) {
    %c0_i32 = arith.constant 0 : i32
    %c0_i32_0 = arith.constant 0 : i32
    %c0_i32_1 = arith.constant 0 : i32
    %c0_i32_2 = arith.constant 0 : i32
    return %c0_i32, %c0_i32_0, %c0_i32_1 : i32, i32, i32
  }
  func.func @transform_5(%arg0: i32) -> (i32, i32, i32) {
    %c0_i32 = arith.constant 0 : i32
    %c0_i32_0 = arith.constant 0 : i32
    %c0_i32_1 = arith.constant 0 : i32
    return %arg0, %c0_i32, %c0_i32_0 : i32, i32, i32
  }
  func.func @transform_6(%arg0: i32) -> (i32, i32, i32) {
    %c0_i32 = arith.constant 0 : i32
    %c0_i32_0 = arith.constant 0 : i32
    %c0_i32_1 = arith.constant 0 : i32
    return %arg0, %c0_i32, %c0_i32_0 : i32, i32, i32
  }
}

module attributes {stable_mosaic.version = 11 : i64} {
  func.func @_stage_c_kernel(%arg0: i32, %arg1: memref<1x256x128xbf16, #tpu.memory_space<vmem>>, %arg2: memref<1x256x128xbf16, #tpu.memory_space<vmem>>, %arg3: memref<128x128xbf16, #tpu.memory_space<vmem>>, %arg4: memref<1x128xf32, #tpu.memory_space<vmem>>, %arg5: memref<1x128xf32, #tpu.memory_space<vmem>>, %arg6: memref<1x256x128xf32, #tpu.memory_space<vmem>>) attributes {dimension_semantics = [#tpu.dimension_semantics<parallel>], iteration_bounds = array<i64: 2>, scalar_prefetch = 0 : i64, scratch_operands = 0 : i64, tpu.core_type = #tpu.core_type<tc>, window_params = [{transform_indices = @transform_0, window_bounds = array<i64: 1, 256, 128>}, {transform_indices = @transform_1, window_bounds = array<i64: 1, 256, 128>}, {pipeline_mode = #tpu.pipeline_mode<synchronous>, transform_indices = @transform_2, window_bounds = array<i64: 128, 128>}, {pipeline_mode = #tpu.pipeline_mode<synchronous>, transform_indices = @transform_3, window_bounds = array<i64: 1, 128>}, {pipeline_mode = #tpu.pipeline_mode<synchronous>, transform_indices = @transform_4, window_bounds = array<i64: 1, 128>}, {transform_indices = @transform_5, window_bounds = array<i64: 1, 256, 128>}]} {
    %c0 = arith.constant 0 : index
    %c0_0 = arith.constant 0 : index
    %c0_1 = arith.constant 0 : index
    %0 = vector.load %arg2[%c0, %c0_0, %c0_1] : memref<1x256x128xbf16, #tpu.memory_space<vmem>>, vector<1x256x128xbf16>
    %1 = vector.shape_cast %0 : vector<1x256x128xbf16> to vector<256x128xbf16>
    %c0_2 = arith.constant 0 : index
    %c0_3 = arith.constant 0 : index
    %2 = vector.load %arg3[%c0_2, %c0_3] : memref<128x128xbf16, #tpu.memory_space<vmem>>, vector<128x128xbf16>
    %cst = arith.constant dense<0.000000e+00> : vector<256x128xf32>
    %3 = tpu.matmul %1, %2, %cst {dimension_numbers = #tpu.dot_dimension_numbers<[1], [0], [0], [1], [0, 0, 1, 1], [], []>} : vector<256x128xbf16>, vector<128x128xbf16>, vector<256x128xf32> -> vector<256x128xf32>
    %c0_4 = arith.constant 0 : index
    %c0_5 = arith.constant 0 : index
    %c0_6 = arith.constant 0 : index
    %4 = vector.load %arg1[%c0_4, %c0_5, %c0_6] : memref<1x256x128xbf16, #tpu.memory_space<vmem>>, vector<1x256x128xbf16>
    %5 = vector.shape_cast %4 : vector<1x256x128xbf16> to vector<256x128xbf16>
    %6 = arith.extf %5 : vector<256x128xbf16> to vector<256x128xf32>
    %c0_7 = arith.constant 0 : index
    %c0_8 = arith.constant 0 : index
    %7 = vector.load %arg4[%c0_7, %c0_8] : memref<1x128xf32, #tpu.memory_space<vmem>>, vector<1x128xf32>
    %8 = vector.broadcast %7 : vector<1x128xf32> to vector<256x128xf32>
    %9 = arith.mulf %6, %8 : vector<256x128xf32>
    %c0_9 = arith.constant 0 : index
    %c0_10 = arith.constant 0 : index
    %10 = vector.load %arg5[%c0_9, %c0_10] : memref<1x128xf32, #tpu.memory_space<vmem>>, vector<1x128xf32>
    %11 = vector.broadcast %10 : vector<1x128xf32> to vector<256x128xf32>
    %12 = arith.addf %9, %11 : vector<256x128xf32>
    %13 = arith.addf %12, %3 : vector<256x128xf32>
    %cst_11 = arith.constant 0.000000e+00 : f32
    %14 = vector.broadcast %cst_11 : f32 to vector<256x128xf32>
    %15 = arith.maximumf %13, %14 : vector<256x128xf32>
    %16 = vector.shape_cast %15 : vector<256x128xf32> to vector<1x256x128xf32>
    %c0_12 = arith.constant 0 : index
    %c0_13 = arith.constant 0 : index
    %c0_14 = arith.constant 0 : index
    %17 = vector.load %arg6[%c0_12, %c0_13, %c0_14] : memref<1x256x128xf32, #tpu.memory_space<vmem>>, vector<1x256x128xf32>
    tpu.vector_store %arg6[%c0_12, %c0_13, %c0_14], %16 {strides = array<i32>} : memref<1x256x128xf32, #tpu.memory_space<vmem>>, vector<1x256x128xf32>,
    return
  }
  func.func @transform_0(%arg0: i32) -> (i32, i32, i32) {
    %c0_i32 = arith.constant 0 : i32
    %c0_i32_0 = arith.constant 0 : i32
    %c0_i32_1 = arith.constant 0 : i32
    return %arg0, %c0_i32, %c0_i32_0 : i32, i32, i32
  }
  func.func @transform_1(%arg0: i32) -> (i32, i32, i32) {
    %c0_i32 = arith.constant 0 : i32
    %c0_i32_0 = arith.constant 0 : i32
    %c0_i32_1 = arith.constant 0 : i32
    return %arg0, %c0_i32, %c0_i32_0 : i32, i32, i32
  }
  func.func @transform_2(%arg0: i32) -> (i32, i32) {
    %c0_i32 = arith.constant 0 : i32
    %c0_i32_0 = arith.constant 0 : i32
    %c0_i32_1 = arith.constant 0 : i32
    return %c0_i32, %c0_i32_0 : i32, i32
  }
  func.func @transform_3(%arg0: i32) -> (i32, i32) {
    %c0_i32 = arith.constant 0 : i32
    %c0_i32_0 = arith.constant 0 : i32
    %c0_i32_1 = arith.constant 0 : i32
    return %c0_i32, %c0_i32_0 : i32, i32
  }
  func.func @transform_4(%arg0: i32) -> (i32, i32) {
    %c0_i32 = arith.constant 0 : i32
    %c0_i32_0 = arith.constant 0 : i32
    %c0_i32_1 = arith.constant 0 : i32
    return %c0_i32, %c0_i32_0 : i32, i32
  }
  func.func @transform_5(%arg0: i32) -> (i32, i32, i32) {
    %c0_i32 = arith.constant 0 : i32
    %c0_i32_0 = arith.constant 0 : i32
    %c0_i32_1 = arith.constant 0 : i32
    return %arg0, %c0_i32, %c0_i32_0 : i32, i32, i32
  }
}

</mosaic_0001>

<llo_original>
// kernel: residual_block_forward.5
$region0: #{residual_block_forward.5}
  #allocation0 [shape = 'u32[]', space=smem, size = 0x4, offset = 0x4, fixed_abs, tag = 'smem constant byte address 0x4 - core index']
  #allocation1 [shape = 'u32[144,128]{1,0:T(1,128)}', space=vmem, size = 0x12000, scoped, tag = 'internal scratch']
  %s0 = inlined_call_operand.vmem [shape: bf16[2,256,128], index: 0, kind: input, shape index: {}]
  %s1 = inlined_call_operand.vmem [shape: bf16[2,256,128], index: 1, kind: input, shape index: {}]
  %s2 = inlined_call_operand.vmem [shape: bf16[128,128], index: 2, kind: input, shape index: {}]
  %s3 = inlined_call_operand.vmem [shape: f32[1,128], index: 3, kind: input, shape index: {}]
  %s4 = inlined_call_operand.vmem [shape: f32[1,128], index: 4, kind: input, shape index: {}]
  %s5 = inlined_call_operand.vmem [shape: f32[2,256,128], index: 5, kind: output, shape index: {}]
  %s6 = sld [smem:[#allocation0]]
  $region53: #{residual_block_forward.5} parent=0
    _
  %s8 = ssub.s32 1, %s6
  %s9 = scalar_select 0, %s8, %s6
  loop: start=0, step=1, limit=4
  $region2: #{residual_block_forward.5} parent=0 // loop_pre_header
    _
  $region3: #{residual_block_forward.5} parent=0 // loop_header
    %s11 = sphi 0, %s15
    %p12 = scmp.ge.s32.totalorder %s11, 4
    %s21 = sphi 0, %s23
    %s24 = sphi 0, %s21
    %s25 = sphi 0, %s24
    %s41 = sphi 0, %s25
    %s47 = sphi 0, %s49
    %s50 = sphi 0, %s47
    %s51 = sphi 0, %s50
    %s67 = sphi 0, %s51
    %s71 = sphi 0, %s71
    %s73 = sphi 0, %s71
    %s74 = sphi 0, %s73
    %s88 = sphi 0, %s74
    %s92 = sphi 0, %s92
    %s94 = sphi 0, %s92
    %s95 = sphi 0, %s94
    %s109 = sphi 0, %s95
    %s113 = sphi 0, %s113
    %s115 = sphi 0, %s113
    %s116 = sphi 0, %s115
    %s130 = sphi 0, %s116
    %s136 = sphi 0, %s138
    %s139 = sphi 0, %s136
    %s140 = sphi 0, %s139
    %s156 = sphi 0, %s140
  $region4: #{residual_block_forward.5} parent=0 // loop_header_branch
    %14 = sbr.rel (%p12) target = $region8
  $region5: #{residual_block_forward.5} parent=0 // loop_body
    %s16 = ssub.s32 %s11, 1
    %s17 = ssub.s32 %s11, 2
    %s18 = sadd.s32 %s11, 1
    %s19 = ssub.s32 %s11, %s18
    %p20 = scmp.eq.s32.totalorder %s19, 0
    %s22 = sadd.s32 %s21, 1
    %s23 = scalar_select %p20, %s21, %s22
    %p26 = pneg %p20
    %p27 = scmp.eq.s32.totalorder %s11, 1
    %p28 = por %p26, %p27
    %p29 = scmp.ne.s32.totalorder %s21, %s24
    %p30 = scmp.eq.s32.totalorder %s11, 0
    %p31 = por %p29, %p30
    %p32 = scmp.ne.s32.totalorder %s21, %s24
    %p33 = scmp.eq.s32.totalorder %s16, 1
    %p34 = por %p32, %p33
    %p35 = scmp.ne.s32.totalorder %s24, %s25
    %p36 = scmp.eq.s32.totalorder %s16, 0
    %p37 = por %p35, %p36
    %p38 = scmp.ne.s32.totalorder %s24, %s25
    %p39 = scmp.eq.s32.totalorder %s17, 1
    %p40 = por %p38, %p39
    %p42 = scmp.ne.s32.totalorder %s25, %s41
    %p43 = scmp.eq.s32.totalorder %s17, 0
    %p44 = por %p42, %p43
    %s45 = ssub.s32 %s11, %s18
    %p46 = scmp.eq.s32.totalorder %s45, 0
    %s48 = sadd.s32 %s47, 1
    %s49 = scalar_select %p46, %s47, %s48
    %p52 = pneg %p46
    %p53 = scmp.eq.s32.totalorder %s11, 1
    %p54 = por %p52, %p53
    %p55 = scmp.ne.s32.totalorder %s47, %s50
    %p56 = scmp.eq.s32.totalorder %s11, 0
    %p57 = por %p55, %p56
    %p58 = scmp.ne.s32.totalorder %s47, %s50
    %p59 = scmp.eq.s32.totalorder %s16, 1
    %p60 = por %p58, %p59
    %p61 = scmp.ne.s32.totalorder %s50, %s51
    %p62 = scmp.eq.s32.totalorder %s16, 0
    %p63 = por %p61, %p62
    %p64 = scmp.ne.s32.totalorder %s50, %s51
    %p65 = scmp.eq.s32.totalorder %s17, 1
    %p66 = por %p64, %p65
    %p68 = scmp.ne.s32.totalorder %s51, %s67
    %p69 = scmp.eq.s32.totalorder %s17, 0
    %p70 = por %p68, %p69
    %s72 = sadd.s32 %s71, 1
    %p75 = scmp.eq.s32.totalorder %s11, 1
    %p76 = scmp.ne.s32.totalorder %s71, %s73
    %p77 = scmp.eq.s32.totalorder %s11, 0
    %p78 = por %p76, %p77
    %p79 = scmp.ne.s32.totalorder %s71, %s73
    %p80 = scmp.eq.s32.totalorder %s16, 1
    %p81 = por %p79, %p80
    %p82 = scmp.ne.s32.totalorder %s73, %s74
    %p83 = scmp.eq.s32.totalorder %s16, 0
    %p84 = por %p82, %p83
    %p85 = scmp.ne.s32.totalorder %s73, %s74
    %p86 = scmp.eq.s32.totalorder %s17, 1
    %p87 = por %p85, %p86
    %p89 = scmp.ne.s32.totalorder %s74, %s88
    %p90 = scmp.eq.s32.totalorder %s17, 0
    %p91 = por %p89, %p90
    %s93 = sadd.s32 %s92, 1
    %p96 = scmp.eq.s32.totalorder %s11, 1
    %p97 = scmp.ne.s32.totalorder %s92, %s94
    %p98 = scmp.eq.s32.totalorder %s11, 0
    %p99 = por %p97, %p98
    %p100 = scmp.ne.s32.totalorder %s92, %s94
    %p101 = scmp.eq.s32.totalorder %s16, 1
    %p102 = por %p100, %p101
    %p103 = scmp.ne.s32.totalorder %s94, %s95
    %p104 = scmp.eq.s32.totalorder %s16, 0
    %p105 = por %p103, %p104
    %p106 = scmp.ne.s32.totalorder %s94, %s95
    %p107 = scmp.eq.s32.totalorder %s17, 1
    %p108 = por %p106, %p107
    %p110 = scmp.ne.s32.totalorder %s95, %s109
    %p111 = scmp.eq.s32.totalorder %s17, 0
    %p112 = por %p110, %p111
    %s114 = sadd.s32 %s113, 1
    %p117 = scmp.eq.s32.totalorder %s11, 1
    %p118 = scmp.ne.s32.totalorder %s113, %s115
    %p119 = scmp.eq.s32.totalorder %s11, 0
    %p120 = por %p118, %p119
    %p121 = scmp.ne.s32.totalorder %s113, %s115
    %p122 = scmp.eq.s32.totalorder %s16, 1
    %p123 = por %p121, %p122
    %p124 = scmp.ne.s32.totalorder %s115, %s116
    %p125 = scmp.eq.s32.totalorder %s16, 0
    %p126 = por %p124, %p125
    %p127 = scmp.ne.s32.totalorder %s115, %s116
    %p128 = scmp.eq.s32.totalorder %s17, 1
    %p129 = por %p127, %p128
    %p131 = scmp.ne.s32.totalorder %s116, %s130
    %p132 = scmp.eq.s32.totalorder %s17, 0
    %p133 = por %p131, %p132
    %s134 = ssub.s32 %s11, %s18
    %p135 = scmp.eq.s32.totalorder %s134, 0
    %s137 = sadd.s32 %s136, 1
    %s138 = scalar_select %p135, %s136, %s137
    %p141 = pneg %p135
    %p142 = scmp.eq.s32.totalorder %s11, 1
    %p143 = por %p141, %p142
    %p144 = scmp.ne.s32.totalorder %s136, %s139
    %p145 = scmp.eq.s32.totalorder %s11, 0
    %p146 = por %p144, %p145
    %p147 = scmp.ne.s32.totalorder %s136, %s139
    %p148 = scmp.eq.s32.totalorder %s16, 1
    %p149 = por %p147, %p148
    %p150 = scmp.ne.s32.totalorder %s139, %s140
    %p151 = scmp.eq.s32.totalorder %s16, 0
    %p152 = por %p150, %p151
    %p153 = scmp.ne.s32.totalorder %s139, %s140
    %p154 = scmp.eq.s32.totalorder %s17, 1
    %p155 = por %p153, %p154
    %p157 = scmp.ne.s32.totalorder %s140, %s156
    %p158 = scmp.eq.s32.totalorder %s17, 0
    %p159 = por %p157, %p158
    %p160 = scmp.le.s32.totalorder 1, %s11
    %p161 = scmp.lt.s32.totalorder %s11, 3
    %p162 = pnand %p160, %p161
    %p163 = pneg %p162
    // Predicated region
    $region9: #{residual_block_forward.5} parent=5 // pred_check
      _
    $region10: #{residual_block_forward.5} parent=5 // pred_check_branch
      %165 = sbr.rel (%p162) target = $region12
    $region11: #{residual_block_forward.5} parent=5 // pred_region
      %s166 = ssub.s32 %s11, 1
      // Predicated region
      $region13: #{residual_block_forward.5} parent=11 // pred_check
        %p167 = pneg %p84
      $region14: #{residual_block_forward.5} parent=11 // pred_check_branch
        %169 = sbr.rel (%p167) target = $region16
      $region15: #{residual_block_forward.5} parent=11 // pred_region
        _
      $region16: #{residual_block_forward.5} parent=11 // pred_fallthru
        _
      // Predicated region
      $region17: #{residual_block_forward.5} parent=11 // pred_check
        %p170 = pneg %p105
      $region18: #{residual_block_forward.5} parent=11 // pred_check_branch
        %172 = sbr.rel (%p170) target = $region20
      $region19: #{residual_block_forward.5} parent=11 // pred_region
        _
      $region20: #{residual_block_forward.5} parent=11 // pred_fallthru
        _
      // Predicated region
      $region21: #{residual_block_forward.5} parent=11 // pred_check
        %p173 = pneg %p126
      $region22: #{residual_block_forward.5} parent=11 // pred_check_branch
        %175 = sbr.rel (%p173) target = $region24
      $region23: #{residual_block_forward.5} parent=11 // pred_region
        _
      $region24: #{residual_block_forward.5} parent=11 // pred_fallthru
        _
    $region12: #{residual_block_forward.5} parent=5 // pred_fallthru
      _
    %p176 = scmp.lt.s32.totalorder %s11, 2
    // Predicated region
    $region25: #{residual_block_forward.5} parent=5 // pred_check
      %p177 = pneg %p176
    $region26: #{residual_block_forward.5} parent=5 // pred_check_branch
      %179 = sbr.rel (%p177) target = $region28
    $region27: #{residual_block_forward.5} parent=5 // pred_region
      // Predicated region
      $region29: #{residual_block_forward.5} parent=27 // pred_check
        %p180 = pneg %p31
      $region30: #{residual_block_forward.5} parent=27 // pred_check_branch
        %182 = sbr.rel (%p180) target = $region32
      $region31: #{residual_block_forward.5} parent=27 // pred_region
        %p183 = scmp.lt.s32.totalorder %s11, 1
        %s184 = scalar_select %p183, %s11, 1
        %s185 = smul.addr %s184, 32
        %s186 = smul.addr %s185, 4
        %s187 = scalar_lea.vmem %s0, %s186
      $region32: #{residual_block_forward.5} parent=27 // pred_fallthru
        _
      // Predicated region
      $region33: #{residual_block_forward.5} parent=27 // pred_check
        %p188 = pneg %p57
      $region34: #{residual_block_forward.5} parent=27 // pred_check_branch
        %190 = sbr.rel (%p188) target = $region36
      $region35: #{residual_block_forward.5} parent=27 // pred_region
        %p191 = scmp.lt.s32.totalorder %s11, 1
        %s192 = scalar_select %p191, %s11, 1
        %s193 = smul.addr %s192, 32
        %s194 = smul.addr %s193, 4
        %s195 = scalar_lea.vmem %s1, %s194
      $region36: #{residual_block_forward.5} parent=27 // pred_fallthru
        _
    $region28: #{residual_block_forward.5} parent=5 // pred_fallthru
      _
    %p196 = scmp.le.s32.totalorder 1, %s11
    %p197 = scmp.lt.s32.totalorder %s11, 3
    %p198 = pnand %p196, %p197
    %p199 = pneg %p198
    // Predicated region
    $region37: #{residual_block_forward.5} parent=5 // pred_check
      _
    $region38: #{residual_block_forward.5} parent=5 // pred_check_branch
      %201 = sbr.rel (%p198) target = $region40
    $region39: #{residual_block_forward.5} parent=5 // pred_region
      %s202 = ssub.s32 %s11, 1
      %p203 = scmp.lt.s32.totalorder %s16, 1
      %s204 = scalar_select %p203, %s16, 1
      %s205 = smul.addr %s204, 32
      %s206 = smul.addr %s205, 4
      %s207 = scalar_lea.vmem %s0, %s206
      %p208 = pneg %p37
      %p209 = pneg %p34
      %p210 = scmp.lt.s32.totalorder %s16, 1
      %s211 = scalar_select %p210, %s16, 1
      %s212 = smul.addr %s211, 32
      %s213 = smul.addr %s212, 4
      %s214 = scalar_lea.vmem %s1, %s213
      %p215 = pneg %p63
      %p216 = pneg %p60
      %p217 = pneg %p84
      %p218 = pneg %p81
      %p219 = pneg %p105
      %p220 = pneg %p102
      %p221 = pneg %p126
      %p222 = pneg %p123
      %p223 = pneg %p152
      %p224 = pneg %p149
      %p225 = scmp.lt.s32.totalorder %s16, 1
      %s226 = scalar_select %p225, %s16, 1
      %s227 = smul.addr %s226, 32
      %s228 = smul.addr %s227, 8
      %s229 = scalar_lea.vmem %s5, %s228
      %p230 = scmp.lt.s32.totalorder %s16, 1
      %s231 = scalar_select %p230, %s16, 1
      %s232 = smul.addr %s231, 32
      %s233 = smul.addr %s232, 4
      %s234 = scalar_lea.vmem %s0, %s233
      %p235 = scmp.lt.s32.totalorder %s16, 1
      %s236 = scalar_select %p235, %s16, 1
      %s237 = smul.addr %s236, 32
      %s238 = smul.addr %s237, 4
      %s239 = scalar_lea.vmem %s1, %s238
      %p240 = scmp.lt.s32.totalorder %s16, 1
      %s241 = scalar_select %p240, %s16, 1
      %s242 = smul.addr %s241, 32
      %s243 = smul.addr %s242, 8
      %s244 = scalar_lea.vmem %s5, %s243
      %v246 = vld [vmem:[%s239] sm:$0xf]
      %v247 = vld [vmem:[%s239 + $0x4] sm:$0xf]
      %v248 = vld [vmem:[%s239 + $0x8] sm:$0xf]
      %v249 = vld [vmem:[%s239 + $0xc] sm:$0xf]
      %v250 = vld [vmem:[%s239 + $0x10] sm:$0xf]
      %v251 = vld [vmem:[%s239 + $0x14] sm:$0xf]
      %v252 = vld [vmem:[%s239 + $0x18] sm:$0xf]
      %v253 = vld [vmem:[%s239 + $0x1c] sm:$0xf]
      %v254 = vld [vmem:[%s239 + $0x20] sm:$0xf]
      %v255 = vld [vmem:[%s239 + $0x24] sm:$0xf]
      %v256 = vld [vmem:[%s239 + $0x28] sm:$0xf]
      %v257 = vld [vmem:[%s239 + $0x2c] sm:$0xf]
      %v258 = vld [vmem:[%s239 + $0x30] sm:$0xf]
      %v259 = vld [vmem:[%s239 + $0x34] sm:$0xf]
      %v260 = vld [vmem:[%s239 + $0x38] sm:$0xf]
      %v261 = vld [vmem:[%s239 + $0x3c] sm:$0xf]
      %v262 = vld [vmem:[%s239 + $0x40] sm:$0xf]
      %v263 = vld [vmem:[%s239 + $0x44] sm:$0xf]
      %v264 = vld [vmem:[%s239 + $0x48] sm:$0xf]
      %v265 = vld [vmem:[%s239 + $0x4c] sm:$0xf]
      %v266 = vld [vmem:[%s239 + $0x50] sm:$0xf]
      %v267 = vld [vmem:[%s239 + $0x54] sm:$0xf]
      %v268 = vld [vmem:[%s239 + $0x58] sm:$0xf]
      %v269 = vld [vmem:[%s239 + $0x5c] sm:$0xf]
      %v270 = vld [vmem:[%s239 + $0x60] sm:$0xf]
      %v271 = vld [vmem:[%s239 + $0x64] sm:$0xf]
      %v272 = vld [vmem:[%s239 + $0x68] sm:$0xf]
      %v273 = vld [vmem:[%s239 + $0x6c] sm:$0xf]
      %v274 = vld [vmem:[%s239 + $0x70] sm:$0xf]
      %v275 = vld [vmem:[%s239 + $0x74] sm:$0xf]
      %v276 = vld [vmem:[%s239 + $0x78] sm:$0xf]
      %v277 = vld [vmem:[%s239 + $0x7c] sm:$0xf]
      %v278 = vld [vmem:[%s2] sm:$0xf]
      %v279 = vld [vmem:[%s2 + $0x4] sm:$0xf]
      %v280 = vld [vmem:[%s2 + $0x8] sm:$0xf]
      %v281 = vld [vmem:[%s2 + $0xc] sm:$0xf]
      %v282 = vld [vmem:[%s2 + $0x10] sm:$0xf]
      %v283 = vld [vmem:[%s2 + $0x14] sm:$0xf]
      %v284 = vld [vmem:[%s2 + $0x18] sm:$0xf]
      %v285 = vld [vmem:[%s2 + $0x1c] sm:$0xf]
      %v286 = vld [vmem:[%s2 + $0x20] sm:$0xf]
      %v287 = vld [vmem:[%s2 + $0x24] sm:$0xf]
      %v288 = vld [vmem:[%s2 + $0x28] sm:$0xf]
      %v289 = vld [vmem:[%s2 + $0x2c] sm:$0xf]
      %v290 = vld [vmem:[%s2 + $0x30] sm:$0xf]
      %v291 = vld [vmem:[%s2 + $0x34] sm:$0xf]
      %v292 = vld [vmem:[%s2 + $0x38] sm:$0xf]
      %v293 = vld [vmem:[%s2 + $0x3c] sm:$0xf]
      %v326 = vunpack.c.l.b16 %v246
      %v327 = vunpack.c.l.b16 %v247
      %v328 = vunpack.c.l.b16 %v248
      %v329 = vunpack.c.l.b16 %v249
      %v330 = vunpack.c.l.b16 %v250
      %v331 = vunpack.c.l.b16 %v251
      %v332 = vunpack.c.l.b16 %v252
      %v333 = vunpack.c.l.b16 %v253
      %v334 = vunpack.c.l.b16 %v254
      %v335 = vunpack.c.l.b16 %v255
      %v336 = vunpack.c.l.b16 %v256
      %v337 = vunpack.c.l.b16 %v257
      %v338 = vunpack.c.l.b16 %v258
      %v339 = vunpack.c.l.b16 %v259
      %v340 = vunpack.c.l.b16 %v260
      %v341 = vunpack.c.l.b16 %v261
      %v342 = vunpack.c.l.b16 %v262
      %v343 = vunpack.c.l.b16 %v263
      %v344 = vunpack.c.l.b16 %v264
      %v345 = vunpack.c.l.b16 %v265
      %v346 = vunpack.c.l.b16 %v266
      %v347 = vunpack.c.l.b16 %v267
      %v348 = vunpack.c.l.b16 %v268
      %v349 = vunpack.c.l.b16 %v269
      %v350 = vunpack.c.l.b16 %v270
      %v351 = vunpack.c.l.b16 %v271
      %v352 = vunpack.c.l.b16 %v272
      %v353 = vunpack.c.l.b16 %v273
      %v354 = vunpack.c.l.b16 %v274
      %v355 = vunpack.c.l.b16 %v275
      %v356 = vunpack.c.l.b16 %v276
      %v357 = vunpack.c.l.b16 %v277
      %v358 = vpack.c.b16 %v327, %v326
      %v359 = vpack.c.b16 %v329, %v328
      %v360 = vpack.c.b16 %v331, %v330
      %v361 = vpack.c.b16 %v333, %v332
      %v362 = vpack.c.b16 %v335, %v334
      %v363 = vpack.c.b16 %v337, %v336
      %v364 = vpack.c.b16 %v339, %v338
      %v365 = vpack.c.b16 %v341, %v340
      %v366 = vpack.c.b16 %v343, %v342
      %v367 = vpack.c.b16 %v345, %v344
      %v368 = vpack.c.b16 %v347, %v346
      %v369 = vpack.c.b16 %v349, %v348
      %v370 = vpack.c.b16 %v351, %v350
      %v371 = vpack.c.b16 %v353, %v352
      %v372 = vpack.c.b16 %v355, %v354
      %v373 = vpack.c.b16 %v357, %v356
      %v406 = vunpack.c.l.b16 %v278
      %v407 = vunpack.c.l.b16 %v279
      %v408 = vunpack.c.l.b16 %v280
      %v409 = vunpack.c.l.b16 %v281
      %v410 = vunpack.c.l.b16 %v282
      %v411 = vunpack.c.l.b16 %v283
      %v412 = vunpack.c.l.b16 %v284
      %v413 = vunpack.c.l.b16 %v285
      %v414 = vunpack.c.l.b16 %v286
      %v415 = vunpack.c.l.b16 %v287
      %v416 = vunpack.c.l.b16 %v288
      %v417 = vunpack.c.l.b16 %v289
      %v418 = vunpack.c.l.b16 %v290
      %v419 = vunpack.c.l.b16 %v291
      %v420 = vunpack.c.l.b16 %v292
      %v421 = vunpack.c.l.b16 %v293
      %v422 = vpack.c.b16 %v407, %v406
      %v423 = vpack.c.b16 %v409, %v408
      %v424 = vpack.c.b16 %v411, %v410
      %v425 = vpack.c.b16 %v413, %v412
      %v426 = vpack.c.b16 %v415, %v414
      %v427 = vpack.c.b16 %v417, %v416
      %v428 = vpack.c.b16 %v419, %v418
      %v429 = vpack.c.b16 %v421, %v420
      %438 = vmatprep.subr.bf16.mxu0 0
      %439 = vmatpush1.bf16.msra.mxu0 %v422
      %440 = vmatprep.subr.bf16.mxu0 0
      %441 = vmatpush1.bf16.msra.mxu0 %v423
      %442 = vmatprep.subr.bf16.mxu0 0
      %443 = vmatpush1.bf16.msra.mxu0 %v424
      %444 = vmatprep.subr.bf16.mxu0 0
      %445 = vmatpush1.bf16.msra.mxu0 %v425
      %446 = vmatprep.subr.bf16.mxu0 0
      %447 = vmatpush1.bf16.msra.mxu0 %v426
      %448 = vmatprep.subr.bf16.mxu0 0
      %449 = vmatpush1.bf16.msra.mxu0 %v427
      %450 = vmatprep.subr.bf16.mxu0 0
      %451 = vmatpush1.bf16.msra.mxu0 %v428
      %452 = vmatprep.subr.bf16.mxu0 0
      %453 = vmatpush1.bf16.msra.mxu0 %v429
      %454 = vmatprep.subr.bf16.mxu0 0
      %455 = vmatpush1.bf16.msra.mxu0 0
      %456 = vmatprep.subr.bf16.mxu0 0
      %457 = vmatpush1.bf16.msra.mxu0 0
      %458 = vmatprep.subr.bf16.mxu0 0
      %459 = vmatpush1.bf16.msra.mxu0 0
      %460 = vmatprep.subr.bf16.mxu0 0
      %461 = vmatpush1.bf16.msra.mxu0 0
      %462 = vmatprep.subr.bf16.mxu0 0
      %463 = vmatpush1.bf16.msra.mxu0 0
      %464 = vmatprep.subr.bf16.mxu0 0
      %465 = vmatpush1.bf16.msra.mxu0 0
      %466 = vmatprep.subr.bf16.mxu0 0
      %467 = vmatpush1.bf16.msra.mxu0 0
      %468 = vmatprep.subr.bf16.mxu0 0
      %469 = vmatpush1.bf16.msra.mxu0 0
      %470 = vmatprep.mubr.bf16.mxu0 0
      %471 = vmatmul.mubr.bf16.gmra.mrb[0].mxu0 %v358
      %v472 = vpop.f32.mrb[0].mxu0
      %v473 = vadd.f32 0.0, %v472
      %v474 = vpop.f32.mrb[0].mxu0
      %v475 = vpop.f32.mrb[0].mxu0
      %v476 = vadd.f32 0.0, %v475
      %v477 = vpop.f32.mrb[0].mxu0
      %478 = vmatprep.mubr.bf16.mxu0 0
      %479 = vmatmul.mubr.bf16.gmra.mrb[0].mxu0 %v359
      %v480 = vpop.f32.mrb[0].mxu0
      %v481 = vadd.f32 0.0, %v480
      %v482 = vpop.f32.mrb[0].mxu0
      %v483 = vpop.f32.mrb[0].mxu0
      %v484 = vadd.f32 0.0, %v483
      %v485 = vpop.f32.mrb[0].mxu0
      %486 = vmatprep.mubr.bf16.mxu0 0
      %487 = vmatmul.mubr.bf16.gmra.mrb[0].mxu0 %v360
      %v488 = vpop.f32.mrb[0].mxu0
      %v489 = vadd.f32 0.0, %v488
      %v490 = vpop.f32.mrb[0].mxu0
      %v491 = vpop.f32.mrb[0].mxu0
      %v492 = vadd.f32 0.0, %v491
      %v493 = vpop.f32.mrb[0].mxu0
      %494 = vmatprep.mubr.bf16.mxu0 0
      %495 = vmatmul.mubr.bf16.gmra.mrb[0].mxu0 %v361
      %v496 = vpop.f32.mrb[0].mxu0
      %v497 = vadd.f32 0.0, %v496
      %v498 = vpop.f32.mrb[0].mxu0
      %v499 = vpop.f32.mrb[0].mxu0
      %v500 = vadd.f32 0.0, %v499
      %v501 = vpop.f32.mrb[0].mxu0
      %502 = vmatprep.mubr.bf16.mxu0 0
      %503 = vmatmul.mubr.bf16.gmra.mrb[0].mxu0 %v362
      %v504 = vpop.f32.mrb[0].mxu0
      %v505 = vadd.f32 0.0, %v504
      %v506 = vpop.f32.mrb[0].mxu0
      %v507 = vpop.f32.mrb[0].mxu0
      %v508 = vadd.f32 0.0, %v507
      %v509 = vpop.f32.mrb[0].mxu0
      %510 = vmatprep.mubr.bf16.mxu0 0
      %511 = vmatmul.mubr.bf16.gmra.mrb[0].mxu0 %v363
      %v512 = vpop.f32.mrb[0].mxu0
      %v513 = vadd.f32 0.0, %v512
      %v514 = vpop.f32.mrb[0].mxu0
      %v515 = vpop.f32.mrb[0].mxu0
      %v516 = vadd.f32 0.0, %v515
      %v517 = vpop.f32.mrb[0].mxu0
      %518 = vmatprep.mubr.bf16.mxu0 0
      %519 = vmatmul.mubr.bf16.gmra.mrb[0].mxu0 %v364
      %v520 = vpop.f32.mrb[0].mxu0
      %v521 = vadd.f32 0.0, %v520
      %v522 = vpop.f32.mrb[0].mxu0
      %v523 = vpop.f32.mrb[0].mxu0
      %v524 = vadd.f32 0.0, %v523
      %v525 = vpop.f32.mrb[0].mxu0
      %526 = vmatprep.mubr.bf16.mxu0 0
      %527 = vmatmul.mubr.bf16.gmra.mrb[0].mxu0 %v365
      %v528 = vpop.f32.mrb[0].mxu0
      %v529 = vadd.f32 0.0, %v528
      %v530 = vpop.f32.mrb[0].mxu0
      %v531 = vpop.f32.mrb[0].mxu0
      %v532 = vadd.f32 0.0, %v531
      %v533 = vpop.f32.mrb[0].mxu0
      %534 = vmatprep.mubr.bf16.mxu0 0
      %535 = vmatmul.mubr.bf16.gmra.mrb[0].mxu0 %v366
      %v536 = vpop.f32.mrb[0].mxu0
      %v537 = vadd.f32 0.0, %v536
      %v538 = vpop.f32.mrb[0].mxu0
      %v539 = vpop.f32.mrb[0].mxu0
      %v540 = vadd.f32 0.0, %v539
      %v541 = vpop.f32.mrb[0].mxu0
      %542 = vmatprep.mubr.bf16.mxu0 0
      %543 = vmatmul.mubr.bf16.gmra.mrb[0].mxu0 %v367
      %v544 = vpop.f32.mrb[0].mxu0
      %v545 = vadd.f32 0.0, %v544
      %v546 = vpop.f32.mrb[0].mxu0
      %v547 = vpop.f32.mrb[0].mxu0
      %v548 = vadd.f32 0.0, %v547
      %v549 = vpop.f32.mrb[0].mxu0
      %550 = vmatprep.mubr.bf16.mxu0 0
      %551 = vmatmul.mubr.bf16.gmra.mrb[0].mxu0 %v368
      %v552 = vpop.f32.mrb[0].mxu0
      %v553 = vadd.f32 0.0, %v552
      %v554 = vpop.f32.mrb[0].mxu0
      %v555 = vpop.f32.mrb[0].mxu0
      %v556 = vadd.f32 0.0, %v555
      %v557 = vpop.f32.mrb[0].mxu0
      %558 = vmatprep.mubr.bf16.mxu0 0
      %559 = vmatmul.mubr.bf16.gmra.mrb[0].mxu0 %v369
      %v560 = vpop.f32.mrb[0].mxu0
      %v561 = vadd.f32 0.0, %v560
      %v562 = vpop.f32.mrb[0].mxu0
      %v563 = vpop.f32.mrb[0].mxu0
      %v564 = vadd.f32 0.0, %v563
      %v565 = vpop.f32.mrb[0].mxu0
      %566 = vmatprep.mubr.bf16.mxu0 0
      %567 = vmatmul.mubr.bf16.gmra.mrb[0].mxu0 %v370
      %v568 = vpop.f32.mrb[0].mxu0
      %v569 = vadd.f32 0.0, %v568
      %v570 = vpop.f32.mrb[0].mxu0
      %v571 = vpop.f32.mrb[0].mxu0
      %v572 = vadd.f32 0.0, %v571
      %v573 = vpop.f32.mrb[0].mxu0
      %574 = vmatprep.mubr.bf16.mxu0 0
      %575 = vmatmul.mubr.bf16.gmra.mrb[0].mxu0 %v371
      %v576 = vpop.f32.mrb[0].mxu0
      %v577 = vadd.f32 0.0, %v576
      %v578 = vpop.f32.mrb[0].mxu0
      %v579 = vpop.f32.mrb[0].mxu0
      %v580 = vadd.f32 0.0, %v579
      %v581 = vpop.f32.mrb[0].mxu0
      %582 = vmatprep.mubr.bf16.mxu0 0
      %583 = vmatmul.mubr.bf16.gmra.mrb[0].mxu0 %v372
      %v584 = vpop.f32.mrb[0].mxu0
      %v585 = vadd.f32 0.0, %v584
      %v586 = vpop.f32.mrb[0].mxu0
      %v587 = vpop.f32.mrb[0].mxu0
      %v588 = vadd.f32 0.0, %v587
      %v589 = vpop.f32.mrb[0].mxu0
      %590 = vmatprep.mubr.bf16.mxu0 0
      %591 = vmatmul.mubr.bf16.gmra.mrb[0].mxu0 %v373
      %v592 = vpop.f32.mrb[0].mxu0
      %v593 = vadd.f32 0.0, %v592
      %v594 = vpop.f32.mrb[0].mxu0
      %v595 = vpop.f32.mrb[0].mxu0
      %v596 = vadd.f32 0.0, %v595
      %v597 = vpop.f32.mrb[0].mxu0
      %598 = vdwg.mxu0
      %v599 = vld [vmem:[%s234] sm:$0xf]
      %v600 = vld [vmem:[%s234 + $0x4] sm:$0xf]
      %v601 = vld [vmem:[%s234 + $0x8] sm:$0xf]
      %v602 = vld [vmem:[%s234 + $0xc] sm:$0xf]
      %v603 = vld [vmem:[%s234 + $0x10] sm:$0xf]
      %v604 = vld [vmem:[%s234 + $0x14] sm:$0xf]
      %v605 = vld [vmem:[%s234 + $0x18] sm:$0xf]
      %v606 = vld [vmem:[%s234 + $0x1c] sm:$0xf]
      %v607 = vld [vmem:[%s234 + $0x20] sm:$0xf]
      %v608 = vld [vmem:[%s234 + $0x24] sm:$0xf]
      %v609 = vld [vmem:[%s234 + $0x28] sm:$0xf]
      %v610 = vld [vmem:[%s234 + $0x2c] sm:$0xf]
      %v611 = vld [vmem:[%s234 + $0x30] sm:$0xf]
      %v612 = vld [vmem:[%s234 + $0x34] sm:$0xf]
      %v613 = vld [vmem:[%s234 + $0x38] sm:$0xf]
      %v614 = vld [vmem:[%s234 + $0x3c] sm:$0xf]
      %v615 = vld [vmem:[%s234 + $0x40] sm:$0xf]
      %v616 = vld [vmem:[%s234 + $0x44] sm:$0xf]
      %v617 = vld [vmem:[%s234 + $0x48] sm:$0xf]
      %v618 = vld [vmem:[%s234 + $0x4c] sm:$0xf]
      %v619 = vld [vmem:[%s234 + $0x50] sm:$0xf]
      %v620 = vld [vmem:[%s234 + $0x54] sm:$0xf]
      %v621 = vld [vmem:[%s234 + $0x58] sm:$0xf]
      %v622 = vld [vmem:[%s234 + $0x5c] sm:$0xf]
      %v623 = vld [vmem:[%s234 + $0x60] sm:$0xf]
      %v624 = vld [vmem:[%s234 + $0x64] sm:$0xf]
      %v625 = vld [vmem:[%s234 + $0x68] sm:$0xf]
      %v626 = vld [vmem:[%s234 + $0x6c] sm:$0xf]
      %v627 = vld [vmem:[%s234 + $0x70] sm:$0xf]
      %v628 = vld [vmem:[%s234 + $0x74] sm:$0xf]
      %v629 = vld [vmem:[%s234 + $0x78] sm:$0xf]
      %v630 = vld [vmem:[%s234 + $0x7c] sm:$0xf]
      %v631 = vunpack.c.l.bf16 %v599
      %v632 = vunpack.c.l.bf16 %v600
      %v633 = vunpack.c.l.bf16 %v601
      %v634 = vunpack.c.l.bf16 %v602
      %v635 = vunpack.c.l.bf16 %v603
      %v636 = vunpack.c.l.bf16 %v604
      %v637 = vunpack.c.l.bf16 %v605
      %v638 = vunpack.c.l.bf16 %v606
      %v639 = vunpack.c.l.bf16 %v607
      %v640 = vunpack.c.l.bf16 %v608
      %v641 = vunpack.c.l.bf16 %v609
      %v642 = vunpack.c.l.bf16 %v610
      %v643 = vunpack.c.l.bf16 %v611
      %v644 = vunpack.c.l.bf16 %v612
      %v645 = vunpack.c.l.bf16 %v613
      %v646 = vunpack.c.l.bf16 %v614
      %v647 = vunpack.c.l.bf16 %v615
      %v648 = vunpack.c.l.bf16 %v616
      %v649 = vunpack.c.l.bf16 %v617
      %v650 = vunpack.c.l.bf16 %v618
      %v651 = vunpack.c.l.bf16 %v619
      %v652 = vunpack.c.l.bf16 %v620
      %v653 = vunpack.c.l.bf16 %v621
      %v654 = vunpack.c.l.bf16 %v622
      %v655 = vunpack.c.l.bf16 %v623
      %v656 = vunpack.c.l.bf16 %v624
      %v657 = vunpack.c.l.bf16 %v625
      %v658 = vunpack.c.l.bf16 %v626
      %v659 = vunpack.c.l.bf16 %v627
      %v660 = vunpack.c.l.bf16 %v628
      %v661 = vunpack.c.l.bf16 %v629
      %v662 = vunpack.c.l.bf16 %v630
      %v663 = vld [vmem:[%s3] sm:$0x1]
      %v665 = vlaneseq
      %v666 = vshrl.u32 %v665, 7
      %v667 = vsub.s32 0, %v666
      %v668 = vrot.slane %v663, %v667
      %v670 = vmul.f32 %v631, %v668
      %v671 = vmul.f32 %v632, %v668
      %v672 = vmul.f32 %v633, %v668
      %v673 = vmul.f32 %v634, %v668
      %v674 = vmul.f32 %v635, %v668
      %v675 = vmul.f32 %v636, %v668
      %v676 = vmul.f32 %v637, %v668
      %v677 = vmul.f32 %v638, %v668
      %v678 = vmul.f32 %v639, %v668
      %v679 = vmul.f32 %v640, %v668
      %v680 = vmul.f32 %v641, %v668
      %v681 = vmul.f32 %v642, %v668
      %v682 = vmul.f32 %v643, %v668
      %v683 = vmul.f32 %v644, %v668
      %v684 = vmul.f32 %v645, %v668
      %v685 = vmul.f32 %v646, %v668
      %v686 = vmul.f32 %v647, %v668
      %v687 = vmul.f32 %v648, %v668
      %v688 = vmul.f32 %v649, %v668
      %v689 = vmul.f32 %v650, %v668
      %v690 = vmul.f32 %v651, %v668
      %v691 = vmul.f32 %v652, %v668
      %v692 = vmul.f32 %v653, %v668
      %v693 = vmul.f32 %v654, %v668
      %v694 = vmul.f32 %v655, %v668
      %v695 = vmul.f32 %v656, %v668
      %v696 = vmul.f32 %v657, %v668
      %v697 = vmul.f32 %v658, %v668
      %v698 = vmul.f32 %v659, %v668
      %v699 = vmul.f32 %v660, %v668
      %v700 = vmul.f32 %v661, %v668
      %v701 = vmul.f32 %v662, %v668
      %v702 = vld [vmem:[%s4] sm:$0x1]
      %v704 = vlaneseq
      %v705 = vshrl.u32 %v704, 7
      %v706 = vsub.s32 0, %v705
      %v707 = vrot.slane %v702, %v706
      %v709 = vadd.f32 %v670, %v707
      %v710 = vadd.f32 %v671, %v707
      %v711 = vadd.f32 %v672, %v707
      %v712 = vadd.f32 %v673, %v707
      %v713 = vadd.f32 %v674, %v707
      %v714 = vadd.f32 %v675, %v707
      %v715 = vadd.f32 %v676, %v707
      %v716 = vadd.f32 %v677, %v707
      %v717 = vadd.f32 %v678, %v707
      %v718 = vadd.f32 %v679, %v707
      %v719 = vadd.f32 %v680, %v707
      %v720 = vadd.f32 %v681, %v707
      %v721 = vadd.f32 %v682, %v707
      %v722 = vadd.f32 %v683, %v707
      %v723 = vadd.f32 %v684, %v707
      %v724 = vadd.f32 %v685, %v707
      %v725 = vadd.f32 %v686, %v707
      %v726 = vadd.f32 %v687, %v707
      %v727 = vadd.f32 %v688, %v707
      %v728 = vadd.f32 %v689, %v707
      %v729 = vadd.f32 %v690, %v707
      %v730 = vadd.f32 %v691, %v707
      %v731 = vadd.f32 %v692, %v707
      %v732 = vadd.f32 %v693, %v707
      %v733 = vadd.f32 %v694, %v707
      %v734 = vadd.f32 %v695, %v707
      %v735 = vadd.f32 %v696, %v707
      %v736 = vadd.f32 %v697, %v707
      %v737 = vadd.f32 %v698, %v707
      %v738 = vadd.f32 %v699, %v707
      %v739 = vadd.f32 %v700, %v707
      %v740 = vadd.f32 %v701, %v707
      %v741 = vadd.f32 %v709, %v473
      %v742 = vadd.f32 %v710, %v476
      %v743 = vadd.f32 %v711, %v481
      %v744 = vadd.f32 %v712, %v484
      %v745 = vadd.f32 %v713, %v489
      %v746 = vadd.f32 %v714, %v492
      %v747 = vadd.f32 %v715, %v497
      %v748 = vadd.f32 %v716, %v500
      %v749 = vadd.f32 %v717, %v505
      %v750 = vadd.f32 %v718, %v508
      %v751 = vadd.f32 %v719, %v513
      %v752 = vadd.f32 %v720, %v516
      %v753 = vadd.f32 %v721, %v521
      %v754 = vadd.f32 %v722, %v524
      %v755 = vadd.f32 %v723, %v529
      %v756 = vadd.f32 %v724, %v532
      %v757 = vadd.f32 %v725, %v537
      %v758 = vadd.f32 %v726, %v540
      %v759 = vadd.f32 %v727, %v545
      %v760 = vadd.f32 %v728, %v548
      %v761 = vadd.f32 %v729, %v553
      %v762 = vadd.f32 %v730, %v556
      %v763 = vadd.f32 %v731, %v561
      %v764 = vadd.f32 %v732, %v564
      %v765 = vadd.f32 %v733, %v569
      %v766 = vadd.f32 %v734, %v572
      %v767 = vadd.f32 %v735, %v577
      %v768 = vadd.f32 %v736, %v580
      %v769 = vadd.f32 %v737, %v585
      %v770 = vadd.f32 %v738, %v588
      %v771 = vadd.f32 %v739, %v593
      %v772 = vadd.f32 %v740, %v596
      %v773 = vmax.f32 %v741, 0.0
      %v774 = vmax.f32 %v742, 0.0
      %v775 = vmax.f32 %v743, 0.0
      %v776 = vmax.f32 %v744, 0.0
      %v777 = vmax.f32 %v745, 0.0
      %v778 = vmax.f32 %v746, 0.0
      %v779 = vmax.f32 %v747, 0.0
      %v780 = vmax.f32 %v748, 0.0
      %v781 = vmax.f32 %v749, 0.0
      %v782 = vmax.f32 %v750, 0.0
      %v783 = vmax.f32 %v751, 0.0
      %v784 = vmax.f32 %v752, 0.0
      %v785 = vmax.f32 %v753, 0.0
      %v786 = vmax.f32 %v754, 0.0
      %v787 = vmax.f32 %v755, 0.0
      %v788 = vmax.f32 %v756, 0.0
      %v789 = vmax.f32 %v757, 0.0
      %v790 = vmax.f32 %v758, 0.0
      %v791 = vmax.f32 %v759, 0.0
      %v792 = vmax.f32 %v760, 0.0
      %v793 = vmax.f32 %v761, 0.0
      %v794 = vmax.f32 %v762, 0.0
      %v795 = vmax.f32 %v763, 0.0
      %v796 = vmax.f32 %v764, 0.0
      %v797 = vmax.f32 %v765, 0.0
      %v798 = vmax.f32 %v766, 0.0
      %v799 = vmax.f32 %v767, 0.0
      %v800 = vmax.f32 %v768, 0.0
      %v801 = vmax.f32 %v769, 0.0
      %v802 = vmax.f32 %v770, 0.0
      %v803 = vmax.f32 %v771, 0.0
      %v804 = vmax.f32 %v772, 0.0
      %805 = vst [vmem:[%s244] sm:$0xff] %v773
      %806 = vst [vmem:[%s244 + $0x8] sm:$0xff] %v774
      %807 = vst [vmem:[%s244 + $0x10] sm:$0xff] %v775
      %808 = vst [vmem:[%s244 + $0x18] sm:$0xff] %v776
      %809 = vst [vmem:[%s244 + $0x20] sm:$0xff] %v777
      %810 = vst [vmem:[%s244 + $0x28] sm:$0xff] %v778
      %811 = vst [vmem:[%s244 + $0x30] sm:$0xff] %v779
      %812 = vst [vmem:[%s244 + $0x38] sm:$0xff] %v780
      %813 = vst [vmem:[%s244 + $0x40] sm:$0xff] %v781
      %814 = vst [vmem:[%s244 + $0x48] sm:$0xff] %v782
      %815 = vst [vmem:[%s244 + $0x50] sm:$0xff] %v783
      %816 = vst [vmem:[%s244 + $0x58] sm:$0xff] %v784
      %817 = vst [vmem:[%s244 + $0x60] sm:$0xff] %v785
      %818 = vst [vmem:[%s244 + $0x68] sm:$0xff] %v786
      %819 = vst [vmem:[%s244 + $0x70] sm:$0xff] %v787
      %820 = vst [vmem:[%s244 + $0x78] sm:$0xff] %v788
      %821 = vst [vmem:[%s244 + $0x80] sm:$0xff] %v789
      %822 = vst [vmem:[%s244 + $0x88] sm:$0xff] %v790
      %823 = vst [vmem:[%s244 + $0x90] sm:$0xff] %v791
      %824 = vst [vmem:[%s244 + $0x98] sm:$0xff] %v792
      %825 = vst [vmem:[%s244 + $0xa0] sm:$0xff] %v793
      %826 = vst [vmem:[%s244 + $0xa8] sm:$0xff] %v794
      %827 = vst [vmem:[%s244 + $0xb0] sm:$0xff] %v795
      %828 = vst [vmem:[%s244 + $0xb8] sm:$0xff] %v796
      %829 = vst [vmem:[%s244 + $0xc0] sm:$0xff] %v797
      %830 = vst [vmem:[%s244 + $0xc8] sm:$0xff] %v798
      %831 = vst [vmem:[%s244 + $0xd0] sm:$0xff] %v799
      %832 = vst [vmem:[%s244 + $0xd8] sm:$0xff] %v800
      %833 = vst [vmem:[%s244 + $0xe0] sm:$0xff] %v801
      %834 = vst [vmem:[%s244 + $0xe8] sm:$0xff] %v802
      %835 = vst [vmem:[%s244 + $0xf0] sm:$0xff] %v803
      %836 = vst [vmem:[%s244 + $0xf8] sm:$0xff] %v804
      %p837 = scmp.lt.s32.totalorder %s16, 1
      %s838 = scalar_select %p837, %s16, 1
      %s839 = smul.addr %s838, 32
      %s840 = smul.addr %s839, 8
      %s841 = scalar_lea.vmem %s5, %s840
      // Predicated region
      $region41: #{residual_block_forward.5} parent=39 // pred_check
        %p842 = pneg %p149
      $region42: #{residual_block_forward.5} parent=39 // pred_check_branch
        %844 = sbr.rel (%p842) target = $region44
      $region43: #{residual_block_forward.5} parent=39 // pred_region
        _
      $region44: #{residual_block_forward.5} parent=39 // pred_fallthru
        _
    $region40: #{residual_block_forward.5} parent=5 // pred_fallthru
      _
    %p845 = scmp.le.s32.totalorder 2, %s11
    // Predicated region
    $region45: #{residual_block_forward.5} parent=5 // pred_check
      %p846 = pneg %p845
    $region46: #{residual_block_forward.5} parent=5 // pred_check_branch
      %848 = sbr.rel (%p846) target = $region48
    $region47: #{residual_block_forward.5} parent=5 // pred_region
      %s849 = ssub.s32 %s11, 2
      // Predicated region
      $region49: #{residual_block_forward.5} parent=47 // pred_check
        %p850 = pneg %p155
      $region50: #{residual_block_forward.5} parent=47 // pred_check_branch
        %852 = sbr.rel (%p850) target = $region52
      $region51: #{residual_block_forward.5} parent=47 // pred_region
        %p853 = scmp.lt.s32.totalorder %s17, 1
        %s854 = scalar_select %p853, %s17, 1
        %s855 = smul.addr %s854, 32
        %s856 = smul.addr %s855, 8
        %s857 = scalar_lea.vmem %s5, %s856
      $region52: #{residual_block_forward.5} parent=47 // pred_fallthru
        _
    $region48: #{residual_block_forward.5} parent=5 // pred_fallthru
      _
  $region6: #{residual_block_forward.5} parent=0 // loop_footer
    %s15 = sadd.s32 1, %s11
  $region7: #{residual_block_forward.5} parent=0 // loop_footer_branch
    %10 = sbr.rel target = $region3
  $region8: #{residual_block_forward.5} parent=0 // loop_exit
    _

// kernel: residual_block_forward.4
$region0: #{residual_block_forward.4}
  #allocation0 [shape = 'u32[]', space=smem, size = 0x4, offset = 0x4, fixed_abs, tag = 'smem constant byte address 0x4 - core index']
  #allocation1 [shape = 'u32[144,128]{1,0:T(1,128)}', space=vmem, size = 0x12000, scoped, tag = 'internal scratch']
  %s0 = inlined_call_operand.vmem [shape: bf16[2,18,18,128], index: 0, kind: input, shape index: {}]
  %s1 = inlined_call_operand.vmem [shape: bf16[3,384,128], index: 1, kind: input, shape index: {}]
  %s2 = inlined_call_operand.vmem [shape: f32[1,128], index: 2, kind: input, shape index: {}]
  %s3 = inlined_call_operand.vmem [shape: f32[1,128], index: 3, kind: input, shape index: {}]
  %s4 = inlined_call_operand.vmem [shape: f32[18,18,128], index: 4, kind: input, shape index: {}]
  %s5 = inlined_call_operand.vmem [shape: bf16[2,256,128], index: 5, kind: output, shape index: {0}]
  %s6 = inlined_call_operand.vmem [shape: f32[2,2,128], index: 6, kind: output, shape index: {1}]
  %7 = xla_tuple %s5, %s6
  %s8 = sld [smem:[#allocation0]]
  $region61: #{residual_block_forward.4} parent=0
    _
  %s10 = ssub.s32 1, %s8
  %s11 = scalar_select 0, %s10, %s8
  loop: start=0, step=1, limit=4
  $region2: #{residual_block_forward.4} parent=0 // loop_pre_header
    _
  $region3: #{residual_block_forward.4} parent=0 // loop_header
    %s13 = sphi 0, %s17
    %p14 = scmp.ge.s32.totalorder %s13, 4
    %s23 = sphi 0, %s25
    %s26 = sphi 0, %s23
    %s27 = sphi 0, %s26
    %s43 = sphi 0, %s27
    %s47 = sphi 0, %s47
    %s49 = sphi 0, %s47
    %s50 = sphi 0, %s49
    %s64 = sphi 0, %s50
    %s68 = sphi 0, %s68
    %s70 = sphi 0, %s68
    %s71 = sphi 0, %s70
    %s85 = sphi 0, %s71
    %s89 = sphi 0, %s89
    %s91 = sphi 0, %s89
    %s92 = sphi 0, %s91
    %s106 = sphi 0, %s92
    %s110 = sphi 0, %s110
    %s112 = sphi 0, %s110
    %s113 = sphi 0, %s112
    %s127 = sphi 0, %s113
    %s133 = sphi 0, %s135
    %s136 = sphi 0, %s133
    %s137 = sphi 0, %s136
    %s153 = sphi 0, %s137
    %s159 = sphi 0, %s161
    %s162 = sphi 0, %s159
    %s163 = sphi 0, %s162
    %s179 = sphi 0, %s163
  $region4: #{residual_block_forward.4} parent=0 // loop_header_branch
    %16 = sbr.rel (%p14) target = $region8
  $region5: #{residual_block_forward.4} parent=0 // loop_body
    %s18 = ssub.s32 %s13, 1
    %s19 = ssub.s32 %s13, 2
    %s20 = sadd.s32 %s13, 1
    %s21 = ssub.s32 %s13, %s20
    %p22 = scmp.eq.s32.totalorder %s21, 0
    %s24 = sadd.s32 %s23, 1
    %s25 = scalar_select %p22, %s23, %s24
    %p28 = pneg %p22
    %p29 = scmp.eq.s32.totalorder %s13, 1
    %p30 = por %p28, %p29
    %p31 = scmp.ne.s32.totalorder %s23, %s26
    %p32 = scmp.eq.s32.totalorder %s13, 0
    %p33 = por %p31, %p32
    %p34 = scmp.ne.s32.totalorder %s23, %s26
    %p35 = scmp.eq.s32.totalorder %s18, 1
    %p36 = por %p34, %p35
    %p37 = scmp.ne.s32.totalorder %s26, %s27
    %p38 = scmp.eq.s32.totalorder %s18, 0
    %p39 = por %p37, %p38
    %p40 = scmp.ne.s32.totalorder %s26, %s27
    %p41 = scmp.eq.s32.totalorder %s19, 1
    %p42 = por %p40, %p41
    %p44 = scmp.ne.s32.totalorder %s27, %s43
    %p45 = scmp.eq.s32.totalorder %s19, 0
    %p46 = por %p44, %p45
    %s48 = sadd.s32 %s47, 1
    %p51 = scmp.eq.s32.totalorder %s13, 1
    %p52 = scmp.ne.s32.totalorder %s47, %s49
    %p53 = scmp.eq.s32.totalorder %s13, 0
    %p54 = por %p52, %p53
    %p55 = scmp.ne.s32.totalorder %s47, %s49
    %p56 = scmp.eq.s32.totalorder %s18, 1
    %p57 = por %p55, %p56
    %p58 = scmp.ne.s32.totalorder %s49, %s50
    %p59 = scmp.eq.s32.totalorder %s18, 0
    %p60 = por %p58, %p59
    %p61 = scmp.ne.s32.totalorder %s49, %s50
    %p62 = scmp.eq.s32.totalorder %s19, 1
    %p63 = por %p61, %p62
    %p65 = scmp.ne.s32.totalorder %s50, %s64
    %p66 = scmp.eq.s32.totalorder %s19, 0
    %p67 = por %p65, %p66
    %s69 = sadd.s32 %s68, 1
    %p72 = scmp.eq.s32.totalorder %s13, 1
    %p73 = scmp.ne.s32.totalorder %s68, %s70
    %p74 = scmp.eq.s32.totalorder %s13, 0
    %p75 = por %p73, %p74
    %p76 = scmp.ne.s32.totalorder %s68, %s70
    %p77 = scmp.eq.s32.totalorder %s18, 1
    %p78 = por %p76, %p77
    %p79 = scmp.ne.s32.totalorder %s70, %s71
    %p80 = scmp.eq.s32.totalorder %s18, 0
    %p81 = por %p79, %p80
    %p82 = scmp.ne.s32.totalorder %s70, %s71
    %p83 = scmp.eq.s32.totalorder %s19, 1
    %p84 = por %p82, %p83
    %p86 = scmp.ne.s32.totalorder %s71, %s85
    %p87 = scmp.eq.s32.totalorder %s19, 0
    %p88 = por %p86, %p87
    %s90 = sadd.s32 %s89, 1
    %p93 = scmp.eq.s32.totalorder %s13, 1
    %p94 = scmp.ne.s32.totalorder %s89, %s91
    %p95 = scmp.eq.s32.totalorder %s13, 0
    %p96 = por %p94, %p95
    %p97 = scmp.ne.s32.totalorder %s89, %s91
    %p98 = scmp.eq.s32.totalorder %s18, 1
    %p99 = por %p97, %p98
    %p100 = scmp.ne.s32.totalorder %s91, %s92
    %p101 = scmp.eq.s32.totalorder %s18, 0
    %p102 = por %p100, %p101
    %p103 = scmp.ne.s32.totalorder %s91, %s92
    %p104 = scmp.eq.s32.totalorder %s19, 1
    %p105 = por %p103, %p104
    %p107 = scmp.ne.s32.totalorder %s92, %s106
    %p108 = scmp.eq.s32.totalorder %s19, 0
    %p109 = por %p107, %p108
    %s111 = sadd.s32 %s110, 1
    %p114 = scmp.eq.s32.totalorder %s13, 1
    %p115 = scmp.ne.s32.totalorder %s110, %s112
    %p116 = scmp.eq.s32.totalorder %s13, 0
    %p117 = por %p115, %p116
    %p118 = scmp.ne.s32.totalorder %s110, %s112
    %p119 = scmp.eq.s32.totalorder %s18, 1
    %p120 = por %p118, %p119
    %p121 = scmp.ne.s32.totalorder %s112, %s113
    %p122 = scmp.eq.s32.totalorder %s18, 0
    %p123 = por %p121, %p122
    %p124 = scmp.ne.s32.totalorder %s112, %s113
    %p125 = scmp.eq.s32.totalorder %s19, 1
    %p126 = por %p124, %p125
    %p128 = scmp.ne.s32.totalorder %s113, %s127
    %p129 = scmp.eq.s32.totalorder %s19, 0
    %p130 = por %p128, %p129
    %s131 = ssub.s32 %s13, %s20
    %p132 = scmp.eq.s32.totalorder %s131, 0
    %s134 = sadd.s32 %s133, 1
    %s135 = scalar_select %p132, %s133, %s134
    %p138 = pneg %p132
    %p139 = scmp.eq.s32.totalorder %s13, 1
    %p140 = por %p138, %p139
    %p141 = scmp.ne.s32.totalorder %s133, %s136
    %p142 = scmp.eq.s32.totalorder %s13, 0
    %p143 = por %p141, %p142
    %p144 = scmp.ne.s32.totalorder %s133, %s136
    %p145 = scmp.eq.s32.totalorder %s18, 1
    %p146 = por %p144, %p145
    %p147 = scmp.ne.s32.totalorder %s136, %s137
    %p148 = scmp.eq.s32.totalorder %s18, 0
    %p149 = por %p147, %p148
    %p150 = scmp.ne.s32.totalorder %s136, %s137
    %p151 = scmp.eq.s32.totalorder %s19, 1
    %p152 = por %p150, %p151
    %p154 = scmp.ne.s32.totalorder %s137, %s153
    %p155 = scmp.eq.s32.totalorder %s19, 0
    %p156 = por %p154, %p155
    %s157 = ssub.s32 %s13, %s20
    %p158 = scmp.eq.s32.totalorder %s157, 0
    %s160 = sadd.s32 %s159, 1
    %s161 = scalar_select %p158, %s159, %s160
    %p164 = pneg %p158
    %p165 = scmp.eq.s32.totalorder %s13, 1
    %p166 = por %p164, %p165
    %p167 = scmp.ne.s32.totalorder %s159, %s162
    %p168 = scmp.eq.s32.totalorder %s13, 0
    %p169 = por %p167, %p168
    %p170 = scmp.ne.s32.totalorder %s159, %s162
    %p171 = scmp.eq.s32.totalorder %s18, 1
    %p172 = por %p170, %p171
    %p173 = scmp.ne.s32.totalorder %s162, %s163
    %p174 = scmp.eq.s32.totalorder %s18, 0
    %p175 = por %p173, %p174
    %p176 = scmp.ne.s32.totalorder %s162, %s163
    %p177 = scmp.eq.s32.totalorder %s19, 1
    %p178 = por %p176, %p177
    %p180 = scmp.ne.s32.totalorder %s163, %s179
    %p181 = scmp.eq.s32.totalorder %s19, 0
    %p182 = por %p180, %p181
    %p183 = scmp.le.s32.totalorder 1, %s13
    %p184 = scmp.lt.s32.totalorder %s13, 3
    %p185 = pnand %p183, %p184
    %p186 = pneg %p185
    // Predicated region
    $region9: #{residual_block_forward.4} parent=5 // pred_check
      _
    $region10: #{residual_block_forward.4} parent=5 // pred_check_branch
      %188 = sbr.rel (%p185) target = $region12
    $region11: #{residual_block_forward.4} parent=5 // pred_region
      %s189 = ssub.s32 %s13, 1
      // Predicated region
      $region13: #{residual_block_forward.4} parent=11 // pred_check
        %p190 = pneg %p60
      $region14: #{residual_block_forward.4} parent=11 // pred_check_branch
        %192 = sbr.rel (%p190) target = $region16
      $region15: #{residual_block_forward.4} parent=11 // pred_region
        _
      $region16: #{residual_block_forward.4} parent=11 // pred_fallthru
        _
      // Predicated region
      $region17: #{residual_block_forward.4} parent=11 // pred_check
        %p193 = pneg %p81
      $region18: #{residual_block_forward.4} parent=11 // pred_check_branch
        %195 = sbr.rel (%p193) target = $region20
      $region19: #{residual_block_forward.4} parent=11 // pred_region
        _
      $region20: #{residual_block_forward.4} parent=11 // pred_fallthru
        _
      // Predicated region
      $region21: #{residual_block_forward.4} parent=11 // pred_check
        %p196 = pneg %p102
      $region22: #{residual_block_forward.4} parent=11 // pred_check_branch
        %198 = sbr.rel (%p196) target = $region24
      $region23: #{residual_block_forward.4} parent=11 // pred_region
        _
      $region24: #{residual_block_forward.4} parent=11 // pred_fallthru
        _
      // Predicated region
      $region25: #{residual_block_forward.4} parent=11 // pred_check
        %p199 = pneg %p123
      $region26: #{residual_block_forward.4} parent=11 // pred_check_branch
        %201 = sbr.rel (%p199) target = $region28
      $region27: #{residual_block_forward.4} parent=11 // pred_region
        _
      $region28: #{residual_block_forward.4} parent=11 // pred_fallthru
        _
    $region12: #{residual_block_forward.4} parent=5 // pred_fallthru
      _
    %p202 = scmp.lt.s32.totalorder %s13, 2
    // Predicated region
    $region29: #{residual_block_forward.4} parent=5 // pred_check
      %p203 = pneg %p202
    $region30: #{residual_block_forward.4} parent=5 // pred_check_branch
      %205 = sbr.rel (%p203) target = $region32
    $region31: #{residual_block_forward.4} parent=5 // pred_region
      // Predicated region
      $region33: #{residual_block_forward.4} parent=31 // pred_check
        %p206 = pneg %p33
      $region34: #{residual_block_forward.4} parent=31 // pred_check_branch
        %208 = sbr.rel (%p206) target = $region36
      $region35: #{residual_block_forward.4} parent=31 // pred_region
        %p209 = scmp.lt.s32.totalorder %s13, 1
        %s210 = scalar_select %p209, %s13, 1
        %s211 = smul.addr %s210, 54
        %s212 = smul.addr %s211, 4
        %s213 = scalar_lea.vmem %s0, %s212
      $region36: #{residual_block_forward.4} parent=31 // pred_fallthru
        _
    $region32: #{residual_block_forward.4} parent=5 // pred_fallthru
      _
    %p214 = scmp.le.s32.totalorder 1, %s13
    %p215 = scmp.lt.s32.totalorder %s13, 3
    %p216 = pnand %p214, %p215
    %p217 = pneg %p216
    // Predicated region
    $region37: #{residual_block_forward.4} parent=5 // pred_check
      _
    $region38: #{residual_block_forward.4} parent=5 // pred_check_branch
      %219 = sbr.rel (%p216) target = $region40
    $region39: #{residual_block_forward.4} parent=5 // pred_region
      %s220 = ssub.s32 %s13, 1
      %p221 = scmp.lt.s32.totalorder %s18, 1
      %s222 = scalar_select %p221, %s18, 1
      %s223 = smul.addr %s222, 54
      %s224 = smul.addr %s223, 4
      %s225 = scalar_lea.vmem %s0, %s224
      %p226 = pneg %p39
      %p227 = pneg %p36
      %p228 = pneg %p60
      %p229 = pneg %p57
      %p230 = pneg %p81
      %p231 = pneg %p78
      %p232 = pneg %p102
      %p233 = pneg %p99
      %p234 = pneg %p123
      %p235 = pneg %p120
      %p236 = pneg %p149
      %p237 = pneg %p146
      %p238 = scmp.lt.s32.totalorder %s18, 1
      %s239 = scalar_select %p238, %s18, 1
      %s240 = smul.addr %s239, 32
      %s241 = smul.addr %s240, 4
      %s242 = scalar_lea.vmem %s5, %s241
      %p243 = pneg %p175
      %p244 = pneg %p172
      %p245 = scmp.lt.s32.totalorder %s18, 1
      %s246 = scalar_select %p245, %s18, 1
      %s247 = smul.addr %s246, 2
      %s248 = scalar_lea.vmem %s6, %s247
      %p249 = scmp.lt.s32.totalorder %s18, 1
      %s250 = scalar_select %p249, %s18, 1
      %s251 = smul.addr %s250, 54
      %s252 = smul.addr %s251, 4
      %s253 = scalar_lea.vmem %s0, %s252
      %p254 = scmp.lt.s32.totalorder %s18, 1
      %s255 = scalar_select %p254, %s18, 1
      %s256 = smul.addr %s255, 32
      %s257 = smul.addr %s256, 4
      %s258 = scalar_lea.vmem %s5, %s257
      %p259 = scmp.lt.s32.totalorder %s18, 1
      %s260 = scalar_select %p259, %s18, 1
      %s261 = smul.addr %s260, 2
      %s262 = scalar_lea.vmem %s6, %s261
      %v264 = vld [vmem:[%s253] sm:$0xf]
      %v265 = vld [vmem:[%s253 + $0x4] sm:$0xf]
      %v266 = vld [vmem:[%s253 + $0x8] sm:$0x1]
      %v267 = vld [vmem:[%s253 + $0xc] sm:$0xf]
      %v268 = vld [vmem:[%s253 + $0x10] sm:$0xf]
      %v269 = vld [vmem:[%s253 + $0x14] sm:$0x1]
      %v270 = vld [vmem:[%s253 + $0x18] sm:$0xf]
      %v271 = vld [vmem:[%s253 + $0x1c] sm:$0xf]
      %v272 = vld [vmem:[%s253 + $0x20] sm:$0x1]
      %v273 = vld [vmem:[%s253 + $0x24] sm:$0xf]
      %v274 = vld [vmem:[%s253 + $0x28] sm:$0xf]
      %v275 = vld [vmem:[%s253 + $0x2c] sm:$0x1]
      %v276 = vld [vmem:[%s253 + $0x30] sm:$0xf]
      %v277 = vld [vmem:[%s253 + $0x34] sm:$0xf]
      %v278 = vld [vmem:[%s253 + $0x38] sm:$0x1]
      %v279 = vld [vmem:[%s253 + $0x3c] sm:$0xf]
      %v280 = vld [vmem:[%s253 + $0x40] sm:$0xf]
      %v281 = vld [vmem:[%s253 + $0x44] sm:$0x1]
      %v282 = vld [vmem:[%s253 + $0x48] sm:$0xf]
      %v283 = vld [vmem:[%s253 + $0x4c] sm:$0xf]
      %v284 = vld [vmem:[%s253 + $0x50] sm:$0x1]
      %v285 = vld [vmem:[%s253 + $0x54] sm:$0xf]
      %v286 = vld [vmem:[%s253 + $0x58] sm:$0xf]
      %v287 = vld [vmem:[%s253 + $0x5c] sm:$0x1]
      %v288 = vld [vmem:[%s253 + $0x60] sm:$0xf]
      %v289 = vld [vmem:[%s253 + $0x64] sm:$0xf]
      %v290 = vld [vmem:[%s253 + $0x68] sm:$0x1]
      %v291 = vld [vmem:[%s253 + $0x6c] sm:$0xf]
      %v292 = vld [vmem:[%s253 + $0x70] sm:$0xf]
      %v293 = vld [vmem:[%s253 + $0x74] sm:$0x1]
      %v294 = vld [vmem:[%s253 + $0x78] sm:$0xf]
      %v295 = vld [vmem:[%s253 + $0x7c] sm:$0xf]
      %v296 = vld [vmem:[%s253 + $0x80] sm:$0x1]
      %v297 = vld [vmem:[%s253 + $0x84] sm:$0xf]
      %v298 = vld [vmem:[%s253 + $0x88] sm:$0xf]
      %v299 = vld [vmem:[%s253 + $0x8c] sm:$0x1]
      %v300 = vld [vmem:[%s253 + $0x90] sm:$0xf]
      %v301 = vld [vmem:[%s253 + $0x94] sm:$0xf]
      %v302 = vld [vmem:[%s253 + $0x98] sm:$0x1]
      %v303 = vld [vmem:[%s253 + $0x9c] sm:$0xf]
      %v304 = vld [vmem:[%s253 + $0xa0] sm:$0xf]
      %v305 = vld [vmem:[%s253 + $0xa4] sm:$0x1]
      %v306 = vld [vmem:[%s253 + $0xa8] sm:$0xf]
      %v307 = vld [vmem:[%s253 + $0xac] sm:$0xf]
      %v308 = vld [vmem:[%s253 + $0xb0] sm:$0x1]
      %v309 = vld [vmem:[%s253 + $0xb4] sm:$0xf]
      %v310 = vld [vmem:[%s253 + $0xb8] sm:$0xf]
      %v311 = vld [vmem:[%s253 + $0xbc] sm:$0x1]
      %v312 = vld [vmem:[%s253 + $0xc0] sm:$0xf]
      %v313 = vld [vmem:[%s253 + $0xc4] sm:$0xf]
      %v314 = vld [vmem:[%s253 + $0xc8] sm:$0x1]
      %v315 = vld [vmem:[%s253 + $0xcc] sm:$0xf]
      %v316 = vld [vmem:[%s253 + $0xd0] sm:$0xf]
      %v317 = vld [vmem:[%s253 + $0xd4] sm:$0x1]
      %v318 = vunpack.c.l.bf16 %v264
      %v319 = vunpack.c.l.bf16 %v265
      %v320 = vunpack.c.l.bf16 %v266
      %v321 = vunpack.c.l.bf16 %v267
      %v322 = vunpack.c.l.bf16 %v268
      %v323 = vunpack.c.l.bf16 %v269
      %v324 = vunpack.c.l.bf16 %v270
      %v325 = vunpack.c.l.bf16 %v271
      %v326 = vunpack.c.l.bf16 %v272
      %v327 = vunpack.c.l.bf16 %v273
      %v328 = vunpack.c.l.bf16 %v274
      %v329 = vunpack.c.l.bf16 %v275
      %v330 = vunpack.c.l.bf16 %v276
      %v331 = vunpack.c.l.bf16 %v277
      %v332 = vunpack.c.l.bf16 %v278
      %v333 = vunpack.c.l.bf16 %v279
      %v334 = vunpack.c.l.bf16 %v280
      %v335 = vunpack.c.l.bf16 %v281
      %v336 = vunpack.c.l.bf16 %v282
      %v337 = vunpack.c.l.bf16 %v283
      %v338 = vunpack.c.l.bf16 %v284
      %v339 = vunpack.c.l.bf16 %v285
      %v340 = vunpack.c.l.bf16 %v286
      %v341 = vunpack.c.l.bf16 %v287
      %v342 = vunpack.c.l.bf16 %v288
      %v343 = vunpack.c.l.bf16 %v289
      %v344 = vunpack.c.l.bf16 %v290
      %v345 = vunpack.c.l.bf16 %v291
      %v346 = vunpack.c.l.bf16 %v292
      %v347 = vunpack.c.l.bf16 %v293
      %v348 = vunpack.c.l.bf16 %v294
      %v349 = vunpack.c.l.bf16 %v295
      %v350 = vunpack.c.l.bf16 %v296
      %v351 = vunpack.c.l.bf16 %v297
      %v352 = vunpack.c.l.bf16 %v298
      %v353 = vunpack.c.l.bf16 %v299
      %v354 = vunpack.c.l.bf16 %v300
      %v355 = vunpack.c.l.bf16 %v301
      %v356 = vunpack.c.l.bf16 %v302
      %v357 = vunpack.c.l.bf16 %v303
      %v358 = vunpack.c.l.bf16 %v304
      %v359 = vunpack.c.l.bf16 %v305
      %v360 = vunpack.c.l.bf16 %v306
      %v361 = vunpack.c.l.bf16 %v307
      %v362 = vunpack.c.l.bf16 %v308
      %v363 = vunpack.c.l.bf16 %v309
      %v364 = vunpack.c.l.bf16 %v310
      %v365 = vunpack.c.l.bf16 %v311
      %v366 = vunpack.c.l.bf16 %v312
      %v367 = vunpack.c.l.bf16 %v313
      %v368 = vunpack.c.l.bf16 %v314
      %v369 = vunpack.c.l.bf16 %v315
      %v370 = vunpack.c.l.bf16 %v316
      %v371 = vunpack.c.l.bf16 %v317
      %v372 = vld [vmem:[%s3] sm:$0x1]
      %v374 = vlaneseq
      %v375 = vshrl.u32 %v374, 7
      %v376 = vsub.s32 0, %v375
      %v377 = vrot.slane %v372, %v376
      %v379 = vmul.f32 %v318, %v377
      %v380 = vmul.f32 %v319, %v377
      %v381 = vmul.f32 %v320, %v377
      %v382 = vmul.f32 %v321, %v377
      %v383 = vmul.f32 %v322, %v377
      %v384 = vmul.f32 %v323, %v377
      %v385 = vmul.f32 %v324, %v377
      %v386 = vmul.f32 %v325, %v377
      %v387 = vmul.f32 %v326, %v377
      %v388 = vmul.f32 %v327, %v377
      %v389 = vmul.f32 %v328, %v377
      %v390 = vmul.f32 %v329, %v377
      %v391 = vmul.f32 %v330, %v377
      %v392 = vmul.f32 %v331, %v377
      %v393 = vmul.f32 %v332, %v377
      %v394 = vmul.f32 %v333, %v377
      %v395 = vmul.f32 %v334, %v377
      %v396 = vmul.f32 %v335, %v377
      %v397 = vmul.f32 %v336, %v377
      %v398 = vmul.f32 %v337, %v377
      %v399 = vmul.f32 %v338, %v377
      %v400 = vmul.f32 %v339, %v377
      %v401 = vmul.f32 %v340, %v377
      %v402 = vmul.f32 %v341, %v377
      %v403 = vmul.f32 %v342, %v377
      %v404 = vmul.f32 %v343, %v377
      %v405 = vmul.f32 %v344, %v377
      %v406 = vmul.f32 %v345, %v377
      %v407 = vmul.f32 %v346, %v377
      %v408 = vmul.f32 %v347, %v377
      %v409 = vmul.f32 %v348, %v377
      %v410 = vmul.f32 %v349, %v377
      %v411 = vmul.f32 %v350, %v377
      %v412 = vmul.f32 %v351, %v377
      %v413 = vmul.f32 %v352, %v377
      %v414 = vmul.f32 %v353, %v377
      %v415 = vmul.f32 %v354, %v377
      %v416 = vmul.f32 %v355, %v377
      %v417 = vmul.f32 %v356, %v377
      %v418 = vmul.f32 %v357, %v377
      %v419 = vmul.f32 %v358, %v377
      %v420 = vmul.f32 %v359, %v377
      %v421 = vmul.f32 %v360, %v377
      %v422 = vmul.f32 %v361, %v377
      %v423 = vmul.f32 %v362, %v377
      %v424 = vmul.f32 %v363, %v377
      %v425 = vmul.f32 %v364, %v377
      %v426 = vmul.f32 %v365, %v377
      %v427 = vmul.f32 %v366, %v377
      %v428 = vmul.f32 %v367, %v377
      %v429 = vmul.f32 %v368, %v377
      %v430 = vmul.f32 %v369, %v377
      %v431 = vmul.f32 %v370, %v377
      %v432 = vmul.f32 %v371, %v377
      %v433 = vld [vmem:[%s4] sm:$0xff]
      %v434 = vld [vmem:[%s4 + $0x8] sm:$0xff]
      %v435 = vld [vmem:[%s4 + $0x10] sm:$0x3]
      %v436 = vld [vmem:[%s4 + $0x18] sm:$0xff]
      %v437 = vld [vmem:[%s4 + $0x20] sm:$0xff]
      %v438 = vld [vmem:[%s4 + $0x28] sm:$0x3]
      %v439 = vld [vmem:[%s4 + $0x30] sm:$0xff]
      %v440 = vld [vmem:[%s4 + $0x38] sm:$0xff]
      %v441 = vld [vmem:[%s4 + $0x40] sm:$0x3]
      %v442 = vld [vmem:[%s4 + $0x48] sm:$0xff]
      %v443 = vld [vmem:[%s4 + $0x50] sm:$0xff]
      %v444 = vld [vmem:[%s4 + $0x58] sm:$0x3]
      %v445 = vld [vmem:[%s4 + $0x60] sm:$0xff]
      %v446 = vld [vmem:[%s4 + $0x68] sm:$0xff]
      %v447 = vld [vmem:[%s4 + $0x70] sm:$0x3]
      %v448 = vld [vmem:[%s4 + $0x78] sm:$0xff]
      %v449 = vld [vmem:[%s4 + $0x80] sm:$0xff]
      %v450 = vld [vmem:[%s4 + $0x88] sm:$0x3]
      %v451 = vld [vmem:[%s4 + $0x90] sm:$0xff]
      %v452 = vld [vmem:[%s4 + $0x98] sm:$0xff]
      %v453 = vld [vmem:[%s4 + $0xa0] sm:$0x3]
      %v454 = vld [vmem:[%s4 + $0xa8] sm:$0xff]
      %v455 = vld [vmem:[%s4 + $0xb0] sm:$0xff]
      %v456 = vld [vmem:[%s4 + $0xb8] sm:$0x3]
      %v457 = vld [vmem:[%s4 + $0xc0] sm:$0xff]
      %v458 = vld [vmem:[%s4 + $0xc8] sm:$0xff]
      %v459 = vld [vmem:[%s4 + $0xd0] sm:$0x3]
      %v460 = vld [vmem:[%s4 + $0xd8] sm:$0xff]
      %v461 = vld [vmem:[%s4 + $0xe0] sm:$0xff]
      %v462 = vld [vmem:[%s4 + $0xe8] sm:$0x3]
      %v463 = vld [vmem:[%s4 + $0xf0] sm:$0xff]
      %v464 = vld [vmem:[%s4 + $0xf8] sm:$0xff]
      %v465 = vld [vmem:[%s4 + $0x100] sm:$0x3]
      %v466 = vld [vmem:[%s4 + $0x108] sm:$0xff]
      %v467 = vld [vmem:[%s4 + $0x110] sm:$0xff]
      %v468 = vld [vmem:[%s4 + $0x118] sm:$0x3]
      %v469 = vld [vmem:[%s4 + $0x120] sm:$0xff]
      %v470 = vld [vmem:[%s4 + $0x128] sm:$0xff]
      %v471 = vld [vmem:[%s4 + $0x130] sm:$0x3]
      %v472 = vld [vmem:[%s4 + $0x138] sm:$0xff]
      %v473 = vld [vmem:[%s4 + $0x140] sm:$0xff]
      %v474 = vld [vmem:[%s4 + $0x148] sm:$0x3]
      %v475 = vld [vmem:[%s4 + $0x150] sm:$0xff]
      %v476 = vld [vmem:[%s4 + $0x158] sm:$0xff]
      %v477 = vld [vmem:[%s4 + $0x160] sm:$0x3]
      %v478 = vld [vmem:[%s4 + $0x168] sm:$0xff]
      %v479 = vld [vmem:[%s4 + $0x170] sm:$0xff]
      %v480 = vld [vmem:[%s4 + $0x178] sm:$0x3]
      %v481 = vld [vmem:[%s4 + $0x180] sm:$0xff]
      %v482 = vld [vmem:[%s4 + $0x188] sm:$0xff]
      %v483 = vld [vmem:[%s4 + $0x190] sm:$0x3]
      %v484 = vld [vmem:[%s4 + $0x198] sm:$0xff]
      %v485 = vld [vmem:[%s4 + $0x1a0] sm:$0xff]
      %v486 = vld [vmem:[%s4 + $0x1a8] sm:$0x3]
      %v487 = vadd.f32 %v379, %v433
      %v488 = vadd.f32 %v380, %v434
      %v489 = vadd.f32 %v381, %v435
      %v490 = vadd.f32 %v382, %v436
      %v491 = vadd.f32 %v383, %v437
      %v492 = vadd.f32 %v384, %v438
      %v493 = vadd.f32 %v385, %v439
      %v494 = vadd.f32 %v386, %v440
      %v495 = vadd.f32 %v387, %v441
      %v496 = vadd.f32 %v388, %v442
      %v497 = vadd.f32 %v389, %v443
      %v498 = vadd.f32 %v390, %v444
      %v499 = vadd.f32 %v391, %v445
      %v500 = vadd.f32 %v392, %v446
      %v501 = vadd.f32 %v393, %v447
      %v502 = vadd.f32 %v394, %v448
      %v503 = vadd.f32 %v395, %v449
      %v504 = vadd.f32 %v396, %v450
      %v505 = vadd.f32 %v397, %v451
      %v506 = vadd.f32 %v398, %v452
      %v507 = vadd.f32 %v399, %v453
      %v508 = vadd.f32 %v400, %v454
      %v509 = vadd.f32 %v401, %v455
      %v510 = vadd.f32 %v402, %v456
      %v511 = vadd.f32 %v403, %v457
      %v512 = vadd.f32 %v404, %v458
      %v513 = vadd.f32 %v405, %v459
      %v514 = vadd.f32 %v406, %v460
      %v515 = vadd.f32 %v407, %v461
      %v516 = vadd.f32 %v408, %v462
      %v517 = vadd.f32 %v409, %v463
      %v518 = vadd.f32 %v410, %v464
      %v519 = vadd.f32 %v411, %v465
      %v520 = vadd.f32 %v412, %v466
      %v521 = vadd.f32 %v413, %v467
      %v522 = vadd.f32 %v414, %v468
      %v523 = vadd.f32 %v415, %v469
      %v524 = vadd.f32 %v416, %v470
      %v525 = vadd.f32 %v417, %v471
      %v526 = vadd.f32 %v418, %v472
      %v527 = vadd.f32 %v419, %v473
      %v528 = vadd.f32 %v420, %v474
      %v529 = vadd.f32 %v421, %v475
      %v530 = vadd.f32 %v422, %v476
      %v531 = vadd.f32 %v423, %v477
      %v532 = vadd.f32 %v424, %v478
      %v533 = vadd.f32 %v425, %v479
      %v534 = vadd.f32 %v426, %v480
      %v535 = vadd.f32 %v427, %v481
      %v536 = vadd.f32 %v428, %v482
      %v537 = vadd.f32 %v429, %v483
      %v538 = vadd.f32 %v430, %v484
      %v539 = vadd.f32 %v431, %v485
      %v540 = vadd.f32 %v432, %v486
      %v541 = vmax.f32 %v487, 0.0
      %v542 = vmax.f32 %v488, 0.0
      %v543 = vmax.f32 %v489, 0.0
      %v544 = vmax.f32 %v490, 0.0
      %v545 = vmax.f32 %v491, 0.0
      %v546 = vmax.f32 %v492, 0.0
      %v547 = vmax.f32 %v493, 0.0
      %v548 = vmax.f32 %v494, 0.0
      %v549 = vmax.f32 %v495, 0.0
      %v550 = vmax.f32 %v496, 0.0
      %v551 = vmax.f32 %v497, 0.0
      %v552 = vmax.f32 %v498, 0.0
      %v553 = vmax.f32 %v499, 0.0
      %v554 = vmax.f32 %v500, 0.0
      %v555 = vmax.f32 %v501, 0.0
      %v556 = vmax.f32 %v502, 0.0
      %v557 = vmax.f32 %v503, 0.0
      %v558 = vmax.f32 %v504, 0.0
      %v559 = vmax.f32 %v505, 0.0
      %v560 = vmax.f32 %v506, 0.0
      %v561 = vmax.f32 %v507, 0.0
      %v562 = vmax.f32 %v508, 0.0
      %v563 = vmax.f32 %v509, 0.0
      %v564 = vmax.f32 %v510, 0.0
      %v565 = vmax.f32 %v511, 0.0
      %v566 = vmax.f32 %v512, 0.0
      %v567 = vmax.f32 %v513, 0.0
      %v568 = vmax.f32 %v514, 0.0
      %v569 = vmax.f32 %v515, 0.0
      %v570 = vmax.f32 %v516, 0.0
      %v571 = vmax.f32 %v517, 0.0
      %v572 = vmax.f32 %v518, 0.0
      %v573 = vmax.f32 %v519, 0.0
      %v574 = vmax.f32 %v520, 0.0
      %v575 = vmax.f32 %v521, 0.0
      %v576 = vmax.f32 %v522, 0.0
      %v577 = vmax.f32 %v523, 0.0
      %v578 = vmax.f32 %v524, 0.0
      %v579 = vmax.f32 %v525, 0.0
      %v580 = vmax.f32 %v526, 0.0
      %v581 = vmax.f32 %v527, 0.0
      %v582 = vmax.f32 %v528, 0.0
      %v583 = vmax.f32 %v529, 0.0
      %v584 = vmax.f32 %v530, 0.0
      %v585 = vmax.f32 %v531, 0.0
      %v586 = vmax.f32 %v532, 0.0
      %v587 = vmax.f32 %v533, 0.0
      %v588 = vmax.f32 %v534, 0.0
      %v589 = vmax.f32 %v535, 0.0
      %v590 = vmax.f32 %v536, 0.0
      %v591 = vmax.f32 %v537, 0.0
      %v592 = vmax.f32 %v538, 0.0
      %v593 = vmax.f32 %v539, 0.0
      %v594 = vmax.f32 %v540, 0.0
      %vm643 = vcmask 1046528
      %v644 = vrot.slane %v541, 1
      %v645 = vrot.slane %v542, 1
      %v646 = vsel %vm643, %v644, %v645
      %v647 = vrot.slane %v543, 1
      %v648 = vsel %vm643, %v645, %v647
      %v649 = vrot.slane %v544, 1
      %v650 = vrot.slane %v545, 1
      %v651 = vsel %vm643, %v649, %v650
      %v652 = vrot.slane %v546, 1
      %v653 = vsel %vm643, %v650, %v652
      %v654 = vrot.slane %v547, 1
      %v655 = vrot.slane %v548, 1
      %v656 = vsel %vm643, %v654, %v655
      %v657 = vrot.slane %v549, 1
      %v658 = vsel %vm643, %v655, %v657
      %v659 = vrot.slane %v550, 1
      %v660 = vrot.slane %v551, 1
      %v661 = vsel %vm643, %v659, %v660
      %v662 = vrot.slane %v552, 1
      %v663 = vsel %vm643, %v660, %v662
      %v664 = vrot.slane %v553, 1
      %v665 = vrot.slane %v554, 1
      %v666 = vsel %vm643, %v664, %v665
      %v667 = vrot.slane %v555, 1
      %v668 = vsel %vm643, %v665, %v667
      %v669 = vrot.slane %v556, 1
      %v670 = vrot.slane %v557, 1
      %v671 = vsel %vm643, %v669, %v670
      %v672 = vrot.slane %v558, 1
      %v673 = vsel %vm643, %v670, %v672
      %v674 = vrot.slane %v559, 1
      %v675 = vrot.slane %v560, 1
      %v676 = vsel %vm643, %v674, %v675
      %v677 = vrot.slane %v561, 1
      %v678 = vsel %vm643, %v675, %v677
      %v679 = vrot.slane %v562, 1
      %v680 = vrot.slane %v563, 1
      %v681 = vsel %vm643, %v679, %v680
      %v682 = vrot.slane %v564, 1
      %v683 = vsel %vm643, %v680, %v682
      %v684 = vrot.slane %v565, 1
      %v685 = vrot.slane %v566, 1
      %v686 = vsel %vm643, %v684, %v685
      %v687 = vrot.slane %v567, 1
      %v688 = vsel %vm643, %v685, %v687
      %v689 = vrot.slane %v568, 1
      %v690 = vrot.slane %v569, 1
      %v691 = vsel %vm643, %v689, %v690
      %v692 = vrot.slane %v570, 1
      %v693 = vsel %vm643, %v690, %v692
      %v694 = vrot.slane %v571, 1
      %v695 = vrot.slane %v572, 1
      %v696 = vsel %vm643, %v694, %v695
      %v697 = vrot.slane %v573, 1
      %v698 = vsel %vm643, %v695, %v697
      %v699 = vrot.slane %v574, 1
      %v700 = vrot.slane %v575, 1
      %v701 = vsel %vm643, %v699, %v700
      %v702 = vrot.slane %v576, 1
      %v703 = vsel %vm643, %v700, %v702
      %v704 = vrot.slane %v577, 1
      %v705 = vrot.slane %v578, 1
      %v706 = vsel %vm643, %v704, %v705
      %v707 = vrot.slane %v579, 1
      %v708 = vsel %vm643, %v705, %v707
      %v709 = vrot.slane %v580, 1
      %v710 = vrot.slane %v581, 1
      %v711 = vsel %vm643, %v709, %v710
      %v712 = vrot.slane %v582, 1
      %v713 = vsel %vm643, %v710, %v712
      %v714 = vrot.slane %v583, 1
      %v715 = vrot.slane %v584, 1
      %v716 = vsel %vm643, %v714, %v715
      %v717 = vrot.slane %v585, 1
      %v718 = vsel %vm643, %v715, %v717
      %v719 = vrot.slane %v586, 1
      %v720 = vrot.slane %v587, 1
      %v721 = vsel %vm643, %v719, %v720
      %v722 = vrot.slane %v588, 1
      %v723 = vsel %vm643, %v720, %v722
      %vm756 = vcmask 1045504
      %v757 = vrot.slane %v541, 2
      %v758 = vrot.slane %v542, 2
      %v759 = vsel %vm756, %v757, %v758
      %v760 = vrot.slane %v543, 2
      %v761 = vsel %vm756, %v758, %v760
      %v762 = vrot.slane %v544, 2
      %v763 = vrot.slane %v545, 2
      %v764 = vsel %vm756, %v762, %v763
      %v765 = vrot.slane %v546, 2
      %v766 = vsel %vm756, %v763, %v765
      %v767 = vrot.slane %v547, 2
      %v768 = vrot.slane %v548, 2
      %v769 = vsel %vm756, %v767, %v768
      %v770 = vrot.slane %v549, 2
      %v771 = vsel %vm756, %v768, %v770
      %v772 = vrot.slane %v550, 2
      %v773 = vrot.slane %v551, 2
      %v774 = vsel %vm756, %v772, %v773
      %v775 = vrot.slane %v552, 2
      %v776 = vsel %vm756, %v773, %v775
      %v777 = vrot.slane %v553, 2
      %v778 = vrot.slane %v554, 2
      %v779 = vsel %vm756, %v777, %v778
      %v780 = vrot.slane %v555, 2
      %v781 = vsel %vm756, %v778, %v780
      %v782 = vrot.slane %v556, 2
      %v783 = vrot.slane %v557, 2
      %v784 = vsel %vm756, %v782, %v783
      %v785 = vrot.slane %v558, 2
      %v786 = vsel %vm756, %v783, %v785
      %v787 = vrot.slane %v559, 2
      %v788 = vrot.slane %v560, 2
      %v789 = vsel %vm756, %v787, %v788
      %v790 = vrot.slane %v561, 2
      %v791 = vsel %vm756, %v788, %v790
      %v792 = vrot.slane %v562, 2
      %v793 = vrot.slane %v563, 2
      %v794 = vsel %vm756, %v792, %v793
      %v795 = vrot.slane %v564, 2
      %v796 = vsel %vm756, %v793, %v795
      %v797 = vrot.slane %v565, 2
      %v798 = vrot.slane %v566, 2
      %v799 = vsel %vm756, %v797, %v798
      %v800 = vrot.slane %v567, 2
      %v801 = vsel %vm756, %v798, %v800
      %v802 = vrot.slane %v568, 2
      %v803 = vrot.slane %v569, 2
      %v804 = vsel %vm756, %v802, %v803
      %v805 = vrot.slane %v570, 2
      %v806 = vsel %vm756, %v803, %v805
      %v807 = vrot.slane %v571, 2
      %v808 = vrot.slane %v572, 2
      %v809 = vsel %vm756, %v807, %v808
      %v810 = vrot.slane %v573, 2
      %v811 = vsel %vm756, %v808, %v810
      %v812 = vrot.slane %v574, 2
      %v813 = vrot.slane %v575, 2
      %v814 = vsel %vm756, %v812, %v813
      %v815 = vrot.slane %v576, 2
      %v816 = vsel %vm756, %v813, %v815
      %v817 = vrot.slane %v577, 2
      %v818 = vrot.slane %v578, 2
      %v819 = vsel %vm756, %v817, %v818
      %v820 = vrot.slane %v579, 2
      %v821 = vsel %vm756, %v818, %v820
      %v822 = vrot.slane %v580, 2
      %v823 = vrot.slane %v581, 2
      %v824 = vsel %vm756, %v822, %v823
      %v825 = vrot.slane %v582, 2
      %v826 = vsel %vm756, %v823, %v825
      %v827 = vrot.slane %v583, 2
      %v828 = vrot.slane %v584, 2
      %v829 = vsel %vm756, %v827, %v828
      %v830 = vrot.slane %v585, 2
      %v831 = vsel %vm756, %v828, %v830
      %v832 = vrot.slane %v586, 2
      %v833 = vrot.slane %v587, 2
      %v834 = vsel %vm756, %v832, %v833
      %v835 = vrot.slane %v588, 2
      %v836 = vsel %vm756, %v833, %v835
      %v869 = vpack.c.bf16 %v542, %v541
      %v870 = vpack.c.bf16 %v648, %v646
      %v871 = vpack.c.bf16 %v761, %v759
      %v872 = vpack.c.bf16 %v545, %v544
      %v873 = vpack.c.bf16 %v653, %v651
      %v874 = vpack.c.bf16 %v766, %v764
      %v875 = vpack.c.bf16 %v548, %v547
      %v876 = vpack.c.bf16 %v658, %v656
      %v877 = vpack.c.bf16 %v771, %v769
      %v878 = vpack.c.bf16 %v551, %v550
      %v879 = vpack.c.bf16 %v663, %v661
      %v880 = vpack.c.bf16 %v776, %v774
      %v881 = vpack.c.bf16 %v554, %v553
      %v882 = vpack.c.bf16 %v668, %v666
      %v883 = vpack.c.bf16 %v781, %v779
      %v884 = vpack.c.bf16 %v557, %v556
      %v885 = vpack.c.bf16 %v673, %v671
      %v886 = vpack.c.bf16 %v786, %v784
      %v887 = vpack.c.bf16 %v560, %v559
      %v888 = vpack.c.bf16 %v678, %v676
      %v889 = vpack.c.bf16 %v791, %v789
      %v890 = vpack.c.bf16 %v563, %v562
      %v891 = vpack.c.bf16 %v683, %v681
      %v892 = vpack.c.bf16 %v796, %v794
      %v893 = vpack.c.bf16 %v566, %v565
      %v894 = vpack.c.bf16 %v688, %v686
      %v895 = vpack.c.bf16 %v801, %v799
      %v896 = vpack.c.bf16 %v569, %v568
      %v897 = vpack.c.bf16 %v693, %v691
      %v898 = vpack.c.bf16 %v806, %v804
      %v899 = vpack.c.bf16 %v572, %v571
      %v900 = vpack.c.bf16 %v698, %v696
      %v901 = vpack.c.bf16 %v811, %v809
      %v902 = vpack.c.bf16 %v575, %v574
      %v903 = vpack.c.bf16 %v703, %v701
      %v904 = vpack.c.bf16 %v816, %v814
      %v905 = vpack.c.bf16 %v578, %v577
      %v906 = vpack.c.bf16 %v708, %v706
      %v907 = vpack.c.bf16 %v821, %v819
      %v908 = vpack.c.bf16 %v581, %v580
      %v909 = vpack.c.bf16 %v713, %v711
      %v910 = vpack.c.bf16 %v826, %v824
      %v911 = vpack.c.bf16 %v584, %v583
      %v912 = vpack.c.bf16 %v718, %v716
      %v913 = vpack.c.bf16 %v831, %v829
      %v914 = vpack.c.bf16 %v587, %v586
      %v915 = vpack.c.bf16 %v723, %v721
      %v916 = vpack.c.bf16 %v836, %v834
      %v917 = vld [vmem:[%s1] sm:$0xf]
      %v918 = vld [vmem:[%s1 + $0x4] sm:$0xf]
      %v919 = vld [vmem:[%s1 + $0x8] sm:$0xf]
      %v920 = vld [vmem:[%s1 + $0xc] sm:$0xf]
      %v921 = vld [vmem:[%s1 + $0x10] sm:$0xf]
      %v922 = vld [vmem:[%s1 + $0x14] sm:$0xf]
      %v923 = vld [vmem:[%s1 + $0x18] sm:$0xf]
      %v924 = vld [vmem:[%s1 + $0x1c] sm:$0xf]
      %v925 = vld [vmem:[%s1 + $0x20] sm:$0xf]
      %v926 = vld [vmem:[%s1 + $0x24] sm:$0xf]
      %v927 = vld [vmem:[%s1 + $0x28] sm:$0xf]
      %v928 = vld [vmem:[%s1 + $0x2c] sm:$0xf]
      %v929 = vld [vmem:[%s1 + $0x30] sm:$0xf]
      %v930 = vld [vmem:[%s1 + $0x34] sm:$0xf]
      %v931 = vld [vmem:[%s1 + $0x38] sm:$0xf]
      %v932 = vld [vmem:[%s1 + $0x3c] sm:$0xf]
      %v933 = vld [vmem:[%s1 + $0x40] sm:$0xf]
      %v934 = vld [vmem:[%s1 + $0x44] sm:$0xf]
      %v935 = vld [vmem:[%s1 + $0x48] sm:$0xf]
      %v936 = vld [vmem:[%s1 + $0x4c] sm:$0xf]
      %v937 = vld [vmem:[%s1 + $0x50] sm:$0xf]
      %v938 = vld [vmem:[%s1 + $0x54] sm:$0xf]
      %v939 = vld [vmem:[%s1 + $0x58] sm:$0xf]
      %v940 = vld [vmem:[%s1 + $0x5c] sm:$0xf]
      %v941 = vld [vmem:[%s1 + $0x60] sm:$0xf]
      %v942 = vld [vmem:[%s1 + $0x64] sm:$0xf]
      %v943 = vld [vmem:[%s1 + $0x68] sm:$0xf]
      %v944 = vld [vmem:[%s1 + $0x6c] sm:$0xf]
      %v945 = vld [vmem:[%s1 + $0x70] sm:$0xf]
      %v946 = vld [vmem:[%s1 + $0x74] sm:$0xf]
      %v947 = vld [vmem:[%s1 + $0x78] sm:$0xf]
      %v948 = vld [vmem:[%s1 + $0x7c] sm:$0xf]
      %v949 = vld [vmem:[%s1 + $0x80] sm:$0xf]
      %v950 = vld [vmem:[%s1 + $0x84] sm:$0xf]
      %v951 = vld [vmem:[%s1 + $0x88] sm:$0xf]
      %v952 = vld [vmem:[%s1 + $0x8c] sm:$0xf]
      %v953 = vld [vmem:[%s1 + $0x90] sm:$0xf]
      %v954 = vld [vmem:[%s1 + $0x94] sm:$0xf]
      %v955 = vld [vmem:[%s1 + $0x98] sm:$0xf]
      %v956 = vld [vmem:[%s1 + $0x9c] sm:$0xf]
      %v957 = vld [vmem:[%s1 + $0xa0] sm:$0xf]
      %v958 = vld [vmem:[%s1 + $0xa4] sm:$0xf]
      %v959 = vld [vmem:[%s1 + $0xa8] sm:$0xf]
      %v960 = vld [vmem:[%s1 + $0xac] sm:$0xf]
      %v961 = vld [vmem:[%s1 + $0xb0] sm:$0xf]
      %v962 = vld [vmem:[%s1 + $0xb4] sm:$0xf]
      %v963 = vld [vmem:[%s1 + $0xb8] sm:$0xf]
      %v964 = vld [vmem:[%s1 + $0xbc] sm:$0xf]
      %v968 = vrot.slane %v589, 1
      %v969 = vrot.slane %v590, 1
      %v970 = vsel %vm643, %v968, %v969
      %v971 = vrot.slane %v591, 1
      %v972 = vsel %vm643, %v969, %v971
      %v975 = vrot.slane %v589, 2
      %v976 = vrot.slane %v590, 2
      %v977 = vsel %vm756, %v975, %v976
      %v978 = vrot.slane %v591, 2
      %v979 = vsel %vm756, %v976, %v978
      %v982 = vpack.c.bf16 %v590, %v589
      %v983 = vpack.c.bf16 %v972, %v970
      %v984 = vpack.c.bf16 %v979, %v977
      %s985 = scalar_lea.vmem %s1, 192
      %v986 = vld [vmem:[%s985] sm:$0xf]
      %v987 = vld [vmem:[%s985 + $0x4] sm:$0xf]
      %v988 = vld [vmem:[%s985 + $0x8] sm:$0xf]
      %v989 = vld [vmem:[%s985 + $0xc] sm:$0xf]
      %v990 = vld [vmem:[%s985 + $0x10] sm:$0xf]
      %v991 = vld [vmem:[%s985 + $0x14] sm:$0xf]
      %v992 = vld [vmem:[%s985 + $0x18] sm:$0xf]
      %v993 = vld [vmem:[%s985 + $0x1c] sm:$0xf]
      %v994 = vld [vmem:[%s985 + $0x20] sm:$0xf]
      %v995 = vld [vmem:[%s985 + $0x24] sm:$0xf]
      %v996 = vld [vmem:[%s985 + $0x28] sm:$0xf]
      %v997 = vld [vmem:[%s985 + $0x2c] sm:$0xf]
      %v998 = vld [vmem:[%s985 + $0x30] sm:$0xf]
      %v999 = vld [vmem:[%s985 + $0x34] sm:$0xf]
      %v1000 = vld [vmem:[%s985 + $0x38] sm:$0xf]
      %v1001 = vld [vmem:[%s985 + $0x3c] sm:$0xf]
      %v1002 = vld [vmem:[%s985 + $0x40] sm:$0xf]
      %v1003 = vld [vmem:[%s985 + $0x44] sm:$0xf]
      %v1004 = vld [vmem:[%s985 + $0x48] sm:$0xf]
      %v1005 = vld [vmem:[%s985 + $0x4c] sm:$0xf]
      %v1006 = vld [vmem:[%s985 + $0x50] sm:$0xf]
      %v1007 = vld [vmem:[%s985 + $0x54] sm:$0xf]
      %v1008 = vld [vmem:[%s985 + $0x58] sm:$0xf]
      %v1009 = vld [vmem:[%s985 + $0x5c] sm:$0xf]
      %v1010 = vld [vmem:[%s985 + $0x60] sm:$0xf]
      %v1011 = vld [vmem:[%s985 + $0x64] sm:$0xf]
      %v1012 = vld [vmem:[%s985 + $0x68] sm:$0xf]
      %v1013 = vld [vmem:[%s985 + $0x6c] sm:$0xf]
      %v1014 = vld [vmem:[%s985 + $0x70] sm:$0xf]
      %v1015 = vld [vmem:[%s985 + $0x74] sm:$0xf]
      %v1016 = vld [vmem:[%s985 + $0x78] sm:$0xf]
      %v1017 = vld [vmem:[%s985 + $0x7c] sm:$0xf]
      %v1018 = vld [vmem:[%s985 + $0x80] sm:$0xf]
      %v1019 = vld [vmem:[%s985 + $0x84] sm:$0xf]
      %v1020 = vld [vmem:[%s985 + $0x88] sm:$0xf]
      %v1021 = vld [vmem:[%s985 + $0x8c] sm:$0xf]
      %v1022 = vld [vmem:[%s985 + $0x90] sm:$0xf]
      %v1023 = vld [vmem:[%s985 + $0x94] sm:$0xf]
      %v1024 = vld [vmem:[%s985 + $0x98] sm:$0xf]
      %v1025 = vld [vmem:[%s985 + $0x9c] sm:$0xf]
      %v1026 = vld [vmem:[%s985 + $0xa0] sm:$0xf]
      %v1027 = vld [vmem:[%s985 + $0xa4] sm:$0xf]
      %v1028 = vld [vmem:[%s985 + $0xa8] sm:$0xf]
      %v1029 = vld [vmem:[%s985 + $0xac] sm:$0xf]
      %v1030 = vld [vmem:[%s985 + $0xb0] sm:$0xf]
      %v1031 = vld [vmem:[%s985 + $0xb4] sm:$0xf]
      %v1032 = vld [vmem:[%s985 + $0xb8] sm:$0xf]
      %v1033 = vld [vmem:[%s985 + $0xbc] sm:$0xf]
      %v1082 = vunpack.c.l.b16 %v986
      %v1083 = vunpack.c.l.b16 %v987
      %v1084 = vunpack.c.l.b16 %v988
      %v1085 = vunpack.c.l.b16 %v989
      %v1086 = vunpack.c.l.b16 %v990
      %v1087 = vunpack.c.l.b16 %v991
      %v1088 = vunpack.c.l.b16 %v992
      %v1089 = vunpack.c.l.b16 %v993
      %v1090 = vunpack.c.l.b16 %v994
      %v1091 = vunpack.c.l.b16 %v995
      %v1092 = vunpack.c.l.b16 %v996
      %v1093 = vunpack.c.l.b16 %v997
      %v1094 = vunpack.c.l.b16 %v998
      %v1095 = vunpack.c.l.b16 %v999
      %v1096 = vunpack.c.l.b16 %v1000
      %v1097 = vunpack.c.l.b16 %v1001
      %v1098 = vunpack.c.l.b16 %v1002
      %v1099 = vunpack.c.l.b16 %v1003
      %v1100 = vunpack.c.l.b16 %v1004
      %v1101 = vunpack.c.l.b16 %v1005
      %v1102 = vunpack.c.l.b16 %v1006
      %v1103 = vunpack.c.l.b16 %v1007
      %v1104 = vunpack.c.l.b16 %v1008
      %v1105 = vunpack.c.l.b16 %v1009
      %v1106 = vunpack.c.l.b16 %v1010
      %v1107 = vunpack.c.l.b16 %v1011
      %v1108 = vunpack.c.l.b16 %v1012
      %v1109 = vunpack.c.l.b16 %v1013
      %v1110 = vunpack.c.l.b16 %v1014
      %v1111 = vunpack.c.l.b16 %v1015
      %v1112 = vunpack.c.l.b16 %v1016
      %v1113 = vunpack.c.l.b16 %v1017
      %v1114 = vunpack.c.l.b16 %v1018
      %v1115 = vunpack.c.l.b16 %v1019
      %v1116 = vunpack.c.l.b16 %v1020
      %v1117 = vunpack.c.l.b16 %v1021
      %v1118 = vunpack.c.l.b16 %v1022
      %v1119 = vunpack.c.l.b16 %v1023
      %v1120 = vunpack.c.l.b16 %v1024
      %v1121 = vunpack.c.l.b16 %v1025
      %v1122 = vunpack.c.l.b16 %v1026
      %v1123 = vunpack.c.l.b16 %v1027
      %v1124 = vunpack.c.l.b16 %v1028
      %v1125 = vunpack.c.l.b16 %v1029
      %v1126 = vunpack.c.l.b16 %v1030
      %v1127 = vunpack.c.l.b16 %v1031
      %v1128 = vunpack.c.l.b16 %v1032
      %v1129 = vunpack.c.l.b16 %v1033
      %v1130 = vpack.c.b16 %v1083, %v1082
      %v1131 = vpack.c.b16 %v1085, %v1084
      %v1132 = vpack.c.b16 %v1087, %v1086
      %v1133 = vpack.c.b16 %v1089, %v1088
      %v1134 = vpack.c.b16 %v1091, %v1090
      %v1135 = vpack.c.b16 %v1093, %v1092
      %v1136 = vpack.c.b16 %v1095, %v1094
      %v1137 = vpack.c.b16 %v1097, %v1096
      %v1138 = vpack.c.b16 %v1099, %v1098
      %v1139 = vpack.c.b16 %v1101, %v1100
      %v1140 = vpack.c.b16 %v1103, %v1102
      %v1141 = vpack.c.b16 %v1105, %v1104
      %v1142 = vpack.c.b16 %v1107, %v1106
      %v1143 = vpack.c.b16 %v1109, %v1108
      %v1144 = vpack.c.b16 %v1111, %v1110
      %v1145 = vpack.c.b16 %v1113, %v1112
      %v1146 = vpack.c.b16 %v1115, %v1114
      %v1147 = vpack.c.b16 %v1117, %v1116
      %v1148 = vpack.c.b16 %v1119, %v1118
      %v1149 = vpack.c.b16 %v1121, %v1120
      %v1150 = vpack.c.b16 %v1123, %v1122
      %v1151 = vpack.c.b16 %v1125, %v1124
      %v1152 = vpack.c.b16 %v1127, %v1126
      %v1153 = vpack.c.b16 %v1129, %v1128
      %1178 = vmatprep.subr.bf16.mxu0 0
      %1179 = vmatpush1.bf16.msra.mxu0 %v1130
      %1180 = vmatprep.subr.bf16.mxu0 0
      %1181 = vmatpush1.bf16.msra.mxu0 %v1131
      %1182 = vmatprep.subr.bf16.mxu0 0
      %1183 = vmatpush1.bf16.msra.mxu0 %v1132
      %1184 = vmatprep.subr.bf16.mxu0 0
      %1185 = vmatpush1.bf16.msra.mxu0 %v1133
      %1186 = vmatprep.subr.bf16.mxu0 0
      %1187 = vmatpush1.bf16.msra.mxu0 %v1134
      %1188 = vmatprep.subr.bf16.mxu0 0
      %1189 = vmatpush1.bf16.msra.mxu0 %v1135
      %1190 = vmatprep.subr.bf16.mxu0 0
      %1191 = vmatpush1.bf16.msra.mxu0 %v1136
      %1192 = vmatprep.subr.bf16.mxu0 0
      %1193 = vmatpush1.bf16.msra.mxu0 %v1137
      %1194 = vmatprep.subr.bf16.mxu0 0
      %1195 = vmatpush1.bf16.msra.mxu0 %v1138
      %1196 = vmatprep.subr.bf16.mxu0 0
      %1197 = vmatpush1.bf16.msra.mxu0 %v1139
      %1198 = vmatprep.subr.bf16.mxu0 0
      %1199 = vmatpush1.bf16.msra.mxu0 %v1140
      %1200 = vmatprep.subr.bf16.mxu0 0
      %1201 = vmatpush1.bf16.msra.mxu0 %v1141
      %1202 = vmatprep.subr.bf16.mxu0 0
      %1203 = vmatpush1.bf16.msra.mxu0 %v1142
      %1204 = vmatprep.subr.bf16.mxu0 0
      %1205 = vmatpush1.bf16.msra.mxu0 %v1143
      %1206 = vmatprep.subr.bf16.mxu0 0
      %1207 = vmatpush1.bf16.msra.mxu0 %v1144
      %1208 = vmatprep.subr.bf16.mxu0 0
      %1209 = vmatpush1.bf16.msra.mxu0 %v1145
      %1210 = vmatprep.mubr.bf16.mxu0 %v873
      %1211 = vmatmul.mubr.bf16.gmra.mrb[0].mxu0 %v872
      %v1212 = vpop.f32.mrb[0].mxu0
      %v1213 = vadd.f32 0.0, %v1212
      %v1214 = vpop.f32.mrb[0].mxu0
      %v1215 = vpop.f32.mrb[0].mxu0
      %v1216 = vadd.f32 0.0, %v1215
      %v1217 = vpop.f32.mrb[0].mxu0
      %1218 = vmatprep.mubr.bf16.mxu0 %v876
      %1219 = vmatmul.mubr.bf16.gmra.mrb[0].mxu0 %v875
      %v1220 = vpop.f32.mrb[0].mxu0
      %v1221 = vadd.f32 0.0, %v1220
      %v1222 = vpop.f32.mrb[0].mxu0
      %v1223 = vpop.f32.mrb[0].mxu0
      %v1224 = vadd.f32 0.0, %v1223
      %v1225 = vpop.f32.mrb[0].mxu0
      %1226 = vmatprep.mubr.bf16.mxu0 %v879
      %1227 = vmatmul.mubr.bf16.gmra.mrb[0].mxu0 %v878
      %v1228 = vpop.f32.mrb[0].mxu0
      %v1229 = vadd.f32 0.0, %v1228
      %v1230 = vpop.f32.mrb[0].mxu0
      %v1231 = vpop.f32.mrb[0].mxu0
      %v1232 = vadd.f32 0.0, %v1231
      %v1233 = vpop.f32.mrb[0].mxu0
      %1234 = vmatprep.mubr.bf16.mxu0 %v882
      %1235 = vmatmul.mubr.bf16.gmra.mrb[0].mxu0 %v881
      %v1236 = vpop.f32.mrb[0].mxu0
      %v1237 = vadd.f32 0.0, %v1236
      %v1238 = vpop.f32.mrb[0].mxu0
      %v1239 = vpop.f32.mrb[0].mxu0
      %v1240 = vadd.f32 0.0, %v1239
      %v1241 = vpop.f32.mrb[0].mxu0
      %1242 = vmatprep.mubr.bf16.mxu0 %v885
      %1243 = vmatmul.mubr.bf16.gmra.mrb[0].mxu0 %v884
      %v1244 = vpop.f32.mrb[0].mxu0
      %v1245 = vadd.f32 0.0, %v1244
      %v1246 = vpop.f32.mrb[0].mxu0
      %v1247 = vpop.f32.mrb[0].mxu0
      %v1248 = vadd.f32 0.0, %v1247
      %v1249 = vpop.f32.mrb[0].mxu0
      %1250 = vmatprep.mubr.bf16.mxu0 %v888
      %1251 = vmatmul.mubr.bf16.gmra.mrb[0].mxu0 %v887
      %v1252 = vpop.f32.mrb[0].mxu0
      %v1253 = vadd.f32 0.0, %v1252
      %v1254 = vpop.f32.mrb[0].mxu0
      %v1255 = vpop.f32.mrb[0].mxu0
      %v1256 = vadd.f32 0.0, %v1255
      %v1257 = vpop.f32.mrb[0].mxu0
      %1258 = vmatprep.mubr.bf16.mxu0 %v891
      %1259 = vmatmul.mubr.bf16.gmra.mrb[0].mxu0 %v890
      %v1260 = vpop.f32.mrb[0].mxu0
      %v1261 = vadd.f32 0.0, %v1260
      %v1262 = vpop.f32.mrb[0].mxu0
      %v1263 = vpop.f32.mrb[0].mxu0
      %v1264 = vadd.f32 0.0, %v1263
      %v1265 = vpop.f32.mrb[0].mxu0
      %1266 = vmatprep.mubr.bf16.mxu0 %v894
      %1267 = vmatmul.mubr.bf16.gmra.mrb[0].mxu0 %v893
      %v1268 = vpop.f32.mrb[0].mxu0
      %v1269 = vadd.f32 0.0, %v1268
      %v1270 = vpop.f32.mrb[0].mxu0
      %v1271 = vpop.f32.mrb[0].mxu0
      %v1272 = vadd.f32 0.0, %v1271
      %v1273 = vpop.f32.mrb[0].mxu0
      %1274 = vmatprep.mubr.bf16.mxu0 %v897
      %1275 = vmatmul.mubr.bf16.gmra.mrb[0].mxu0 %v896
      %v1276 = vpop.f32.mrb[0].mxu0
      %v1277 = vadd.f32 0.0, %v1276
      %v1278 = vpop.f32.mrb[0].mxu0
      %v1279 = vpop.f32.mrb[0].mxu0
      %v1280 = vadd.f32 0.0, %v1279
      %v1281 = vpop.f32.mrb[0].mxu0
      %1282 = vmatprep.mubr.bf16.mxu0 %v900
      %1283 = vmatmul.mubr.bf16.gmra.mrb[0].mxu0 %v899
      %v1284 = vpop.f32.mrb[0].mxu0
      %v1285 = vadd.f32 0.0, %v1284
      %v1286 = vpop.f32.mrb[0].mxu0
      %v1287 = vpop.f32.mrb[0].mxu0
      %v1288 = vadd.f32 0.0, %v1287
      %v1289 = vpop.f32.mrb[0].mxu0
      %1290 = vmatprep.mubr.bf16.mxu0 %v903
      %1291 = vmatmul.mubr.bf16.gmra.mrb[0].mxu0 %v902
      %v1292 = vpop.f32.mrb[0].mxu0
      %v1293 = vadd.f32 0.0, %v1292
      %v1294 = vpop.f32.mrb[0].mxu0
      %v1295 = vpop.f32.mrb[0].mxu0
      %v1296 = vadd.f32 0.0, %v1295
      %v1297 = vpop.f32.mrb[0].mxu0
      %1298 = vmatprep.mubr.bf16.mxu0 %v906
      %1299 = vmatmul.mubr.bf16.gmra.mrb[0].mxu0 %v905
      %v1300 = vpop.f32.mrb[0].mxu0
      %v1301 = vadd.f32 0.0, %v1300
      %v1302 = vpop.f32.mrb[0].mxu0
      %v1303 = vpop.f32.mrb[0].mxu0
      %v1304 = vadd.f32 0.0, %v1303
      %v1305 = vpop.f32.mrb[0].mxu0
      %1306 = vmatprep.mubr.bf16.mxu0 %v909
      %1307 = vmatmul.mubr.bf16.gmra.mrb[0].mxu0 %v908
      %v1308 = vpop.f32.mrb[0].mxu0
      %v1309 = vadd.f32 0.0, %v1308
      %v1310 = vpop.f32.mrb[0].mxu0
      %v1311 = vpop.f32.mrb[0].mxu0
      %v1312 = vadd.f32 0.0, %v1311
      %v1313 = vpop.f32.mrb[0].mxu0
      %1314 = vmatprep.mubr.bf16.mxu0 %v912
      %1315 = vmatmul.mubr.bf16.gmra.mrb[0].mxu0 %v911
      %v1316 = vpop.f32.mrb[0].mxu0
      %v1317 = vadd.f32 0.0, %v1316
      %v1318 = vpop.f32.mrb[0].mxu0
      %v1319 = vpop.f32.mrb[0].mxu0
      %v1320 = vadd.f32 0.0, %v1319
      %v1321 = vpop.f32.mrb[0].mxu0
      %1322 = vmatprep.mubr.bf16.mxu0 %v915
      %1323 = vmatmul.mubr.bf16.gmra.mrb[0].mxu0 %v914
      %v1324 = vpop.f32.mrb[0].mxu0
      %v1325 = vadd.f32 0.0, %v1324
      %v1326 = vpop.f32.mrb[0].mxu0
      %v1327 = vpop.f32.mrb[0].mxu0
      %v1328 = vadd.f32 0.0, %v1327
      %v1329 = vpop.f32.mrb[0].mxu0
      %1330 = vmatprep.mubr.bf16.mxu0 %v983
      %1331 = vmatmul.mubr.bf16.gmra.mrb[0].mxu0 %v982
      %v1332 = vpop.f32.mrb[0].mxu0
      %v1333 = vadd.f32 0.0, %v1332
      %v1334 = vpop.f32.mrb[0].mxu0
      %v1335 = vpop.f32.mrb[0].mxu0
      %v1336 = vadd.f32 0.0, %v1335
      %v1337 = vpop.f32.mrb[0].mxu0
      %1338 = vdwg.mxu0
      %1339 = vmatprep.subr.bf16.mxu0 0
      %1340 = vmatpush1.bf16.msra.mxu0 %v1146
      %1341 = vmatprep.subr.bf16.mxu0 0
      %1342 = vmatpush1.bf16.msra.mxu0 %v1147
      %1343 = vmatprep.subr.bf16.mxu0 0
      %1344 = vmatpush1.bf16.msra.mxu0 %v1148
      %1345 = vmatprep.subr.bf16.mxu0 0
      %1346 = vmatpush1.bf16.msra.mxu0 %v1149
      %1347 = vmatprep.subr.bf16.mxu0 0
      %1348 = vmatpush1.bf16.msra.mxu0 %v1150
      %1349 = vmatprep.subr.bf16.mxu0 0
      %1350 = vmatpush1.bf16.msra.mxu0 %v1151
      %1351 = vmatprep.subr.bf16.mxu0 0
      %1352 = vmatpush1.bf16.msra.mxu0 %v1152
      %1353 = vmatprep.subr.bf16.mxu0 0
      %1354 = vmatpush1.bf16.msra.mxu0 %v1153
      %1355 = vmatprep.subr.bf16.mxu0 0
      %1356 = vmatpush1.bf16.msra.mxu0 0
      %1357 = vmatprep.subr.bf16.mxu0 0
      %1358 = vmatpush1.bf16.msra.mxu0 0
      %1359 = vmatprep.subr.bf16.mxu0 0
      %1360 = vmatpush1.bf16.msra.mxu0 0
      %1361 = vmatprep.subr.bf16.mxu0 0
      %1362 = vmatpush1.bf16.msra.mxu0 0
      %1363 = vmatprep.subr.bf16.mxu0 0
      %1364 = vmatpush1.bf16.msra.mxu0 0
      %1365 = vmatprep.subr.bf16.mxu0 0
      %1366 = vmatpush1.bf16.msra.mxu0 0
      %1367 = vmatprep.subr.bf16.mxu0 0
      %1368 = vmatpush1.bf16.msra.mxu0 0
      %1369 = vmatprep.subr.bf16.mxu0 0
      %1370 = vmatpush1.bf16.msra.mxu0 0
      %1371 = vmatprep.mubr.bf16.mxu0 0
      %1372 = vmatmul.mubr.bf16.gmra.mrb[0].mxu0 %v874
      %v1373 = vpop.f32.mrb[0].mxu0
      %v1374 = vadd.f32 %v1213, %v1373
      %v1375 = vpop.f32.mrb[0].mxu0
      %v1376 = vpop.f32.mrb[0].mxu0
      %v1377 = vadd.f32 %v1216, %v1376
      %v1378 = vpop.f32.mrb[0].mxu0
      %1379 = vmatprep.mubr.bf16.mxu0 0
      %1380 = vmatmul.mubr.bf16.gmra.mrb[0].mxu0 %v877
      %v1381 = vpop.f32.mrb[0].mxu0
      %v1382 = vadd.f32 %v1221, %v1381
      %v1383 = vpop.f32.mrb[0].mxu0
      %v1384 = vpop.f32.mrb[0].mxu0
      %v1385 = vadd.f32 %v1224, %v1384
      %v1386 = vpop.f32.mrb[0].mxu0
      %1387 = vmatprep.mubr.bf16.mxu0 0
      %1388 = vmatmul.mubr.bf16.gmra.mrb[0].mxu0 %v880
      %v1389 = vpop.f32.mrb[0].mxu0
      %v1390 = vadd.f32 %v1229, %v1389
      %v1391 = vpop.f32.mrb[0].mxu0
      %v1392 = vpop.f32.mrb[0].mxu0
      %v1393 = vadd.f32 %v1232, %v1392
      %v1394 = vpop.f32.mrb[0].mxu0
      %1395 = vmatprep.mubr.bf16.mxu0 0
      %1396 = vmatmul.mubr.bf16.gmra.mrb[0].mxu0 %v883
      %v1397 = vpop.f32.mrb[0].mxu0
      %v1398 = vadd.f32 %v1237, %v1397
      %v1399 = vpop.f32.mrb[0].mxu0
      %v1400 = vpop.f32.mrb[0].mxu0
      %v1401 = vadd.f32 %v1240, %v1400
      %v1402 = vpop.f32.mrb[0].mxu0
      %1403 = vmatprep.mubr.bf16.mxu0 0
      %1404 = vmatmul.mubr.bf16.gmra.mrb[0].mxu0 %v886
      %v1405 = vpop.f32.mrb[0].mxu0
      %v1406 = vadd.f32 %v1245, %v1405
      %v1407 = vpop.f32.mrb[0].mxu0
      %v1408 = vpop.f32.mrb[0].mxu0
      %v1409 = vadd.f32 %v1248, %v1408
      %v1410 = vpop.f32.mrb[0].mxu0
      %1411 = vmatprep.mubr.bf16.mxu0 0
      %1412 = vmatmul.mubr.bf16.gmra.mrb[0].mxu0 %v889
      %v1413 = vpop.f32.mrb[0].mxu0
      %v1414 = vadd.f32 %v1253, %v1413
      %v1415 = vpop.f32.mrb[0].mxu0
      %v1416 = vpop.f32.mrb[0].mxu0
      %v1417 = vadd.f32 %v1256, %v1416
      %v1418 = vpop.f32.mrb[0].mxu0
      %1419 = vmatprep.mubr.bf16.mxu0 0
      %1420 = vmatmul.mubr.bf16.gmra.mrb[0].mxu0 %v892
      %v1421 = vpop.f32.mrb[0].mxu0
      %v1422 = vadd.f32 %v1261, %v1421
      %v1423 = vpop.f32.mrb[0].mxu0
      %v1424 = vpop.f32.mrb[0].mxu0
      %v1425 = vadd.f32 %v1264, %v1424
      %v1426 = vpop.f32.mrb[0].mxu0
      %1427 = vmatprep.mubr.bf16.mxu0 0
      %1428 = vmatmul.mubr.bf16.gmra.mrb[0].mxu0 %v895
      %v1429 = vpop.f32.mrb[0].mxu0
      %v1430 = vadd.f32 %v1269, %v1429
      %v1431 = vpop.f32.mrb[0].mxu0
      %v1432 = vpop.f32.mrb[0].mxu0
      %v1433 = vadd.f32 %v1272, %v1432
      %v1434 = vpop.f32.mrb[0].mxu0
      %1435 = vmatprep.mubr.bf16.mxu0 0
      %1436 = vmatmul.mubr.bf16.gmra.mrb[0].mxu0 %v898
      %v1437 = vpop.f32.mrb[0].mxu0
      %v1438 = vadd.f32 %v1277, %v1437
      %v1439 = vpop.f32.mrb[0].mxu0
      %v1440 = vpop.f32.mrb[0].mxu0
      %v1441 = vadd.f32 %v1280, %v1440
      %v1442 = vpop.f32.mrb[0].mxu0
      %1443 = vmatprep.mubr.bf16.mxu0 0
      %1444 = vmatmul.mubr.bf16.gmra.mrb[0].mxu0 %v901
      %v1445 = vpop.f32.mrb[0].mxu0
      %v1446 = vadd.f32 %v1285, %v1445
      %v1447 = vpop.f32.mrb[0].mxu0
      %v1448 = vpop.f32.mrb[0].mxu0
      %v1449 = vadd.f32 %v1288, %v1448
      %v1450 = vpop.f32.mrb[0].mxu0
      %1451 = vmatprep.mubr.bf16.mxu0 0
      %1452 = vmatmul.mubr.bf16.gmra.mrb[0].mxu0 %v904
      %v1453 = vpop.f32.mrb[0].mxu0
      %v1454 = vadd.f32 %v1293, %v1453
      %v1455 = vpop.f32.mrb[0].mxu0
      %v1456 = vpop.f32.mrb[0].mxu0
      %v1457 = vadd.f32 %v1296, %v1456
      %v1458 = vpop.f32.mrb[0].mxu0
      %1459 = vmatprep.mubr.bf16.mxu0 0
      %1460 = vmatmul.mubr.bf16.gmra.mrb[0].mxu0 %v907
      %v1461 = vpop.f32.mrb[0].mxu0
      %v1462 = vadd.f32 %v1301, %v1461
      %v1463 = vpop.f32.mrb[0].mxu0
      %v1464 = vpop.f32.mrb[0].mxu0
      %v1465 = vadd.f32 %v1304, %v1464
      %v1466 = vpop.f32.mrb[0].mxu0
      %1467 = vmatprep.mubr.bf16.mxu0 0
      %1468 = vmatmul.mubr.bf16.gmra.mrb[0].mxu0 %v910
      %v1469 = vpop.f32.mrb[0].mxu0
      %v1470 = vadd.f32 %v1309, %v1469
      %v1471 = vpop.f32.mrb[0].mxu0
      %v1472 = vpop.f32.mrb[0].mxu0
      %v1473 = vadd.f32 %v1312, %v1472
      %v1474 = vpop.f32.mrb[0].mxu0
      %1475 = vmatprep.mubr.bf16.mxu0 0
      %1476 = vmatmul.mubr.bf16.gmra.mrb[0].mxu0 %v913
      %v1477 = vpop.f32.mrb[0].mxu0
      %v1478 = vadd.f32 %v1317, %v1477
      %v1479 = vpop.f32.mrb[0].mxu0
      %v1480 = vpop.f32.mrb[0].mxu0
      %v1481 = vadd.f32 %v1320, %v1480
      %v1482 = vpop.f32.mrb[0].mxu0
      %1483 = vmatprep.mubr.bf16.mxu0 0
      %1484 = vmatmul.mubr.bf16.gmra.mrb[0].mxu0 %v916
      %v1485 = vpop.f32.mrb[0].mxu0
      %v1486 = vadd.f32 %v1325, %v1485
      %v1487 = vpop.f32.mrb[0].mxu0
      %v1488 = vpop.f32.mrb[0].mxu0
      %v1489 = vadd.f32 %v1328, %v1488
      %v1490 = vpop.f32.mrb[0].mxu0
      %1491 = vmatprep.mubr.bf16.mxu0 0
      %1492 = vmatmul.mubr.bf16.gmra.mrb[0].mxu0 %v984
      %v1493 = vpop.f32.mrb[0].mxu0
      %v1494 = vadd.f32 %v1333, %v1493
      %v1495 = vpop.f32.mrb[0].mxu0
      %v1496 = vpop.f32.mrb[0].mxu0
      %v1497 = vadd.f32 %v1336, %v1496
      %v1498 = vpop.f32.mrb[0].mxu0
      %1499 = vdwg.mxu0
      %v1548 = vunpack.c.l.b16 %v917
      %v1549 = vunpack.c.l.b16 %v918
      %v1550 = vunpack.c.l.b16 %v919
      %v1551 = vunpack.c.l.b16 %v920
      %v1552 = vunpack.c.l.b16 %v921
      %v1553 = vunpack.c.l.b16 %v922
      %v1554 = vunpack.c.l.b16 %v923
      %v1555 = vunpack.c.l.b16 %v924
      %v1556 = vunpack.c.l.b16 %v925
      %v1557 = vunpack.c.l.b16 %v926
      %v1558 = vunpack.c.l.b16 %v927
      %v1559 = vunpack.c.l.b16 %v928
      %v1560 = vunpack.c.l.b16 %v929
      %v1561 = vunpack.c.l.b16 %v930
      %v1562 = vunpack.c.l.b16 %v931
      %v1563 = vunpack.c.l.b16 %v932
      %v1564 = vunpack.c.l.b16 %v933
      %v1565 = vunpack.c.l.b16 %v934
      %v1566 = vunpack.c.l.b16 %v935
      %v1567 = vunpack.c.l.b16 %v936
      %v1568 = vunpack.c.l.b16 %v937
      %v1569 = vunpack.c.l.b16 %v938
      %v1570 = vunpack.c.l.b16 %v939
      %v1571 = vunpack.c.l.b16 %v940
      %v1572 = vunpack.c.l.b16 %v941
      %v1573 = vunpack.c.l.b16 %v942
      %v1574 = vunpack.c.l.b16 %v943
      %v1575 = vunpack.c.l.b16 %v944
      %v1576 = vunpack.c.l.b16 %v945
      %v1577 = vunpack.c.l.b16 %v946
      %v1578 = vunpack.c.l.b16 %v947
      %v1579 = vunpack.c.l.b16 %v948
      %v1580 = vunpack.c.l.b16 %v949
      %v1581 = vunpack.c.l.b16 %v950
      %v1582 = vunpack.c.l.b16 %v951
      %v1583 = vunpack.c.l.b16 %v952
      %v1584 = vunpack.c.l.b16 %v953
      %v1585 = vunpack.c.l.b16 %v954
      %v1586 = vunpack.c.l.b16 %v955
      %v1587 = vunpack.c.l.b16 %v956
      %v1588 = vunpack.c.l.b16 %v957
      %v1589 = vunpack.c.l.b16 %v958
      %v1590 = vunpack.c.l.b16 %v959
      %v1591 = vunpack.c.l.b16 %v960
      %v1592 = vunpack.c.l.b16 %v961
      %v1593 = vunpack.c.l.b16 %v962
      %v1594 = vunpack.c.l.b16 %v963
      %v1595 = vunpack.c.l.b16 %v964
      %v1596 = vpack.c.b16 %v1549, %v1548
      %v1597 = vpack.c.b16 %v1551, %v1550
      %v1598 = vpack.c.b16 %v1553, %v1552
      %v1599 = vpack.c.b16 %v1555, %v1554
      %v1600 = vpack.c.b16 %v1557, %v1556
      %v1601 = vpack.c.b16 %v1559, %v1558
      %v1602 = vpack.c.b16 %v1561, %v1560
      %v1603 = vpack.c.b16 %v1563, %v1562
      %v1604 = vpack.c.b16 %v1565, %v1564
      %v1605 = vpack.c.b16 %v1567, %v1566
      %v1606 = vpack.c.b16 %v1569, %v1568
      %v1607 = vpack.c.b16 %v1571, %v1570
      %v1608 = vpack.c.b16 %v1573, %v1572
      %v1609 = vpack.c.b16 %v1575, %v1574
      %v1610 = vpack.c.b16 %v1577, %v1576
      %v1611 = vpack.c.b16 %v1579, %v1578
      %v1612 = vpack.c.b16 %v1581, %v1580
      %v1613 = vpack.c.b16 %v1583, %v1582
      %v1614 = vpack.c.b16 %v1585, %v1584
      %v1615 = vpack.c.b16 %v1587, %v1586
      %v1616 = vpack.c.b16 %v1589, %v1588
      %v1617 = vpack.c.b16 %v1591, %v1590
      %v1618 = vpack.c.b16 %v1593, %v1592
      %v1619 = vpack.c.b16 %v1595, %v1594
      %1644 = vmatprep.subr.bf16.mxu0 0
      %1645 = vmatpush1.bf16.msra.mxu0 %v1596
      %1646 = vmatprep.subr.bf16.mxu0 0
      %1647 = vmatpush1.bf16.msra.mxu0 %v1597
      %1648 = vmatprep.subr.bf16.mxu0 0
      %1649 = vmatpush1.bf16.msra.mxu0 %v1598
      %1650 = vmatprep.subr.bf16.mxu0 0
      %1651 = vmatpush1.bf16.msra.mxu0 %v1599
      %1652 = vmatprep.subr.bf16.mxu0 0
      %1653 = vmatpush1.bf16.msra.mxu0 %v1600
      %1654 = vmatprep.subr.bf16.mxu0 0
      %1655 = vmatpush1.bf16.msra.mxu0 %v1601
      %1656 = vmatprep.subr.bf16.mxu0 0
      %1657 = vmatpush1.bf16.msra.mxu0 %v1602
      %1658 = vmatprep.subr.bf16.mxu0 0
      %1659 = vmatpush1.bf16.msra.mxu0 %v1603
      %1660 = vmatprep.subr.bf16.mxu0 0
      %1661 = vmatpush1.bf16.msra.mxu0 %v1604
      %1662 = vmatprep.subr.bf16.mxu0 0
      %1663 = vmatpush1.bf16.msra.mxu0 %v1605
      %1664 = vmatprep.subr.bf16.mxu0 0
      %1665 = vmatpush1.bf16.msra.mxu0 %v1606
      %1666 = vmatprep.subr.bf16.mxu0 0
      %1667 = vmatpush1.bf16.msra.mxu0 %v1607
      %1668 = vmatprep.subr.bf16.mxu0 0
      %1669 = vmatpush1.bf16.msra.mxu0 %v1608
      %1670 = vmatprep.subr.bf16.mxu0 0
      %1671 = vmatpush1.bf16.msra.mxu0 %v1609
      %1672 = vmatprep.subr.bf16.mxu0 0
      %1673 = vmatpush1.bf16.msra.mxu0 %v1610
      %1674 = vmatprep.subr.bf16.mxu0 0
      %1675 = vmatpush1.bf16.msra.mxu0 %v1611
      %1676 = vmatprep.mubr.bf16.mxu0 %v870
      %1677 = vmatmul.mubr.bf16.gmra.mrb[0].mxu0 %v869
      %v1678 = vpop.f32.mrb[0].mxu0
      %v1679 = vadd.f32 %v1374, %v1678
      %v1680 = vpop.f32.mrb[0].mxu0
      %v1681 = vpop.f32.mrb[0].mxu0
      %v1682 = vadd.f32 %v1377, %v1681
      %v1683 = vpop.f32.mrb[0].mxu0
      %1684 = vmatprep.mubr.bf16.mxu0 %v873
      %1685 = vmatmul.mubr.bf16.gmra.mrb[0].mxu0 %v872
      %v1686 = vpop.f32.mrb[0].mxu0
      %v1687 = vadd.f32 %v1382, %v1686
      %v1688 = vpop.f32.mrb[0].mxu0
      %v1689 = vpop.f32.mrb[0].mxu0
      %v1690 = vadd.f32 %v1385, %v1689
      %v1691 = vpop.f32.mrb[0].mxu0
      %1692 = vmatprep.mubr.bf16.mxu0 %v876
      %1693 = vmatmul.mubr.bf16.gmra.mrb[0].mxu0 %v875
      %v1694 = vpop.f32.mrb[0].mxu0
      %v1695 = vadd.f32 %v1390, %v1694
      %v1696 = vpop.f32.mrb[0].mxu0
      %v1697 = vpop.f32.mrb[0].mxu0
      %v1698 = vadd.f32 %v1393, %v1697
      %v1699 = vpop.f32.mrb[0].mxu0
      %1700 = vmatprep.mubr.bf16.mxu0 %v879
      %1701 = vmatmul.mubr.bf16.gmra.mrb[0].mxu0 %v878
      %v1702 = vpop.f32.mrb[0].mxu0
      %v1703 = vadd.f32 %v1398, %v1702
      %v1704 = vpop.f32.mrb[0].mxu0
      %v1705 = vpop.f32.mrb[0].mxu0
      %v1706 = vadd.f32 %v1401, %v1705
      %v1707 = vpop.f32.mrb[0].mxu0
      %1708 = vmatprep.mubr.bf16.mxu0 %v882
      %1709 = vmatmul.mubr.bf16.gmra.mrb[0].mxu0 %v881
      %v1710 = vpop.f32.mrb[0].mxu0
      %v1711 = vadd.f32 %v1406, %v1710
      %v1712 = vpop.f32.mrb[0].mxu0
      %v1713 = vpop.f32.mrb[0].mxu0
      %v1714 = vadd.f32 %v1409, %v1713
      %v1715 = vpop.f32.mrb[0].mxu0
      %1716 = vmatprep.mubr.bf16.mxu0 %v885
      %1717 = vmatmul.mubr.bf16.gmra.mrb[0].mxu0 %v884
      %v1718 = vpop.f32.mrb[0].mxu0
      %v1719 = vadd.f32 %v1414, %v1718
      %v1720 = vpop.f32.mrb[0].mxu0
      %v1721 = vpop.f32.mrb[0].mxu0
      %v1722 = vadd.f32 %v1417, %v1721
      %v1723 = vpop.f32.mrb[0].mxu0
      %1724 = vmatprep.mubr.bf16.mxu0 %v888
      %1725 = vmatmul.mubr.bf16.gmra.mrb[0].mxu0 %v887
      %v1726 = vpop.f32.mrb[0].mxu0
      %v1727 = vadd.f32 %v1422, %v1726
      %v1728 = vpop.f32.mrb[0].mxu0
      %v1729 = vpop.f32.mrb[0].mxu0
      %v1730 = vadd.f32 %v1425, %v1729
      %v1731 = vpop.f32.mrb[0].mxu0
      %1732 = vmatprep.mubr.bf16.mxu0 %v891
      %1733 = vmatmul.mubr.bf16.gmra.mrb[0].mxu0 %v890
      %v1734 = vpop.f32.mrb[0].mxu0
      %v1735 = vadd.f32 %v1430, %v1734
      %v1736 = vpop.f32.mrb[0].mxu0
      %v1737 = vpop.f32.mrb[0].mxu0
      %v1738 = vadd.f32 %v1433, %v1737
      %v1739 = vpop.f32.mrb[0].mxu0
      %1740 = vmatprep.mubr.bf16.mxu0 %v894
      %1741 = vmatmul.mubr.bf16.gmra.mrb[0].mxu0 %v893
      %v1742 = vpop.f32.mrb[0].mxu0
      %v1743 = vadd.f32 %v1438, %v1742
      %v1744 = vpop.f32.mrb[0].mxu0
      %v1745 = vpop.f32.mrb[0].mxu0
      %v1746 = vadd.f32 %v1441, %v1745
      %v1747 = vpop.f32.mrb[0].mxu0
      %1748 = vmatprep.mubr.bf16.mxu0 %v897
      %1749 = vmatmul.mubr.bf16.gmra.mrb[0].mxu0 %v896
      %v1750 = vpop.f32.mrb[0].mxu0
      %v1751 = vadd.f32 %v1446, %v1750
      %v1752 = vpop.f32.mrb[0].mxu0
      %v1753 = vpop.f32.mrb[0].mxu0
      %v1754 = vadd.f32 %v1449, %v1753
      %v1755 = vpop.f32.mrb[0].mxu0
      %1756 = vmatprep.mubr.bf16.mxu0 %v900
      %1757 = vmatmul.mubr.bf16.gmra.mrb[0].mxu0 %v899
      %v1758 = vpop.f32.mrb[0].mxu0
      %v1759 = vadd.f32 %v1454, %v1758
      %v1760 = vpop.f32.mrb[0].mxu0
      %v1761 = vpop.f32.mrb[0].mxu0
      %v1762 = vadd.f32 %v1457, %v1761
      %v1763 = vpop.f32.mrb[0].mxu0
      %1764 = vmatprep.mubr.bf16.mxu0 %v903
      %1765 = vmatmul.mubr.bf16.gmra.mrb[0].mxu0 %v902
      %v1766 = vpop.f32.mrb[0].mxu0
      %v1767 = vadd.f32 %v1462, %v1766
      %v1768 = vpop.f32.mrb[0].mxu0
      %v1769 = vpop.f32.mrb[0].mxu0
      %v1770 = vadd.f32 %v1465, %v1769
      %v1771 = vpop.f32.mrb[0].mxu0
      %1772 = vmatprep.mubr.bf16.mxu0 %v906
      %1773 = vmatmul.mubr.bf16.gmra.mrb[0].mxu0 %v905
      %v1774 = vpop.f32.mrb[0].mxu0
      %v1775 = vadd.f32 %v1470, %v1774
      %v1776 = vpop.f32.mrb[0].mxu0
      %v1777 = vpop.f32.mrb[0].mxu0
      %v1778 = vadd.f32 %v1473, %v1777
      %v1779 = vpop.f32.mrb[0].mxu0
      %1780 = vmatprep.mubr.bf16.mxu0 %v909
      %1781 = vmatmul.mubr.bf16.gmra.mrb[0].mxu0 %v908
      %v1782 = vpop.f32.mrb[0].mxu0
      %v1783 = vadd.f32 %v1478, %v1782
      %v1784 = vpop.f32.mrb[0].mxu0
      %v1785 = vpop.f32.mrb[0].mxu0
      %v1786 = vadd.f32 %v1481, %v1785
      %v1787 = vpop.f32.mrb[0].mxu0
      %1788 = vmatprep.mubr.bf16.mxu0 %v912
      %1789 = vmatmul.mubr.bf16.gmra.mrb[0].mxu0 %v911
      %v1790 = vpop.f32.mrb[0].mxu0
      %v1791 = vadd.f32 %v1486, %v1790
      %v1792 = vpop.f32.mrb[0].mxu0
      %v1793 = vpop.f32.mrb[0].mxu0
      %v1794 = vadd.f32 %v1489, %v1793
      %v1795 = vpop.f32.mrb[0].mxu0
      %1796 = vmatprep.mubr.bf16.mxu0 %v915
      %1797 = vmatmul.mubr.bf16.gmra.mrb[0].mxu0 %v914
      %v1798 = vpop.f32.mrb[0].mxu0
      %v1799 = vadd.f32 %v1494, %v1798
      %v1800 = vpop.f32.mrb[0].mxu0
      %v1801 = vpop.f32.mrb[0].mxu0
      %v1802 = vadd.f32 %v1497, %v1801
      %v1803 = vpop.f32.mrb[0].mxu0
      %1804 = vdwg.mxu0
      %1805 = vmatprep.subr.bf16.mxu0 0
      %1806 = vmatpush1.bf16.msra.mxu0 %v1612
      %1807 = vmatprep.subr.bf16.mxu0 0
      %1808 = vmatpush1.bf16.msra.mxu0 %v1613
      %1809 = vmatprep.subr.bf16.mxu0 0
      %1810 = vmatpush1.bf16.msra.mxu0 %v1614
      %1811 = vmatprep.subr.bf16.mxu0 0
      %1812 = vmatpush1.bf16.msra.mxu0 %v1615
      %1813 = vmatprep.subr.bf16.mxu0 0
      %1814 = vmatpush1.bf16.msra.mxu0 %v1616
      %1815 = vmatprep.subr.bf16.mxu0 0
      %1816 = vmatpush1.bf16.msra.mxu0 %v1617
      %1817 = vmatprep.subr.bf16.mxu0 0
      %1818 = vmatpush1.bf16.msra.mxu0 %v1618
      %1819 = vmatprep.subr.bf16.mxu0 0
      %1820 = vmatpush1.bf16.msra.mxu0 %v1619
      %1821 = vmatprep.subr.bf16.mxu0 0
      %1822 = vmatpush1.bf16.msra.mxu0 0
      %1823 = vmatprep.subr.bf16.mxu0 0
      %1824 = vmatpush1.bf16.msra.mxu0 0
      %1825 = vmatprep.subr.bf16.mxu0 0
      %1826 = vmatpush1.bf16.msra.mxu0 0
      %1827 = vmatprep.subr.bf16.mxu0 0
      %1828 = vmatpush1.bf16.msra.mxu0 0
      %1829 = vmatprep.subr.bf16.mxu0 0
      %1830 = vmatpush1.bf16.msra.mxu0 0
      %1831 = vmatprep.subr.bf16.mxu0 0
      %1832 = vmatpush1.bf16.msra.mxu0 0
      %1833 = vmatprep.subr.bf16.mxu0 0
      %1834 = vmatpush1.bf16.msra.mxu0 0
      %1835 = vmatprep.subr.bf16.mxu0 0
      %1836 = vmatpush1.bf16.msra.mxu0 0
      %1837 = vmatprep.mubr.bf16.mxu0 0
      %1838 = vmatmul.mubr.bf16.gmra.mrb[0].mxu0 %v871
      %v1839 = vpop.f32.mrb[0].mxu0
      %v1840 = vadd.f32 %v1679, %v1839
      %v1841 = vpop.f32.mrb[0].mxu0
      %v1842 = vpop.f32.mrb[0].mxu0
      %v1843 = vadd.f32 %v1682, %v1842
      %v1844 = vpop.f32.mrb[0].mxu0
      %1845 = vmatprep.mubr.bf16.mxu0 0
      %1846 = vmatmul.mubr.bf16.gmra.mrb[0].mxu0 %v874
      %v1847 = vpop.f32.mrb[0].mxu0
      %v1848 = vadd.f32 %v1687, %v1847
      %v1849 = vpop.f32.mrb[0].mxu0
      %v1850 = vpop.f32.mrb[0].mxu0
      %v1851 = vadd.f32 %v1690, %v1850
      %v1852 = vpop.f32.mrb[0].mxu0
      %1853 = vmatprep.mubr.bf16.mxu0 0
      %1854 = vmatmul.mubr.bf16.gmra.mrb[0].mxu0 %v877
      %v1855 = vpop.f32.mrb[0].mxu0
      %v1856 = vadd.f32 %v1695, %v1855
      %v1857 = vpop.f32.mrb[0].mxu0
      %v1858 = vpop.f32.mrb[0].mxu0
      %v1859 = vadd.f32 %v1698, %v1858
      %v1860 = vpop.f32.mrb[0].mxu0
      %1861 = vmatprep.mubr.bf16.mxu0 0
      %1862 = vmatmul.mubr.bf16.gmra.mrb[0].mxu0 %v880
      %v1863 = vpop.f32.mrb[0].mxu0
      %v1864 = vadd.f32 %v1703, %v1863
      %v1865 = vpop.f32.mrb[0].mxu0
      %v1866 = vpop.f32.mrb[0].mxu0
      %v1867 = vadd.f32 %v1706, %v1866
      %v1868 = vpop.f32.mrb[0].mxu0
      %1869 = vmatprep.mubr.bf16.mxu0 0
      %1870 = vmatmul.mubr.bf16.gmra.mrb[0].mxu0 %v883
      %v1871 = vpop.f32.mrb[0].mxu0
      %v1872 = vadd.f32 %v1711, %v1871
      %v1873 = vpop.f32.mrb[0].mxu0
      %v1874 = vpop.f32.mrb[0].mxu0
      %v1875 = vadd.f32 %v1714, %v1874
      %v1876 = vpop.f32.mrb[0].mxu0
      %1877 = vmatprep.mubr.bf16.mxu0 0
      %1878 = vmatmul.mubr.bf16.gmra.mrb[0].mxu0 %v886
      %v1879 = vpop.f32.mrb[0].mxu0
      %v1880 = vadd.f32 %v1719, %v1879
      %v1881 = vpop.f32.mrb[0].mxu0
      %v1882 = vpop.f32.mrb[0].mxu0
      %v1883 = vadd.f32 %v1722, %v1882
      %v1884 = vpop.f32.mrb[0].mxu0
      %1885 = vmatprep.mubr.bf16.mxu0 0
      %1886 = vmatmul.mubr.bf16.gmra.mrb[0].mxu0 %v889
      %v1887 = vpop.f32.mrb[0].mxu0
      %v1888 = vadd.f32 %v1727, %v1887
      %v1889 = vpop.f32.mrb[0].mxu0
      %v1890 = vpop.f32.mrb[0].mxu0
      %v1891 = vadd.f32 %v1730, %v1890
      %v1892 = vpop.f32.mrb[0].mxu0
      %1893 = vmatprep.mubr.bf16.mxu0 0
      %1894 = vmatmul.mubr.bf16.gmra.mrb[0].mxu0 %v892
      %v1895 = vpop.f32.mrb[0].mxu0
      %v1896 = vadd.f32 %v1735, %v1895
      %v1897 = vpop.f32.mrb[0].mxu0
      %v1898 = vpop.f32.mrb[0].mxu0
      %v1899 = vadd.f32 %v1738, %v1898
      %v1900 = vpop.f32.mrb[0].mxu0
      %1901 = vmatprep.mubr.bf16.mxu0 0
      %1902 = vmatmul.mubr.bf16.gmra.mrb[0].mxu0 %v895
      %v1903 = vpop.f32.mrb[0].mxu0
      %v1904 = vadd.f32 %v1743, %v1903
      %v1905 = vpop.f32.mrb[0].mxu0
      %v1906 = vpop.f32.mrb[0].mxu0
      %v1907 = vadd.f32 %v1746, %v1906
      %v1908 = vpop.f32.mrb[0].mxu0
      %1909 = vmatprep.mubr.bf16.mxu0 0
      %1910 = vmatmul.mubr.bf16.gmra.mrb[0].mxu0 %v898
      %v1911 = vpop.f32.mrb[0].mxu0
      %v1912 = vadd.f32 %v1751, %v1911
      %v1913 = vpop.f32.mrb[0].mxu0
      %v1914 = vpop.f32.mrb[0].mxu0
      %v1915 = vadd.f32 %v1754, %v1914
      %v1916 = vpop.f32.mrb[0].mxu0
      %1917 = vmatprep.mubr.bf16.mxu0 0
      %1918 = vmatmul.mubr.bf16.gmra.mrb[0].mxu0 %v901
      %v1919 = vpop.f32.mrb[0].mxu0
      %v1920 = vadd.f32 %v1759, %v1919
      %v1921 = vpop.f32.mrb[0].mxu0
      %v1922 = vpop.f32.mrb[0].mxu0
      %v1923 = vadd.f32 %v1762, %v1922
      %v1924 = vpop.f32.mrb[0].mxu0
      %1925 = vmatprep.mubr.bf16.mxu0 0
      %1926 = vmatmul.mubr.bf16.gmra.mrb[0].mxu0 %v904
      %v1927 = vpop.f32.mrb[0].mxu0
      %v1928 = vadd.f32 %v1767, %v1927
      %v1929 = vpop.f32.mrb[0].mxu0
      %v1930 = vpop.f32.mrb[0].mxu0
      %v1931 = vadd.f32 %v1770, %v1930
      %v1932 = vpop.f32.mrb[0].mxu0
      %1933 = vmatprep.mubr.bf16.mxu0 0
      %1934 = vmatmul.mubr.bf16.gmra.mrb[0].mxu0 %v907
      %v1935 = vpop.f32.mrb[0].mxu0
      %v1936 = vadd.f32 %v1775, %v1935
      %v1937 = vpop.f32.mrb[0].mxu0
      %v1938 = vpop.f32.mrb[0].mxu0
      %v1939 = vadd.f32 %v1778, %v1938
      %v1940 = vpop.f32.mrb[0].mxu0
      %1941 = vmatprep.mubr.bf16.mxu0 0
      %1942 = vmatmul.mubr.bf16.gmra.mrb[0].mxu0 %v910
      %v1943 = vpop.f32.mrb[0].mxu0
      %v1944 = vadd.f32 %v1783, %v1943
      %v1945 = vpop.f32.mrb[0].mxu0
      %v1946 = vpop.f32.mrb[0].mxu0
      %v1947 = vadd.f32 %v1786, %v1946
      %v1948 = vpop.f32.mrb[0].mxu0
      %1949 = vmatprep.mubr.bf16.mxu0 0
      %1950 = vmatmul.mubr.bf16.gmra.mrb[0].mxu0 %v913
      %v1951 = vpop.f32.mrb[0].mxu0
      %v1952 = vadd.f32 %v1791, %v1951
      %v1953 = vpop.f32.mrb[0].mxu0
      %v1954 = vpop.f32.mrb[0].mxu0
      %v1955 = vadd.f32 %v1794, %v1954
      %v1956 = vpop.f32.mrb[0].mxu0
      %1957 = vmatprep.mubr.bf16.mxu0 0
      %1958 = vmatmul.mubr.bf16.gmra.mrb[0].mxu0 %v916
      %v1959 = vpop.f32.mrb[0].mxu0
      %v1960 = vadd.f32 %v1799, %v1959
      %v1961 = vpop.f32.mrb[0].mxu0
      %v1962 = vpop.f32.mrb[0].mxu0
      %v1963 = vadd.f32 %v1802, %v1962
      %v1964 = vpop.f32.mrb[0].mxu0
      %1965 = vdwg.mxu0
      %v1969 = vrot.slane %v592, 1
      %v1970 = vrot.slane %v593, 1
      %v1971 = vsel %vm643, %v1969, %v1970
      %v1972 = vrot.slane %v594, 1
      %v1973 = vsel %vm643, %v1970, %v1972
      %v1976 = vrot.slane %v592, 2
      %v1977 = vrot.slane %v593, 2
      %v1978 = vsel %vm756, %v1976, %v1977
      %v1979 = vrot.slane %v594, 2
      %v1980 = vsel %vm756, %v1977, %v1979
      %v1983 = vpack.c.bf16 %v593, %v592
      %v1984 = vpack.c.bf16 %v1973, %v1971
      %v1985 = vpack.c.bf16 %v1980, %v1978
      %s1986 = scalar_lea.vmem %s1, 384
      %v1987 = vld [vmem:[%s1986] sm:$0xf]
      %v1988 = vld [vmem:[%s1986 + $0x4] sm:$0xf]
      %v1989 = vld [vmem:[%s1986 + $0x8] sm:$0xf]
      %v1990 = vld [vmem:[%s1986 + $0xc] sm:$0xf]
      %v1991 = vld [vmem:[%s1986 + $0x10] sm:$0xf]
      %v1992 = vld [vmem:[%s1986 + $0x14] sm:$0xf]
      %v1993 = vld [vmem:[%s1986 + $0x18] sm:$0xf]
      %v1994 = vld [vmem:[%s1986 + $0x1c] sm:$0xf]
      %v1995 = vld [vmem:[%s1986 + $0x20] sm:$0xf]
      %v1996 = vld [vmem:[%s1986 + $0x24] sm:$0xf]
      %v1997 = vld [vmem:[%s1986 + $0x28] sm:$0xf]
      %v1998 = vld [vmem:[%s1986 + $0x2c] sm:$0xf]
      %v1999 = vld [vmem:[%s1986 + $0x30] sm:$0xf]
      %v2000 = vld [vmem:[%s1986 + $0x34] sm:$0xf]
      %v2001 = vld [vmem:[%s1986 + $0x38] sm:$0xf]
      %v2002 = vld [vmem:[%s1986 + $0x3c] sm:$0xf]
      %v2003 = vld [vmem:[%s1986 + $0x40] sm:$0xf]
      %v2004 = vld [vmem:[%s1986 + $0x44] sm:$0xf]
      %v2005 = vld [vmem:[%s1986 + $0x48] sm:$0xf]
      %v2006 = vld [vmem:[%s1986 + $0x4c] sm:$0xf]
      %v2007 = vld [vmem:[%s1986 + $0x50] sm:$0xf]
      %v2008 = vld [vmem:[%s1986 + $0x54] sm:$0xf]
      %v2009 = vld [vmem:[%s1986 + $0x58] sm:$0xf]
      %v2010 = vld [vmem:[%s1986 + $0x5c] sm:$0xf]
      %v2011 = vld [vmem:[%s1986 + $0x60] sm:$0xf]
      %v2012 = vld [vmem:[%s1986 + $0x64] sm:$0xf]
      %v2013 = vld [vmem:[%s1986 + $0x68] sm:$0xf]
      %v2014 = vld [vmem:[%s1986 + $0x6c] sm:$0xf]
      %v2015 = vld [vmem:[%s1986 + $0x70] sm:$0xf]
      %v2016 = vld [vmem:[%s1986 + $0x74] sm:$0xf]
      %v2017 = vld [vmem:[%s1986 + $0x78] sm:$0xf]
      %v2018 = vld [vmem:[%s1986 + $0x7c] sm:$0xf]
      %v2019 = vld [vmem:[%s1986 + $0x80] sm:$0xf]
      %v2020 = vld [vmem:[%s1986 + $0x84] sm:$0xf]
      %v2021 = vld [vmem:[%s1986 + $0x88] sm:$0xf]
      %v2022 = vld [vmem:[%s1986 + $0x8c] sm:$0xf]
      %v2023 = vld [vmem:[%s1986 + $0x90] sm:$0xf]
      %v2024 = vld [vmem:[%s1986 + $0x94] sm:$0xf]
      %v2025 = vld [vmem:[%s1986 + $0x98] sm:$0xf]
      %v2026 = vld [vmem:[%s1986 + $0x9c] sm:$0xf]
      %v2027 = vld [vmem:[%s1986 + $0xa0] sm:$0xf]
      %v2028 = vld [vmem:[%s1986 + $0xa4] sm:$0xf]
      %v2029 = vld [vmem:[%s1986 + $0xa8] sm:$0xf]
      %v2030 = vld [vmem:[%s1986 + $0xac] sm:$0xf]
      %v2031 = vld [vmem:[%s1986 + $0xb0] sm:$0xf]
      %v2032 = vld [vmem:[%s1986 + $0xb4] sm:$0xf]
      %v2033 = vld [vmem:[%s1986 + $0xb8] sm:$0xf]
      %v2034 = vld [vmem:[%s1986 + $0xbc] sm:$0xf]
      %v2083 = vunpack.c.l.b16 %v1987
      %v2084 = vunpack.c.l.b16 %v1988
      %v2085 = vunpack.c.l.b16 %v1989
      %v2086 = vunpack.c.l.b16 %v1990
      %v2087 = vunpack.c.l.b16 %v1991
      %v2088 = vunpack.c.l.b16 %v1992
      %v2089 = vunpack.c.l.b16 %v1993
      %v2090 = vunpack.c.l.b16 %v1994
      %v2091 = vunpack.c.l.b16 %v1995
      %v2092 = vunpack.c.l.b16 %v1996
      %v2093 = vunpack.c.l.b16 %v1997
      %v2094 = vunpack.c.l.b16 %v1998
      %v2095 = vunpack.c.l.b16 %v1999
      %v2096 = vunpack.c.l.b16 %v2000
      %v2097 = vunpack.c.l.b16 %v2001
      %v2098 = vunpack.c.l.b16 %v2002
      %v2099 = vunpack.c.l.b16 %v2003
      %v2100 = vunpack.c.l.b16 %v2004
      %v2101 = vunpack.c.l.b16 %v2005
      %v2102 = vunpack.c.l.b16 %v2006
      %v2103 = vunpack.c.l.b16 %v2007
      %v2104 = vunpack.c.l.b16 %v2008
      %v2105 = vunpack.c.l.b16 %v2009
      %v2106 = vunpack.c.l.b16 %v2010
      %v2107 = vunpack.c.l.b16 %v2011
      %v2108 = vunpack.c.l.b16 %v2012
      %v2109 = vunpack.c.l.b16 %v2013
      %v2110 = vunpack.c.l.b16 %v2014
      %v2111 = vunpack.c.l.b16 %v2015
      %v2112 = vunpack.c.l.b16 %v2016
      %v2113 = vunpack.c.l.b16 %v2017
      %v2114 = vunpack.c.l.b16 %v2018
      %v2115 = vunpack.c.l.b16 %v2019
      %v2116 = vunpack.c.l.b16 %v2020
      %v2117 = vunpack.c.l.b16 %v2021
      %v2118 = vunpack.c.l.b16 %v2022
      %v2119 = vunpack.c.l.b16 %v2023
      %v2120 = vunpack.c.l.b16 %v2024
      %v2121 = vunpack.c.l.b16 %v2025
      %v2122 = vunpack.c.l.b16 %v2026
      %v2123 = vunpack.c.l.b16 %v2027
      %v2124 = vunpack.c.l.b16 %v2028
      %v2125 = vunpack.c.l.b16 %v2029
      %v2126 = vunpack.c.l.b16 %v2030
      %v2127 = vunpack.c.l.b16 %v2031
      %v2128 = vunpack.c.l.b16 %v2032
      %v2129 = vunpack.c.l.b16 %v2033
      %v2130 = vunpack.c.l.b16 %v2034
      %v2131 = vpack.c.b16 %v2084, %v2083
      %v2132 = vpack.c.b16 %v2086, %v2085
      %v2133 = vpack.c.b16 %v2088, %v2087
      %v2134 = vpack.c.b16 %v2090, %v2089
      %v2135 = vpack.c.b16 %v2092, %v2091
      %v2136 = vpack.c.b16 %v2094, %v2093
      %v2137 = vpack.c.b16 %v2096, %v2095
      %v2138 = vpack.c.b16 %v2098, %v2097
      %v2139 = vpack.c.b16 %v2100, %v2099
      %v2140 = vpack.c.b16 %v2102, %v2101
      %v2141 = vpack.c.b16 %v2104, %v2103
      %v2142 = vpack.c.b16 %v2106, %v2105
      %v2143 = vpack.c.b16 %v2108, %v2107
      %v2144 = vpack.c.b16 %v2110, %v2109
      %v2145 = vpack.c.b16 %v2112, %v2111
      %v2146 = vpack.c.b16 %v2114, %v2113
      %v2147 = vpack.c.b16 %v2116, %v2115
      %v2148 = vpack.c.b16 %v2118, %v2117
      %v2149 = vpack.c.b16 %v2120, %v2119
      %v2150 = vpack.c.b16 %v2122, %v2121
      %v2151 = vpack.c.b16 %v2124, %v2123
      %v2152 = vpack.c.b16 %v2126, %v2125
      %v2153 = vpack.c.b16 %v2128, %v2127
      %v2154 = vpack.c.b16 %v2130, %v2129
      %2179 = vmatprep.subr.bf16.mxu0 0
      %2180 = vmatpush1.bf16.msra.mxu0 %v2131
      %2181 = vmatprep.subr.bf16.mxu0 0
      %2182 = vmatpush1.bf16.msra.mxu0 %v2132
      %2183 = vmatprep.subr.bf16.mxu0 0
      %2184 = vmatpush1.bf16.msra.mxu0 %v2133
      %2185 = vmatprep.subr.bf16.mxu0 0
      %2186 = vmatpush1.bf16.msra.mxu0 %v2134
      %2187 = vmatprep.subr.bf16.mxu0 0
      %2188 = vmatpush1.bf16.msra.mxu0 %v2135
      %2189 = vmatprep.subr.bf16.mxu0 0
      %2190 = vmatpush1.bf16.msra.mxu0 %v2136
      %2191 = vmatprep.subr.bf16.mxu0 0
      %2192 = vmatpush1.bf16.msra.mxu0 %v2137
      %2193 = vmatprep.subr.bf16.mxu0 0
      %2194 = vmatpush1.bf16.msra.mxu0 %v2138
      %2195 = vmatprep.subr.bf16.mxu0 0
      %2196 = vmatpush1.bf16.msra.mxu0 %v2139
      %2197 = vmatprep.subr.bf16.mxu0 0
      %2198 = vmatpush1.bf16.msra.mxu0 %v2140
      %2199 = vmatprep.subr.bf16.mxu0 0
      %2200 = vmatpush1.bf16.msra.mxu0 %v2141
      %2201 = vmatprep.subr.bf16.mxu0 0
      %2202 = vmatpush1.bf16.msra.mxu0 %v2142
      %2203 = vmatprep.subr.bf16.mxu0 0
      %2204 = vmatpush1.bf16.msra.mxu0 %v2143
      %2205 = vmatprep.subr.bf16.mxu0 0
      %2206 = vmatpush1.bf16.msra.mxu0 %v2144
      %2207 = vmatprep.subr.bf16.mxu0 0
      %2208 = vmatpush1.bf16.msra.mxu0 %v2145
      %2209 = vmatprep.subr.bf16.mxu0 0
      %2210 = vmatpush1.bf16.msra.mxu0 %v2146
      %2211 = vmatprep.mubr.bf16.mxu0 %v876
      %2212 = vmatmul.mubr.bf16.gmra.mrb[0].mxu0 %v875
      %v2213 = vpop.f32.mrb[0].mxu0
      %v2214 = vadd.f32 0.0, %v2213
      %v2215 = vpop.f32.mrb[0].mxu0
      %v2216 = vpop.f32.mrb[0].mxu0
      %v2217 = vadd.f32 0.0, %v2216
      %v2218 = vpop.f32.mrb[0].mxu0
      %2219 = vmatprep.mubr.bf16.mxu0 %v879
      %2220 = vmatmul.mubr.bf16.gmra.mrb[0].mxu0 %v878
      %v2221 = vpop.f32.mrb[0].mxu0
      %v2222 = vadd.f32 0.0, %v2221
      %v2223 = vpop.f32.mrb[0].mxu0
      %v2224 = vpop.f32.mrb[0].mxu0
      %v2225 = vadd.f32 0.0, %v2224
      %v2226 = vpop.f32.mrb[0].mxu0
      %2227 = vmatprep.mubr.bf16.mxu0 %v882
      %2228 = vmatmul.mubr.bf16.gmra.mrb[0].mxu0 %v881
      %v2229 = vpop.f32.mrb[0].mxu0
      %v2230 = vadd.f32 0.0, %v2229
      %v2231 = vpop.f32.mrb[0].mxu0
      %v2232 = vpop.f32.mrb[0].mxu0
      %v2233 = vadd.f32 0.0, %v2232
      %v2234 = vpop.f32.mrb[0].mxu0
      %2235 = vmatprep.mubr.bf16.mxu0 %v885
      %2236 = vmatmul.mubr.bf16.gmra.mrb[0].mxu0 %v884
      %v2237 = vpop.f32.mrb[0].mxu0
      %v2238 = vadd.f32 0.0, %v2237
      %v2239 = vpop.f32.mrb[0].mxu0
      %v2240 = vpop.f32.mrb[0].mxu0
      %v2241 = vadd.f32 0.0, %v2240
      %v2242 = vpop.f32.mrb[0].mxu0
      %2243 = vmatprep.mubr.bf16.mxu0 %v888
      %2244 = vmatmul.mubr.bf16.gmra.mrb[0].mxu0 %v887
      %v2245 = vpop.f32.mrb[0].mxu0
      %v2246 = vadd.f32 0.0, %v2245
      %v2247 = vpop.f32.mrb[0].mxu0
      %v2248 = vpop.f32.mrb[0].mxu0
      %v2249 = vadd.f32 0.0, %v2248
      %v2250 = vpop.f32.mrb[0].mxu0
      %2251 = vmatprep.mubr.bf16.mxu0 %v891
      %2252 = vmatmul.mubr.bf16.gmra.mrb[0].mxu0 %v890
      %v2253 = vpop.f32.mrb[0].mxu0
      %v2254 = vadd.f32 0.0, %v2253
      %v2255 = vpop.f32.mrb[0].mxu0
      %v2256 = vpop.f32.mrb[0].mxu0
      %v2257 = vadd.f32 0.0, %v2256
      %v2258 = vpop.f32.mrb[0].mxu0
      %2259 = vmatprep.mubr.bf16.mxu0 %v894
      %2260 = vmatmul.mubr.bf16.gmra.mrb[0].mxu0 %v893
      %v2261 = vpop.f32.mrb[0].mxu0
      %v2262 = vadd.f32 0.0, %v2261
      %v2263 = vpop.f32.mrb[0].mxu0
      %v2264 = vpop.f32.mrb[0].mxu0
      %v2265 = vadd.f32 0.0, %v2264
      %v2266 = vpop.f32.mrb[0].mxu0
      %2267 = vmatprep.mubr.bf16.mxu0 %v897
      %2268 = vmatmul.mubr.bf16.gmra.mrb[0].mxu0 %v896
      %v2269 = vpop.f32.mrb[0].mxu0
      %v2270 = vadd.f32 0.0, %v2269
      %v2271 = vpop.f32.mrb[0].mxu0
      %v2272 = vpop.f32.mrb[0].mxu0
      %v2273 = vadd.f32 0.0, %v2272
      %v2274 = vpop.f32.mrb[0].mxu0
      %2275 = vmatprep.mubr.bf16.mxu0 %v900
      %2276 = vmatmul.mubr.bf16.gmra.mrb[0].mxu0 %v899
      %v2277 = vpop.f32.mrb[0].mxu0
      %v2278 = vadd.f32 0.0, %v2277
      %v2279 = vpop.f32.mrb[0].mxu0
      %v2280 = vpop.f32.mrb[0].mxu0
      %v2281 = vadd.f32 0.0, %v2280
      %v2282 = vpop.f32.mrb[0].mxu0
      %2283 = vmatprep.mubr.bf16.mxu0 %v903
      %2284 = vmatmul.mubr.bf16.gmra.mrb[0].mxu0 %v902
      %v2285 = vpop.f32.mrb[0].mxu0
      %v2286 = vadd.f32 0.0, %v2285
      %v2287 = vpop.f32.mrb[0].mxu0
      %v2288 = vpop.f32.mrb[0].mxu0
      %v2289 = vadd.f32 0.0, %v2288
      %v2290 = vpop.f32.mrb[0].mxu0
      %2291 = vmatprep.mubr.bf16.mxu0 %v906
      %2292 = vmatmul.mubr.bf16.gmra.mrb[0].mxu0 %v905
      %v2293 = vpop.f32.mrb[0].mxu0
      %v2294 = vadd.f32 0.0, %v2293
      %v2295 = vpop.f32.mrb[0].mxu0
      %v2296 = vpop.f32.mrb[0].mxu0
      %v2297 = vadd.f32 0.0, %v2296
      %v2298 = vpop.f32.mrb[0].mxu0
      %2299 = vmatprep.mubr.bf16.mxu0 %v909
      %2300 = vmatmul.mubr.bf16.gmra.mrb[0].mxu0 %v908
      %v2301 = vpop.f32.mrb[0].mxu0
      %v2302 = vadd.f32 0.0, %v2301
      %v2303 = vpop.f32.mrb[0].mxu0
      %v2304 = vpop.f32.mrb[0].mxu0
      %v2305 = vadd.f32 0.0, %v2304
      %v2306 = vpop.f32.mrb[0].mxu0
      %2307 = vmatprep.mubr.bf16.mxu0 %v912
      %2308 = vmatmul.mubr.bf16.gmra.mrb[0].mxu0 %v911
      %v2309 = vpop.f32.mrb[0].mxu0
      %v2310 = vadd.f32 0.0, %v2309
      %v2311 = vpop.f32.mrb[0].mxu0
      %v2312 = vpop.f32.mrb[0].mxu0
      %v2313 = vadd.f32 0.0, %v2312
      %v2314 = vpop.f32.mrb[0].mxu0
      %2315 = vmatprep.mubr.bf16.mxu0 %v915
      %2316 = vmatmul.mubr.bf16.gmra.mrb[0].mxu0 %v914
      %v2317 = vpop.f32.mrb[0].mxu0
      %v2318 = vadd.f32 0.0, %v2317
      %v2319 = vpop.f32.mrb[0].mxu0
      %v2320 = vpop.f32.mrb[0].mxu0
      %v2321 = vadd.f32 0.0, %v2320
      %v2322 = vpop.f32.mrb[0].mxu0
      %2323 = vmatprep.mubr.bf16.mxu0 %v983
      %2324 = vmatmul.mubr.bf16.gmra.mrb[0].mxu0 %v982
      %v2325 = vpop.f32.mrb[0].mxu0
      %v2326 = vadd.f32 0.0, %v2325
      %v2327 = vpop.f32.mrb[0].mxu0
      %v2328 = vpop.f32.mrb[0].mxu0
      %v2329 = vadd.f32 0.0, %v2328
      %v2330 = vpop.f32.mrb[0].mxu0
      %2331 = vmatprep.mubr.bf16.mxu0 %v1984
      %2332 = vmatmul.mubr.bf16.gmra.mrb[0].mxu0 %v1983
      %v2333 = vpop.f32.mrb[0].mxu0
      %v2334 = vadd.f32 0.0, %v2333
      %v2335 = vpop.f32.mrb[0].mxu0
      %v2336 = vpop.f32.mrb[0].mxu0
      %v2337 = vadd.f32 0.0, %v2336
      %v2338 = vpop.f32.mrb[0].mxu0
      %2339 = vdwg.mxu0
      %2340 = vmatprep.subr.bf16.mxu0 0
      %2341 = vmatpush1.bf16.msra.mxu0 %v2147
      %2342 = vmatprep.subr.bf16.mxu0 0
      %2343 = vmatpush1.bf16.msra.mxu0 %v2148
      %2344 = vmatprep.subr.bf16.mxu0 0
      %2345 = vmatpush1.bf16.msra.mxu0 %v2149
      %2346 = vmatprep.subr.bf16.mxu0 0
      %2347 = vmatpush1.bf16.msra.mxu0 %v2150
      %2348 = vmatprep.subr.bf16.mxu0 0
      %2349 = vmatpush1.bf16.msra.mxu0 %v2151
      %2350 = vmatprep.subr.bf16.mxu0 0
      %2351 = vmatpush1.bf16.msra.mxu0 %v2152
      %2352 = vmatprep.subr.bf16.mxu0 0
      %2353 = vmatpush1.bf16.msra.mxu0 %v2153
      %2354 = vmatprep.subr.bf16.mxu0 0
      %2355 = vmatpush1.bf16.msra.mxu0 %v2154
      %2356 = vmatprep.subr.bf16.mxu0 0
      %2357 = vmatpush1.bf16.msra.mxu0 0
      %2358 = vmatprep.subr.bf16.mxu0 0
      %2359 = vmatpush1.bf16.msra.mxu0 0
      %2360 = vmatprep.subr.bf16.mxu0 0
      %2361 = vmatpush1.bf16.msra.mxu0 0
      %2362 = vmatprep.subr.bf16.mxu0 0
      %2363 = vmatpush1.bf16.msra.mxu0 0
      %2364 = vmatprep.subr.bf16.mxu0 0
      %2365 = vmatpush1.bf16.msra.mxu0 0
      %2366 = vmatprep.subr.bf16.mxu0 0
      %2367 = vmatpush1.bf16.msra.mxu0 0
      %2368 = vmatprep.subr.bf16.mxu0 0
      %2369 = vmatpush1.bf16.msra.mxu0 0
      %2370 = vmatprep.subr.bf16.mxu0 0
      %2371 = vmatpush1.bf16.msra.mxu0 0
      %2372 = vmatprep.mubr.bf16.mxu0 0
      %2373 = vmatmul.mubr.bf16.gmra.mrb[0].mxu0 %v877
      %v2374 = vpop.f32.mrb[0].mxu0
      %v2375 = vadd.f32 %v2214, %v2374
      %v2376 = vpop.f32.mrb[0].mxu0
      %v2377 = vpop.f32.mrb[0].mxu0
      %v2378 = vadd.f32 %v2217, %v2377
      %v2379 = vpop.f32.mrb[0].mxu0
      %2380 = vmatprep.mubr.bf16.mxu0 0
      %2381 = vmatmul.mubr.bf16.gmra.mrb[0].mxu0 %v880
      %v2382 = vpop.f32.mrb[0].mxu0
      %v2383 = vadd.f32 %v2222, %v2382
      %v2384 = vpop.f32.mrb[0].mxu0
      %v2385 = vpop.f32.mrb[0].mxu0
      %v2386 = vadd.f32 %v2225, %v2385
      %v2387 = vpop.f32.mrb[0].mxu0
      %2388 = vmatprep.mubr.bf16.mxu0 0
      %2389 = vmatmul.mubr.bf16.gmra.mrb[0].mxu0 %v883
      %v2390 = vpop.f32.mrb[0].mxu0
      %v2391 = vadd.f32 %v2230, %v2390
      %v2392 = vpop.f32.mrb[0].mxu0
      %v2393 = vpop.f32.mrb[0].mxu0
      %v2394 = vadd.f32 %v2233, %v2393
      %v2395 = vpop.f32.mrb[0].mxu0
      %2396 = vmatprep.mubr.bf16.mxu0 0
      %2397 = vmatmul.mubr.bf16.gmra.mrb[0].mxu0 %v886
      %v2398 = vpop.f32.mrb[0].mxu0
      %v2399 = vadd.f32 %v2238, %v2398
      %v2400 = vpop.f32.mrb[0].mxu0
      %v2401 = vpop.f32.mrb[0].mxu0
      %v2402 = vadd.f32 %v2241, %v2401
      %v2403 = vpop.f32.mrb[0].mxu0
      %2404 = vmatprep.mubr.bf16.mxu0 0
      %2405 = vmatmul.mubr.bf16.gmra.mrb[0].mxu0 %v889
      %v2406 = vpop.f32.mrb[0].mxu0
      %v2407 = vadd.f32 %v2246, %v2406
      %v2408 = vpop.f32.mrb[0].mxu0
      %v2409 = vpop.f32.mrb[0].mxu0
      %v2410 = vadd.f32 %v2249, %v2409
      %v2411 = vpop.f32.mrb[0].mxu0
      %2412 = vmatprep.mubr.bf16.mxu0 0
      %2413 = vmatmul.mubr.bf16.gmra.mrb[0].mxu0 %v892
      %v2414 = vpop.f32.mrb[0].mxu0
      %v2415 = vadd.f32 %v2254, %v2414
      %v2416 = vpop.f32.mrb[0].mxu0
      %v2417 = vpop.f32.mrb[0].mxu0
      %v2418 = vadd.f32 %v2257, %v2417
      %v2419 = vpop.f32.mrb[0].mxu0
      %2420 = vmatprep.mubr.bf16.mxu0 0
      %2421 = vmatmul.mubr.bf16.gmra.mrb[0].mxu0 %v895
      %v2422 = vpop.f32.mrb[0].mxu0
      %v2423 = vadd.f32 %v2262, %v2422
      %v2424 = vpop.f32.mrb[0].mxu0
      %v2425 = vpop.f32.mrb[0].mxu0
      %v2426 = vadd.f32 %v2265, %v2425
      %v2427 = vpop.f32.mrb[0].mxu0
      %2428 = vmatprep.mubr.bf16.mxu0 0
      %2429 = vmatmul.mubr.bf16.gmra.mrb[0].mxu0 %v898
      %v2430 = vpop.f32.mrb[0].mxu0
      %v2431 = vadd.f32 %v2270, %v2430
      %v2432 = vpop.f32.mrb[0].mxu0
      %v2433 = vpop.f32.mrb[0].mxu0
      %v2434 = vadd.f32 %v2273, %v2433
      %v2435 = vpop.f32.mrb[0].mxu0
      %2436 = vmatprep.mubr.bf16.mxu0 0
      %2437 = vmatmul.mubr.bf16.gmra.mrb[0].mxu0 %v901
      %v2438 = vpop.f32.mrb[0].mxu0
      %v2439 = vadd.f32 %v2278, %v2438
      %v2440 = vpop.f32.mrb[0].mxu0
      %v2441 = vpop.f32.mrb[0].mxu0
      %v2442 = vadd.f32 %v2281, %v2441
      %v2443 = vpop.f32.mrb[0].mxu0
      %2444 = vmatprep.mubr.bf16.mxu0 0
      %2445 = vmatmul.mubr.bf16.gmra.mrb[0].mxu0 %v904
      %v2446 = vpop.f32.mrb[0].mxu0
      %v2447 = vadd.f32 %v2286, %v2446
      %v2448 = vpop.f32.mrb[0].mxu0
      %v2449 = vpop.f32.mrb[0].mxu0
      %v2450 = vadd.f32 %v2289, %v2449
      %v2451 = vpop.f32.mrb[0].mxu0
      %2452 = vmatprep.mubr.bf16.mxu0 0
      %2453 = vmatmul.mubr.bf16.gmra.mrb[0].mxu0 %v907
      %v2454 = vpop.f32.mrb[0].mxu0
      %v2455 = vadd.f32 %v2294, %v2454
      %v2456 = vpop.f32.mrb[0].mxu0
      %v2457 = vpop.f32.mrb[0].mxu0
      %v2458 = vadd.f32 %v2297, %v2457
      %v2459 = vpop.f32.mrb[0].mxu0
      %2460 = vmatprep.mubr.bf16.mxu0 0
      %2461 = vmatmul.mubr.bf16.gmra.mrb[0].mxu0 %v910
      %v2462 = vpop.f32.mrb[0].mxu0
      %v2463 = vadd.f32 %v2302, %v2462
      %v2464 = vpop.f32.mrb[0].mxu0
      %v2465 = vpop.f32.mrb[0].mxu0
      %v2466 = vadd.f32 %v2305, %v2465
      %v2467 = vpop.f32.mrb[0].mxu0
      %2468 = vmatprep.mubr.bf16.mxu0 0
      %2469 = vmatmul.mubr.bf16.gmra.mrb[0].mxu0 %v913
      %v2470 = vpop.f32.mrb[0].mxu0
      %v2471 = vadd.f32 %v2310, %v2470
      %v2472 = vpop.f32.mrb[0].mxu0
      %v2473 = vpop.f32.mrb[0].mxu0
      %v2474 = vadd.f32 %v2313, %v2473
      %v2475 = vpop.f32.mrb[0].mxu0
      %2476 = vmatprep.mubr.bf16.mxu0 0
      %2477 = vmatmul.mubr.bf16.gmra.mrb[0].mxu0 %v916
      %v2478 = vpop.f32.mrb[0].mxu0
      %v2479 = vadd.f32 %v2318, %v2478
      %v2480 = vpop.f32.mrb[0].mxu0
      %v2481 = vpop.f32.mrb[0].mxu0
      %v2482 = vadd.f32 %v2321, %v2481
      %v2483 = vpop.f32.mrb[0].mxu0
      %2484 = vmatprep.mubr.bf16.mxu0 0
      %2485 = vmatmul.mubr.bf16.gmra.mrb[0].mxu0 %v984
      %v2486 = vpop.f32.mrb[0].mxu0
      %v2487 = vadd.f32 %v2326, %v2486
      %v2488 = vpop.f32.mrb[0].mxu0
      %v2489 = vpop.f32.mrb[0].mxu0
      %v2490 = vadd.f32 %v2329, %v2489
      %v2491 = vpop.f32.mrb[0].mxu0
      %2492 = vmatprep.mubr.bf16.mxu0 0
      %2493 = vmatmul.mubr.bf16.gmra.mrb[0].mxu0 %v1985
      %v2494 = vpop.f32.mrb[0].mxu0
      %v2495 = vadd.f32 %v2334, %v2494
      %v2496 = vpop.f32.mrb[0].mxu0
      %v2497 = vpop.f32.mrb[0].mxu0
      %v2498 = vadd.f32 %v2337, %v2497
      %v2499 = vpop.f32.mrb[0].mxu0
      %2500 = vdwg.mxu0
      %v2501 = vadd.f32 %v1840, %v2375
      %v2502 = vadd.f32 %v1843, %v2378
      %v2503 = vadd.f32 %v1848, %v2383
      %v2504 = vadd.f32 %v1851, %v2386
      %v2505 = vadd.f32 %v1856, %v2391
      %v2506 = vadd.f32 %v1859, %v2394
      %v2507 = vadd.f32 %v1864, %v2399
      %v2508 = vadd.f32 %v1867, %v2402
      %v2509 = vadd.f32 %v1872, %v2407
      %v2510 = vadd.f32 %v1875, %v2410
      %v2511 = vadd.f32 %v1880, %v2415
      %v2512 = vadd.f32 %v1883, %v2418
      %v2513 = vadd.f32 %v1888, %v2423
      %v2514 = vadd.f32 %v1891, %v2426
      %v2515 = vadd.f32 %v1896, %v2431
      %v2516 = vadd.f32 %v1899, %v2434
      %v2517 = vadd.f32 %v1904, %v2439
      %v2518 = vadd.f32 %v1907, %v2442
      %v2519 = vadd.f32 %v1912, %v2447
      %v2520 = vadd.f32 %v1915, %v2450
      %v2521 = vadd.f32 %v1920, %v2455
      %v2522 = vadd.f32 %v1923, %v2458
      %v2523 = vadd.f32 %v1928, %v2463
      %v2524 = vadd.f32 %v1931, %v2466
      %v2525 = vadd.f32 %v1936, %v2471
      %v2526 = vadd.f32 %v1939, %v2474
      %v2527 = vadd.f32 %v1944, %v2479
      %v2528 = vadd.f32 %v1947, %v2482
      %v2529 = vadd.f32 %v1952, %v2487
      %v2530 = vadd.f32 %v1955, %v2490
      %v2531 = vadd.f32 %v1960, %v2495
      %v2532 = vadd.f32 %v1963, %v2498
      %v2533 = vld [vmem:[%s2] sm:$0x1]
      %v2535 = vlaneseq
      %v2536 = vshrl.u32 %v2535, 7
      %v2537 = vsub.s32 0, %v2536
      %v2538 = vrot.slane %v2533, %v2537
      %v2540 = vadd.f32 %v2501, %v2538
      %v2541 = vadd.f32 %v2502, %v2538
      %v2542 = vadd.f32 %v2503, %v2538
      %v2543 = vadd.f32 %v2504, %v2538
      %v2544 = vadd.f32 %v2505, %v2538
      %v2545 = vadd.f32 %v2506, %v2538
      %v2546 = vadd.f32 %v2507, %v2538
      %v2547 = vadd.f32 %v2508, %v2538
      %v2548 = vadd.f32 %v2509, %v2538
      %v2549 = vadd.f32 %v2510, %v2538
      %v2550 = vadd.f32 %v2511, %v2538
      %v2551 = vadd.f32 %v2512, %v2538
      %v2552 = vadd.f32 %v2513, %v2538
      %v2553 = vadd.f32 %v2514, %v2538
      %v2554 = vadd.f32 %v2515, %v2538
      %v2555 = vadd.f32 %v2516, %v2538
      %v2556 = vadd.f32 %v2517, %v2538
      %v2557 = vadd.f32 %v2518, %v2538
      %v2558 = vadd.f32 %v2519, %v2538
      %v2559 = vadd.f32 %v2520, %v2538
      %v2560 = vadd.f32 %v2521, %v2538
      %v2561 = vadd.f32 %v2522, %v2538
      %v2562 = vadd.f32 %v2523, %v2538
      %v2563 = vadd.f32 %v2524, %v2538
      %v2564 = vadd.f32 %v2525, %v2538
      %v2565 = vadd.f32 %v2526, %v2538
      %v2566 = vadd.f32 %v2527, %v2538
      %v2567 = vadd.f32 %v2528, %v2538
      %v2568 = vadd.f32 %v2529, %v2538
      %v2569 = vadd.f32 %v2530, %v2538
      %v2570 = vadd.f32 %v2531, %v2538
      %v2571 = vadd.f32 %v2532, %v2538
      %v2572 = vadd.f32 %v2540, %v2541
      %v2573 = vadd.f32 %v2572, %v2542
      %v2574 = vadd.f32 %v2573, %v2543
      %v2575 = vadd.f32 %v2574, %v2544
      %v2576 = vadd.f32 %v2575, %v2545
      %v2577 = vadd.f32 %v2576, %v2546
      %v2578 = vadd.f32 %v2577, %v2547
      %v2579 = vadd.f32 %v2578, %v2548
      %v2580 = vadd.f32 %v2579, %v2549
      %v2581 = vadd.f32 %v2580, %v2550
      %v2582 = vadd.f32 %v2581, %v2551
      %v2583 = vadd.f32 %v2582, %v2552
      %v2584 = vadd.f32 %v2583, %v2553
      %v2585 = vadd.f32 %v2584, %v2554
      %v2586 = vadd.f32 %v2585, %v2555
      %v2587 = vadd.f32 %v2586, %v2556
      %v2588 = vadd.f32 %v2587, %v2557
      %v2589 = vadd.f32 %v2588, %v2558
      %v2590 = vadd.f32 %v2589, %v2559
      %v2591 = vadd.f32 %v2590, %v2560
      %v2592 = vadd.f32 %v2591, %v2561
      %v2593 = vadd.f32 %v2592, %v2562
      %v2594 = vadd.f32 %v2593, %v2563
      %v2595 = vadd.f32 %v2594, %v2564
      %v2596 = vadd.f32 %v2595, %v2565
      %v2597 = vadd.f32 %v2596, %v2566
      %v2598 = vadd.f32 %v2597, %v2567
      %v2599 = vadd.f32 %v2598, %v2568
      %v2600 = vadd.f32 %v2599, %v2569
      %v2601 = vadd.f32 %v2600, %v2570
      %v2602 = vadd.f32 %v2601, %v2571
      %v2603 = vrot.slane %v2602, 4
      %v2604 = vadd.f32 %v2602, %v2603
      %v2605 = vrot.slane %v2604, 2
      %v2606 = vadd.f32 %v2604, %v2605
      %v2607 = vrot.slane %v2606, 1
      %v2608 = vadd.f32 %v2606, %v2607
      %v2609 = vmul.f32 %v2540, %v2540
      %v2610 = vmul.f32 %v2541, %v2541
      %v2611 = vmul.f32 %v2542, %v2542
      %v2612 = vmul.f32 %v2543, %v2543
      %v2613 = vmul.f32 %v2544, %v2544
      %v2614 = vmul.f32 %v2545, %v2545
      %v2615 = vmul.f32 %v2546, %v2546
      %v2616 = vmul.f32 %v2547, %v2547
      %v2617 = vmul.f32 %v2548, %v2548
      %v2618 = vmul.f32 %v2549, %v2549
      %v2619 = vmul.f32 %v2550, %v2550
      %v2620 = vmul.f32 %v2551, %v2551
      %v2621 = vmul.f32 %v2552, %v2552
      %v2622 = vmul.f32 %v2553, %v2553
      %v2623 = vmul.f32 %v2554, %v2554
      %v2624 = vmul.f32 %v2555, %v2555
      %v2625 = vmul.f32 %v2556, %v2556
      %v2626 = vmul.f32 %v2557, %v2557
      %v2627 = vmul.f32 %v2558, %v2558
      %v2628 = vmul.f32 %v2559, %v2559
      %v2629 = vmul.f32 %v2560, %v2560
      %v2630 = vmul.f32 %v2561, %v2561
      %v2631 = vmul.f32 %v2562, %v2562
      %v2632 = vmul.f32 %v2563, %v2563
      %v2633 = vmul.f32 %v2564, %v2564
      %v2634 = vmul.f32 %v2565, %v2565
      %v2635 = vmul.f32 %v2566, %v2566
      %v2636 = vmul.f32 %v2567, %v2567
      %v2637 = vmul.f32 %v2568, %v2568
      %v2638 = vmul.f32 %v2569, %v2569
      %v2639 = vmul.f32 %v2570, %v2570
      %v2640 = vmul.f32 %v2571, %v2571
      %v2641 = vadd.f32 %v2609, %v2610
      %v2642 = vadd.f32 %v2641, %v2611
      %v2643 = vadd.f32 %v2642, %v2612
      %v2644 = vadd.f32 %v2643, %v2613
      %v2645 = vadd.f32 %v2644, %v2614
      %v2646 = vadd.f32 %v2645, %v2615
      %v2647 = vadd.f32 %v2646, %v2616
      %v2648 = vadd.f32 %v2647, %v2617
      %v2649 = vadd.f32 %v2648, %v2618
      %v2650 = vadd.f32 %v2649, %v2619
      %v2651 = vadd.f32 %v2650, %v2620
      %v2652 = vadd.f32 %v2651, %v2621
      %v2653 = vadd.f32 %v2652, %v2622
      %v2654 = vadd.f32 %v2653, %v2623
      %v2655 = vadd.f32 %v2654, %v2624
      %v2656 = vadd.f32 %v2655, %v2625
      %v2657 = vadd.f32 %v2656, %v2626
      %v2658 = vadd.f32 %v2657, %v2627
      %v2659 = vadd.f32 %v2658, %v2628
      %v2660 = vadd.f32 %v2659, %v2629
      %v2661 = vadd.f32 %v2660, %v2630
      %v2662 = vadd.f32 %v2661, %v2631
      %v2663 = vadd.f32 %v2662, %v2632
      %v2664 = vadd.f32 %v2663, %v2633
      %v2665 = vadd.f32 %v2664, %v2634
      %v2666 = vadd.f32 %v2665, %v2635
      %v2667 = vadd.f32 %v2666, %v2636
      %v2668 = vadd.f32 %v2667, %v2637
      %v2669 = vadd.f32 %v2668, %v2638
      %v2670 = vadd.f32 %v2669, %v2639
      %v2671 = vadd.f32 %v2670, %v2640
      %v2672 = vrot.slane %v2671, 4
      %v2673 = vadd.f32 %v2671, %v2672
      %v2674 = vrot.slane %v2673, 2
      %v2675 = vadd.f32 %v2673, %v2674
      %v2676 = vrot.slane %v2675, 1
      %v2677 = vadd.f32 %v2675, %v2676
      %vm2678 = vcmask 1040384
      %v2679 = vsel %vm2678, %v2608, %v2677
      %2680 = vst [vmem:[%s262] sm:$0x3] %v2679
      %v2681 = vpack.c.bf16 %v2541, %v2540
      %v2682 = vpack.c.bf16 %v2543, %v2542
      %v2683 = vpack.c.bf16 %v2545, %v2544
      %v2684 = vpack.c.bf16 %v2547, %v2546
      %v2685 = vpack.c.bf16 %v2549, %v2548
      %v2686 = vpack.c.bf16 %v2551, %v2550
      %v2687 = vpack.c.bf16 %v2553, %v2552
      %v2688 = vpack.c.bf16 %v2555, %v2554
      %v2689 = vpack.c.bf16 %v2557, %v2556
      %v2690 = vpack.c.bf16 %v2559, %v2558
      %v2691 = vpack.c.bf16 %v2561, %v2560
      %v2692 = vpack.c.bf16 %v2563, %v2562
      %v2693 = vpack.c.bf16 %v2565, %v2564
      %v2694 = vpack.c.bf16 %v2567, %v2566
      %v2695 = vpack.c.bf16 %v2569, %v2568
      %v2696 = vpack.c.bf16 %v2571, %v2570
      %v2713 = vunpack.c.l.b16 %v2681
      %v2714 = vunpack.c.h.b16 %v2681
      %v2715 = vunpack.c.l.b16 %v2682
      %v2716 = vunpack.c.h.b16 %v2682
      %v2717 = vunpack.c.l.b16 %v2683
      %v2718 = vunpack.c.h.b16 %v2683
      %v2719 = vunpack.c.l.b16 %v2684
      %v2720 = vunpack.c.h.b16 %v2684
      %v2721 = vunpack.c.l.b16 %v2685
      %v2722 = vunpack.c.h.b16 %v2685
      %v2723 = vunpack.c.l.b16 %v2686
      %v2724 = vunpack.c.h.b16 %v2686
      %v2725 = vunpack.c.l.b16 %v2687
      %v2726 = vunpack.c.h.b16 %v2687
      %v2727 = vunpack.c.l.b16 %v2688
      %v2728 = vunpack.c.h.b16 %v2688
      %v2729 = vunpack.c.l.b16 %v2689
      %v2730 = vunpack.c.h.b16 %v2689
      %v2731 = vunpack.c.l.b16 %v2690
      %v2732 = vunpack.c.h.b16 %v2690
      %v2733 = vunpack.c.l.b16 %v2691
      %v2734 = vunpack.c.h.b16 %v2691
      %v2735 = vunpack.c.l.b16 %v2692
      %v2736 = vunpack.c.h.b16 %v2692
      %v2737 = vunpack.c.l.b16 %v2693
      %v2738 = vunpack.c.h.b16 %v2693
      %v2739 = vunpack.c.l.b16 %v2694
      %v2740 = vunpack.c.h.b16 %v2694
      %v2741 = vunpack.c.l.b16 %v2695
      %v2742 = vunpack.c.h.b16 %v2695
      %v2743 = vunpack.c.l.b16 %v2696
      %v2744 = vunpack.c.h.b16 %v2696
      %v2745 = vpack.c.b16 %v2713, %v2713
      %v2746 = vpack.c.b16 %v2714, %v2714
      %v2747 = vpack.c.b16 %v2715, %v2715
      %v2748 = vpack.c.b16 %v2716, %v2716
      %v2749 = vpack.c.b16 %v2717, %v2717
      %v2750 = vpack.c.b16 %v2718, %v2718
      %v2751 = vpack.c.b16 %v2719, %v2719
      %v2752 = vpack.c.b16 %v2720, %v2720
      %v2753 = vpack.c.b16 %v2721, %v2721
      %v2754 = vpack.c.b16 %v2722, %v2722
      %v2755 = vpack.c.b16 %v2723, %v2723
      %v2756 = vpack.c.b16 %v2724, %v2724
      %v2757 = vpack.c.b16 %v2725, %v2725
      %v2758 = vpack.c.b16 %v2726, %v2726
      %v2759 = vpack.c.b16 %v2727, %v2727
      %v2760 = vpack.c.b16 %v2728, %v2728
      %v2761 = vpack.c.b16 %v2729, %v2729
      %v2762 = vpack.c.b16 %v2730, %v2730
      %v2763 = vpack.c.b16 %v2731, %v2731
      %v2764 = vpack.c.b16 %v2732, %v2732
      %v2765 = vpack.c.b16 %v2733, %v2733
      %v2766 = vpack.c.b16 %v2734, %v2734
      %v2767 = vpack.c.b16 %v2735, %v2735
      %v2768 = vpack.c.b16 %v2736, %v2736
      %v2769 = vpack.c.b16 %v2737, %v2737
      %v2770 = vpack.c.b16 %v2738, %v2738
      %v2771 = vpack.c.b16 %v2739, %v2739
      %v2772 = vpack.c.b16 %v2740, %v2740
      %v2773 = vpack.c.b16 %v2741, %v2741
      %v2774 = vpack.c.b16 %v2742, %v2742
      %v2775 = vpack.c.b16 %v2743, %v2743
      %v2776 = vpack.c.b16 %v2744, %v2744
      %2809 = vst [vmem:[%s258] sm:$0xf] %v2745
      %2810 = vst [vmem:[%s258 + $0x4] sm:$0xf] %v2746
      %2811 = vst [vmem:[%s258 + $0x8] sm:$0xf] %v2747
      %2812 = vst [vmem:[%s258 + $0xc] sm:$0xf] %v2748
      %2813 = vst [vmem:[%s258 + $0x10] sm:$0xf] %v2749
      %2814 = vst [vmem:[%s258 + $0x14] sm:$0xf] %v2750
      %2815 = vst [vmem:[%s258 + $0x18] sm:$0xf] %v2751
      %2816 = vst [vmem:[%s258 + $0x1c] sm:$0xf] %v2752
      %2817 = vst [vmem:[%s258 + $0x20] sm:$0xf] %v2753
      %2818 = vst [vmem:[%s258 + $0x24] sm:$0xf] %v2754
      %2819 = vst [vmem:[%s258 + $0x28] sm:$0xf] %v2755
      %2820 = vst [vmem:[%s258 + $0x2c] sm:$0xf] %v2756
      %2821 = vst [vmem:[%s258 + $0x30] sm:$0xf] %v2757
      %2822 = vst [vmem:[%s258 + $0x34] sm:$0xf] %v2758
      %2823 = vst [vmem:[%s258 + $0x38] sm:$0xf] %v2759
      %2824 = vst [vmem:[%s258 + $0x3c] sm:$0xf] %v2760
      %2825 = vst [vmem:[%s258 + $0x40] sm:$0xf] %v2761
      %2826 = vst [vmem:[%s258 + $0x44] sm:$0xf] %v2762
      %2827 = vst [vmem:[%s258 + $0x48] sm:$0xf] %v2763
      %2828 = vst [vmem:[%s258 + $0x4c] sm:$0xf] %v2764
      %2829 = vst [vmem:[%s258 + $0x50] sm:$0xf] %v2765
      %2830 = vst [vmem:[%s258 + $0x54] sm:$0xf] %v2766
      %2831 = vst [vmem:[%s258 + $0x58] sm:$0xf] %v2767
      %2832 = vst [vmem:[%s258 + $0x5c] sm:$0xf] %v2768
      %2833 = vst [vmem:[%s258 + $0x60] sm:$0xf] %v2769
      %2834 = vst [vmem:[%s258 + $0x64] sm:$0xf] %v2770
      %2835 = vst [vmem:[%s258 + $0x68] sm:$0xf] %v2771
      %2836 = vst [vmem:[%s258 + $0x6c] sm:$0xf] %v2772
      %2837 = vst [vmem:[%s258 + $0x70] sm:$0xf] %v2773
      %2838 = vst [vmem:[%s258 + $0x74] sm:$0xf] %v2774
      %2839 = vst [vmem:[%s258 + $0x78] sm:$0xf] %v2775
      %2840 = vst [vmem:[%s258 + $0x7c] sm:$0xf] %v2776
      %p2841 = scmp.lt.s32.totalorder %s18, 1
      %s2842 = scalar_select %p2841, %s18, 1
      %s2843 = smul.addr %s2842, 32
      %s2844 = smul.addr %s2843, 4
      %s2845 = scalar_lea.vmem %s5, %s2844
      %p2846 = scmp.lt.s32.totalorder %s18, 1
      %s2847 = scalar_select %p2846, %s18, 1
      %s2848 = smul.addr %s2847, 2
      %s2849 = scalar_lea.vmem %s6, %s2848
      // Predicated region
      $region41: #{residual_block_forward.4} parent=39 // pred_check
        %p2850 = pneg %p146
      $region42: #{residual_block_forward.4} parent=39 // pred_check_branch
        %2852 = sbr.rel (%p2850) target = $region44
      $region43: #{residual_block_forward.4} parent=39 // pred_region
        _
      $region44: #{residual_block_forward.4} parent=39 // pred_fallthru
        _
      // Predicated region
      $region45: #{residual_block_forward.4} parent=39 // pred_check
        %p2853 = pneg %p172
      $region46: #{residual_block_forward.4} parent=39 // pred_check_branch
        %2855 = sbr.rel (%p2853) target = $region48
      $region47: #{residual_block_forward.4} parent=39 // pred_region
        _
      $region48: #{residual_block_forward.4} parent=39 // pred_fallthru
        _
    $region40: #{residual_block_forward.4} parent=5 // pred_fallthru
      _
    %p2856 = scmp.le.s32.totalorder 2, %s13
    // Predicated region
    $region49: #{residual_block_forward.4} parent=5 // pred_check
      %p2857 = pneg %p2856
    $region50: #{residual_block_forward.4} parent=5 // pred_check_branch
      %2859 = sbr.rel (%p2857) target = $region52
    $region51: #{residual_block_forward.4} parent=5 // pred_region
      %s2860 = ssub.s32 %s13, 2
      // Predicated region
      $region53: #{residual_block_forward.4} parent=51 // pred_check
        %p2861 = pneg %p152
      $region54: #{residual_block_forward.4} parent=51 // pred_check_branch
        %2863 = sbr.rel (%p2861) target = $region56
      $region55: #{residual_block_forward.4} parent=51 // pred_region
        %p2864 = scmp.lt.s32.totalorder %s19, 1
        %s2865 = scalar_select %p2864, %s19, 1
        %s2866 = smul.addr %s2865, 32
        %s2867 = smul.addr %s2866, 4
        %s2868 = scalar_lea.vmem %s5, %s2867
      $region56: #{residual_block_forward.4} parent=51 // pred_fallthru
        _
      // Predicated region
      $region57: #{residual_block_forward.4} parent=51 // pred_check
        %p2869 = pneg %p178
      $region58: #{residual_block_forward.4} parent=51 // pred_check_branch
        %2871 = sbr.rel (%p2869) target = $region60
      $region59: #{residual_block_forward.4} parent=51 // pred_region
        %p2872 = scmp.lt.s32.totalorder %s19, 1
        %s2873 = scalar_select %p2872, %s19, 1
        %s2874 = smul.addr %s2873, 2
        %s2875 = scalar_lea.vmem %s6, %s2874
      $region60: #{residual_block_forward.4} parent=51 // pred_fallthru
        _
    $region52: #{residual_block_forward.4} parent=5 // pred_fallthru
      _
  $region6: #{residual_block_forward.4} parent=0 // loop_footer
    %s17 = sadd.s32 1, %s13
  $region7: #{residual_block_forward.4} parent=0 // loop_footer_branch
    %12 = sbr.rel target = $region3
  $region8: #{residual_block_forward.4} parent=0 // loop_exit
    _

// kernel: residual_block_forward.3
$region0: #{residual_block_forward.3}
  #allocation0 [shape = 'u32[]', space=smem, size = 0x4, offset = 0x4, fixed_abs, tag = 'smem constant byte address 0x4 - core index']
  #allocation1 [shape = 'u32[144,128]{1,0:T(1,128)}', space=vmem, size = 0x12000, scoped, tag = 'internal scratch']
  %s0 = inlined_call_operand.vmem [shape: bf16[2,18,18,128], index: 0, kind: input, shape index: {}]
  %s1 = inlined_call_operand.vmem [shape: bf16[3,384,128], index: 1, kind: input, shape index: {}]
  %s2 = inlined_call_operand.vmem [shape: f32[1,128], index: 2, kind: input, shape index: {}]
  %s3 = inlined_call_operand.vmem [shape: bf16[2,18,18,128], index: 3, kind: output, shape index: {0}]
  %s4 = inlined_call_operand.vmem [shape: f32[2,2,128], index: 4, kind: output, shape index: {1}]
  %5 = xla_tuple %s3, %s4
  %s6 = sld [smem:[#allocation0]]
  $region53: #{residual_block_forward.3} parent=0
    _
  %s8 = ssub.s32 1, %s6
  %s9 = scalar_select 0, %s8, %s6
  loop: start=0, step=1, limit=4
  $region2: #{residual_block_forward.3} parent=0 // loop_pre_header
    _
  $region3: #{residual_block_forward.3} parent=0 // loop_header
    %s11 = sphi 0, %s15
    %p12 = scmp.ge.s32.totalorder %s11, 4
    %s21 = sphi 0, %s23
    %s24 = sphi 0, %s21
    %s25 = sphi 0, %s24
    %s41 = sphi 0, %s25
    %s45 = sphi 0, %s45
    %s47 = sphi 0, %s45
    %s48 = sphi 0, %s47
    %s62 = sphi 0, %s48
    %s66 = sphi 0, %s66
    %s68 = sphi 0, %s66
    %s69 = sphi 0, %s68
    %s83 = sphi 0, %s69
    %s89 = sphi 0, %s91
    %s92 = sphi 0, %s89
    %s93 = sphi 0, %s92
    %s109 = sphi 0, %s93
    %s115 = sphi 0, %s117
    %s118 = sphi 0, %s115
    %s119 = sphi 0, %s118
    %s135 = sphi 0, %s119
  $region4: #{residual_block_forward.3} parent=0 // loop_header_branch
    %14 = sbr.rel (%p12) target = $region8
  $region5: #{residual_block_forward.3} parent=0 // loop_body
    %s16 = ssub.s32 %s11, 1
    %s17 = ssub.s32 %s11, 2
    %s18 = sadd.s32 %s11, 1
    %s19 = ssub.s32 %s11, %s18
    %p20 = scmp.eq.s32.totalorder %s19, 0
    %s22 = sadd.s32 %s21, 1
    %s23 = scalar_select %p20, %s21, %s22
    %p26 = pneg %p20
    %p27 = scmp.eq.s32.totalorder %s11, 1
    %p28 = por %p26, %p27
    %p29 = scmp.ne.s32.totalorder %s21, %s24
    %p30 = scmp.eq.s32.totalorder %s11, 0
    %p31 = por %p29, %p30
    %p32 = scmp.ne.s32.totalorder %s21, %s24
    %p33 = scmp.eq.s32.totalorder %s16, 1
    %p34 = por %p32, %p33
    %p35 = scmp.ne.s32.totalorder %s24, %s25
    %p36 = scmp.eq.s32.totalorder %s16, 0
    %p37 = por %p35, %p36
    %p38 = scmp.ne.s32.totalorder %s24, %s25
    %p39 = scmp.eq.s32.totalorder %s17, 1
    %p40 = por %p38, %p39
    %p42 = scmp.ne.s32.totalorder %s25, %s41
    %p43 = scmp.eq.s32.totalorder %s17, 0
    %p44 = por %p42, %p43
    %s46 = sadd.s32 %s45, 1
    %p49 = scmp.eq.s32.totalorder %s11, 1
    %p50 = scmp.ne.s32.totalorder %s45, %s47
    %p51 = scmp.eq.s32.totalorder %s11, 0
    %p52 = por %p50, %p51
    %p53 = scmp.ne.s32.totalorder %s45, %s47
    %p54 = scmp.eq.s32.totalorder %s16, 1
    %p55 = por %p53, %p54
    %p56 = scmp.ne.s32.totalorder %s47, %s48
    %p57 = scmp.eq.s32.totalorder %s16, 0
    %p58 = por %p56, %p57
    %p59 = scmp.ne.s32.totalorder %s47, %s48
    %p60 = scmp.eq.s32.totalorder %s17, 1
    %p61 = por %p59, %p60
    %p63 = scmp.ne.s32.totalorder %s48, %s62
    %p64 = scmp.eq.s32.totalorder %s17, 0
    %p65 = por %p63, %p64
    %s67 = sadd.s32 %s66, 1
    %p70 = scmp.eq.s32.totalorder %s11, 1
    %p71 = scmp.ne.s32.totalorder %s66, %s68
    %p72 = scmp.eq.s32.totalorder %s11, 0
    %p73 = por %p71, %p72
    %p74 = scmp.ne.s32.totalorder %s66, %s68
    %p75 = scmp.eq.s32.totalorder %s16, 1
    %p76 = por %p74, %p75
    %p77 = scmp.ne.s32.totalorder %s68, %s69
    %p78 = scmp.eq.s32.totalorder %s16, 0
    %p79 = por %p77, %p78
    %p80 = scmp.ne.s32.totalorder %s68, %s69
    %p81 = scmp.eq.s32.totalorder %s17, 1
    %p82 = por %p80, %p81
    %p84 = scmp.ne.s32.totalorder %s69, %s83
    %p85 = scmp.eq.s32.totalorder %s17, 0
    %p86 = por %p84, %p85
    %s87 = ssub.s32 %s11, %s18
    %p88 = scmp.eq.s32.totalorder %s87, 0
    %s90 = sadd.s32 %s89, 1
    %s91 = scalar_select %p88, %s89, %s90
    %p94 = pneg %p88
    %p95 = scmp.eq.s32.totalorder %s11, 1
    %p96 = por %p94, %p95
    %p97 = scmp.ne.s32.totalorder %s89, %s92
    %p98 = scmp.eq.s32.totalorder %s11, 0
    %p99 = por %p97, %p98
    %p100 = scmp.ne.s32.totalorder %s89, %s92
    %p101 = scmp.eq.s32.totalorder %s16, 1
    %p102 = por %p100, %p101
    %p103 = scmp.ne.s32.totalorder %s92, %s93
    %p104 = scmp.eq.s32.totalorder %s16, 0
    %p105 = por %p103, %p104
    %p106 = scmp.ne.s32.totalorder %s92, %s93
    %p107 = scmp.eq.s32.totalorder %s17, 1
    %p108 = por %p106, %p107
    %p110 = scmp.ne.s32.totalorder %s93, %s109
    %p111 = scmp.eq.s32.totalorder %s17, 0
    %p112 = por %p110, %p111
    %s113 = ssub.s32 %s11, %s18
    %p114 = scmp.eq.s32.totalorder %s113, 0
    %s116 = sadd.s32 %s115, 1
    %s117 = scalar_select %p114, %s115, %s116
    %p120 = pneg %p114
    %p121 = scmp.eq.s32.totalorder %s11, 1
    %p122 = por %p120, %p121
    %p123 = scmp.ne.s32.totalorder %s115, %s118
    %p124 = scmp.eq.s32.totalorder %s11, 0
    %p125 = por %p123, %p124
    %p126 = scmp.ne.s32.totalorder %s115, %s118
    %p127 = scmp.eq.s32.totalorder %s16, 1
    %p128 = por %p126, %p127
    %p129 = scmp.ne.s32.totalorder %s118, %s119
    %p130 = scmp.eq.s32.totalorder %s16, 0
    %p131 = por %p129, %p130
    %p132 = scmp.ne.s32.totalorder %s118, %s119
    %p133 = scmp.eq.s32.totalorder %s17, 1
    %p134 = por %p132, %p133
    %p136 = scmp.ne.s32.totalorder %s119, %s135
    %p137 = scmp.eq.s32.totalorder %s17, 0
    %p138 = por %p136, %p137
    %p139 = scmp.le.s32.totalorder 1, %s11
    %p140 = scmp.lt.s32.totalorder %s11, 3
    %p141 = pnand %p139, %p140
    %p142 = pneg %p141
    // Predicated region
    $region9: #{residual_block_forward.3} parent=5 // pred_check
      _
    $region10: #{residual_block_forward.3} parent=5 // pred_check_branch
      %144 = sbr.rel (%p141) target = $region12
    $region11: #{residual_block_forward.3} parent=5 // pred_region
      %s145 = ssub.s32 %s11, 1
      // Predicated region
      $region13: #{residual_block_forward.3} parent=11 // pred_check
        %p146 = pneg %p58
      $region14: #{residual_block_forward.3} parent=11 // pred_check_branch
        %148 = sbr.rel (%p146) target = $region16
      $region15: #{residual_block_forward.3} parent=11 // pred_region
        _
      $region16: #{residual_block_forward.3} parent=11 // pred_fallthru
        _
      // Predicated region
      $region17: #{residual_block_forward.3} parent=11 // pred_check
        %p149 = pneg %p79
      $region18: #{residual_block_forward.3} parent=11 // pred_check_branch
        %151 = sbr.rel (%p149) target = $region20
      $region19: #{residual_block_forward.3} parent=11 // pred_region
        _
      $region20: #{residual_block_forward.3} parent=11 // pred_fallthru
        _
    $region12: #{residual_block_forward.3} parent=5 // pred_fallthru
      _
    %p152 = scmp.lt.s32.totalorder %s11, 2
    // Predicated region
    $region21: #{residual_block_forward.3} parent=5 // pred_check
      %p153 = pneg %p152
    $region22: #{residual_block_forward.3} parent=5 // pred_check_branch
      %155 = sbr.rel (%p153) target = $region24
    $region23: #{residual_block_forward.3} parent=5 // pred_region
      // Predicated region
      $region25: #{residual_block_forward.3} parent=23 // pred_check
        %p156 = pneg %p31
      $region26: #{residual_block_forward.3} parent=23 // pred_check_branch
        %158 = sbr.rel (%p156) target = $region28
      $region27: #{residual_block_forward.3} parent=23 // pred_region
        %p159 = scmp.lt.s32.totalorder %s11, 1
        %s160 = scalar_select %p159, %s11, 1
        %s161 = smul.addr %s160, 54
        %s162 = smul.addr %s161, 4
        %s163 = scalar_lea.vmem %s0, %s162
      $region28: #{residual_block_forward.3} parent=23 // pred_fallthru
        _
    $region24: #{residual_block_forward.3} parent=5 // pred_fallthru
      _
    %p164 = scmp.le.s32.totalorder 1, %s11
    %p165 = scmp.lt.s32.totalorder %s11, 3
    %p166 = pnand %p164, %p165
    %p167 = pneg %p166
    // Predicated region
    $region29: #{residual_block_forward.3} parent=5 // pred_check
      _
    $region30: #{residual_block_forward.3} parent=5 // pred_check_branch
      %169 = sbr.rel (%p166) target = $region32
    $region31: #{residual_block_forward.3} parent=5 // pred_region
      %s170 = ssub.s32 %s11, 1
      %p171 = scmp.lt.s32.totalorder %s16, 1
      %s172 = scalar_select %p171, %s16, 1
      %s173 = smul.addr %s172, 54
      %s174 = smul.addr %s173, 4
      %s175 = scalar_lea.vmem %s0, %s174
      %p176 = pneg %p37
      %p177 = pneg %p34
      %p178 = pneg %p58
      %p179 = pneg %p55
      %p180 = pneg %p79
      %p181 = pneg %p76
      %p182 = pneg %p105
      %p183 = pneg %p102
      %p184 = scmp.lt.s32.totalorder %s16, 1
      %s185 = scalar_select %p184, %s16, 1
      %s186 = smul.addr %s185, 54
      %s187 = smul.addr %s186, 4
      %s188 = scalar_lea.vmem %s3, %s187
      %p189 = pneg %p131
      %p190 = pneg %p128
      %p191 = scmp.lt.s32.totalorder %s16, 1
      %s192 = scalar_select %p191, %s16, 1
      %s193 = smul.addr %s192, 2
      %s194 = scalar_lea.vmem %s4, %s193
      %p195 = scmp.lt.s32.totalorder %s16, 1
      %s196 = scalar_select %p195, %s16, 1
      %s197 = smul.addr %s196, 54
      %s198 = smul.addr %s197, 4
      %s199 = scalar_lea.vmem %s0, %s198
      %p200 = scmp.lt.s32.totalorder %s16, 1
      %s201 = scalar_select %p200, %s16, 1
      %s202 = smul.addr %s201, 54
      %s203 = smul.addr %s202, 4
      %s204 = scalar_lea.vmem %s3, %s203
      %p205 = scmp.lt.s32.totalorder %s16, 1
      %s206 = scalar_select %p205, %s16, 1
      %s207 = smul.addr %s206, 2
      %s208 = scalar_lea.vmem %s4, %s207
      %v210 = vld [vmem:[%s199] sm:$0xf]
      %v211 = vld [vmem:[%s199 + $0x4] sm:$0xf]
      %v212 = vld [vmem:[%s199 + $0x8] sm:$0x1]
      %v213 = vld [vmem:[%s199 + $0xc] sm:$0xf]
      %v214 = vld [vmem:[%s199 + $0x10] sm:$0xf]
      %v215 = vld [vmem:[%s199 + $0x14] sm:$0x1]
      %v216 = vld [vmem:[%s199 + $0x18] sm:$0xf]
      %v217 = vld [vmem:[%s199 + $0x1c] sm:$0xf]
      %v218 = vld [vmem:[%s199 + $0x20] sm:$0x1]
      %v219 = vld [vmem:[%s199 + $0x24] sm:$0xf]
      %v220 = vld [vmem:[%s199 + $0x28] sm:$0xf]
      %v221 = vld [vmem:[%s199 + $0x2c] sm:$0x1]
      %v222 = vld [vmem:[%s199 + $0x30] sm:$0xf]
      %v223 = vld [vmem:[%s199 + $0x34] sm:$0xf]
      %v224 = vld [vmem:[%s199 + $0x38] sm:$0x1]
      %v225 = vld [vmem:[%s199 + $0x3c] sm:$0xf]
      %v226 = vld [vmem:[%s199 + $0x40] sm:$0xf]
      %v227 = vld [vmem:[%s199 + $0x44] sm:$0x1]
      %v228 = vld [vmem:[%s199 + $0x48] sm:$0xf]
      %v229 = vld [vmem:[%s199 + $0x4c] sm:$0xf]
      %v230 = vld [vmem:[%s199 + $0x50] sm:$0x1]
      %v231 = vld [vmem:[%s199 + $0x54] sm:$0xf]
      %v232 = vld [vmem:[%s199 + $0x58] sm:$0xf]
      %v233 = vld [vmem:[%s199 + $0x5c] sm:$0x1]
      %v234 = vld [vmem:[%s199 + $0x60] sm:$0xf]
      %v235 = vld [vmem:[%s199 + $0x64] sm:$0xf]
      %v236 = vld [vmem:[%s199 + $0x68] sm:$0x1]
      %v237 = vld [vmem:[%s199 + $0x6c] sm:$0xf]
      %v238 = vld [vmem:[%s199 + $0x70] sm:$0xf]
      %v239 = vld [vmem:[%s199 + $0x74] sm:$0x1]
      %v240 = vld [vmem:[%s199 + $0x78] sm:$0xf]
      %v241 = vld [vmem:[%s199 + $0x7c] sm:$0xf]
      %v242 = vld [vmem:[%s199 + $0x80] sm:$0x1]
      %v243 = vld [vmem:[%s199 + $0x84] sm:$0xf]
      %v244 = vld [vmem:[%s199 + $0x88] sm:$0xf]
      %v245 = vld [vmem:[%s199 + $0x8c] sm:$0x1]
      %v246 = vld [vmem:[%s199 + $0x90] sm:$0xf]
      %v247 = vld [vmem:[%s199 + $0x94] sm:$0xf]
      %v248 = vld [vmem:[%s199 + $0x98] sm:$0x1]
      %v249 = vld [vmem:[%s199 + $0x9c] sm:$0xf]
      %v250 = vld [vmem:[%s199 + $0xa0] sm:$0xf]
      %v251 = vld [vmem:[%s199 + $0xa4] sm:$0x1]
      %v252 = vld [vmem:[%s199 + $0xa8] sm:$0xf]
      %v253 = vld [vmem:[%s199 + $0xac] sm:$0xf]
      %v254 = vld [vmem:[%s199 + $0xb0] sm:$0x1]
      %v255 = vld [vmem:[%s199 + $0xb4] sm:$0xf]
      %v256 = vld [vmem:[%s199 + $0xb8] sm:$0xf]
      %v257 = vld [vmem:[%s199 + $0xbc] sm:$0x1]
      %v258 = vld [vmem:[%s199 + $0xc0] sm:$0xf]
      %v259 = vld [vmem:[%s199 + $0xc4] sm:$0xf]
      %v260 = vld [vmem:[%s199 + $0xc8] sm:$0x1]
      %v261 = vld [vmem:[%s199 + $0xcc] sm:$0xf]
      %v262 = vld [vmem:[%s199 + $0xd0] sm:$0xf]
      %v263 = vld [vmem:[%s199 + $0xd4] sm:$0x1]
      %v296 = vunpack.c.l.b16 %v210
      %v297 = vunpack.c.l.b16 %v211
      %v298 = vunpack.c.l.b16 %v213
      %v299 = vunpack.c.l.b16 %v214
      %v300 = vunpack.c.l.b16 %v216
      %v301 = vunpack.c.l.b16 %v217
      %v302 = vunpack.c.l.b16 %v219
      %v303 = vunpack.c.l.b16 %v220
      %v304 = vunpack.c.l.b16 %v222
      %v305 = vunpack.c.l.b16 %v223
      %v306 = vunpack.c.l.b16 %v225
      %v307 = vunpack.c.l.b16 %v226
      %v308 = vunpack.c.l.b16 %v228
      %v309 = vunpack.c.l.b16 %v229
      %v310 = vunpack.c.l.b16 %v231
      %v311 = vunpack.c.l.b16 %v232
      %v312 = vunpack.c.l.b16 %v234
      %v313 = vunpack.c.l.b16 %v235
      %v314 = vunpack.c.l.b16 %v237
      %v315 = vunpack.c.l.b16 %v238
      %v316 = vunpack.c.l.b16 %v240
      %v317 = vunpack.c.l.b16 %v241
      %v318 = vunpack.c.l.b16 %v243
      %v319 = vunpack.c.l.b16 %v244
      %v320 = vunpack.c.l.b16 %v246
      %v321 = vunpack.c.l.b16 %v247
      %v322 = vunpack.c.l.b16 %v249
      %v323 = vunpack.c.l.b16 %v250
      %v324 = vunpack.c.l.b16 %v252
      %v325 = vunpack.c.l.b16 %v253
      %v326 = vunpack.c.l.b16 %v255
      %v327 = vunpack.c.l.b16 %v256
      %v328 = vpack.c.b16 %v297, %v296
      %v329 = vpack.c.b16 %v299, %v298
      %v330 = vpack.c.b16 %v301, %v300
      %v331 = vpack.c.b16 %v303, %v302
      %v332 = vpack.c.b16 %v305, %v304
      %v333 = vpack.c.b16 %v307, %v306
      %v334 = vpack.c.b16 %v309, %v308
      %v335 = vpack.c.b16 %v311, %v310
      %v336 = vpack.c.b16 %v313, %v312
      %v337 = vpack.c.b16 %v315, %v314
      %v338 = vpack.c.b16 %v317, %v316
      %v339 = vpack.c.b16 %v319, %v318
      %v340 = vpack.c.b16 %v321, %v320
      %v341 = vpack.c.b16 %v323, %v322
      %v342 = vpack.c.b16 %v325, %v324
      %v343 = vpack.c.b16 %v327, %v326
      %v376 = vunpack.c.l.b16 %v212
      %v377 = vunpack.c.l.b16 %v215
      %v378 = vunpack.c.l.b16 %v218
      %v379 = vunpack.c.l.b16 %v221
      %v380 = vunpack.c.l.b16 %v224
      %v381 = vunpack.c.l.b16 %v227
      %v382 = vunpack.c.l.b16 %v230
      %v383 = vunpack.c.l.b16 %v233
      %v384 = vunpack.c.l.b16 %v236
      %v385 = vunpack.c.l.b16 %v239
      %v386 = vunpack.c.l.b16 %v242
      %v387 = vunpack.c.l.b16 %v245
      %v388 = vunpack.c.l.b16 %v248
      %v389 = vunpack.c.l.b16 %v251
      %v390 = vunpack.c.l.b16 %v254
      %v391 = vunpack.c.l.b16 %v257
      %v392 = vpack.c.b16 %v376, %v376
      %v393 = vpack.c.b16 %v377, %v377
      %v394 = vpack.c.b16 %v378, %v378
      %v395 = vpack.c.b16 %v379, %v379
      %v396 = vpack.c.b16 %v380, %v380
      %v397 = vpack.c.b16 %v381, %v381
      %v398 = vpack.c.b16 %v382, %v382
      %v399 = vpack.c.b16 %v383, %v383
      %v400 = vpack.c.b16 %v384, %v384
      %v401 = vpack.c.b16 %v385, %v385
      %v402 = vpack.c.b16 %v386, %v386
      %v403 = vpack.c.b16 %v387, %v387
      %v404 = vpack.c.b16 %v388, %v388
      %v405 = vpack.c.b16 %v389, %v389
      %v406 = vpack.c.b16 %v390, %v390
      %v407 = vpack.c.b16 %v391, %v391
      %vm408 = vsmask.f32 7424
      %v410 = vshrl.u32 %v328, 16
      %v412 = vshll.u32 %v328, 16
      %v414 = vrot.slane %v412, 1
      %v415 = vor.u32 %v410, %v414
      %v417 = vshll.u32 %v392, 16
      %v419 = vrot.slane %v417, 1
      %v420 = vsel %vm408, %v415, %v419
      %v422 = vshrl.u32 %v329, 16
      %v424 = vshll.u32 %v329, 16
      %v426 = vrot.slane %v424, 1
      %v427 = vor.u32 %v422, %v426
      %v429 = vshll.u32 %v393, 16
      %v431 = vrot.slane %v429, 1
      %v432 = vsel %vm408, %v427, %v431
      %v434 = vshrl.u32 %v330, 16
      %v436 = vshll.u32 %v330, 16
      %v438 = vrot.slane %v436, 1
      %v439 = vor.u32 %v434, %v438
      %v441 = vshll.u32 %v394, 16
      %v443 = vrot.slane %v441, 1
      %v444 = vsel %vm408, %v439, %v443
      %v446 = vshrl.u32 %v331, 16
      %v448 = vshll.u32 %v331, 16
      %v450 = vrot.slane %v448, 1
      %v451 = vor.u32 %v446, %v450
      %v453 = vshll.u32 %v395, 16
      %v455 = vrot.slane %v453, 1
      %v456 = vsel %vm408, %v451, %v455
      %v458 = vshrl.u32 %v332, 16
      %v460 = vshll.u32 %v332, 16
      %v462 = vrot.slane %v460, 1
      %v463 = vor.u32 %v458, %v462
      %v465 = vshll.u32 %v396, 16
      %v467 = vrot.slane %v465, 1
      %v468 = vsel %vm408, %v463, %v467
      %v470 = vshrl.u32 %v333, 16
      %v472 = vshll.u32 %v333, 16
      %v474 = vrot.slane %v472, 1
      %v475 = vor.u32 %v470, %v474
      %v477 = vshll.u32 %v397, 16
      %v479 = vrot.slane %v477, 1
      %v480 = vsel %vm408, %v475, %v479
      %v482 = vshrl.u32 %v334, 16
      %v484 = vshll.u32 %v334, 16
      %v486 = vrot.slane %v484, 1
      %v487 = vor.u32 %v482, %v486
      %v489 = vshll.u32 %v398, 16
      %v491 = vrot.slane %v489, 1
      %v492 = vsel %vm408, %v487, %v491
      %v494 = vshrl.u32 %v335, 16
      %v496 = vshll.u32 %v335, 16
      %v498 = vrot.slane %v496, 1
      %v499 = vor.u32 %v494, %v498
      %v501 = vshll.u32 %v399, 16
      %v503 = vrot.slane %v501, 1
      %v504 = vsel %vm408, %v499, %v503
      %v506 = vshrl.u32 %v336, 16
      %v508 = vshll.u32 %v336, 16
      %v510 = vrot.slane %v508, 1
      %v511 = vor.u32 %v506, %v510
      %v513 = vshll.u32 %v400, 16
      %v515 = vrot.slane %v513, 1
      %v516 = vsel %vm408, %v511, %v515
      %v518 = vshrl.u32 %v337, 16
      %v520 = vshll.u32 %v337, 16
      %v522 = vrot.slane %v520, 1
      %v523 = vor.u32 %v518, %v522
      %v525 = vshll.u32 %v401, 16
      %v527 = vrot.slane %v525, 1
      %v528 = vsel %vm408, %v523, %v527
      %v530 = vshrl.u32 %v338, 16
      %v532 = vshll.u32 %v338, 16
      %v534 = vrot.slane %v532, 1
      %v535 = vor.u32 %v530, %v534
      %v537 = vshll.u32 %v402, 16
      %v539 = vrot.slane %v537, 1
      %v540 = vsel %vm408, %v535, %v539
      %v542 = vshrl.u32 %v339, 16
      %v544 = vshll.u32 %v339, 16
      %v546 = vrot.slane %v544, 1
      %v547 = vor.u32 %v542, %v546
      %v549 = vshll.u32 %v403, 16
      %v551 = vrot.slane %v549, 1
      %v552 = vsel %vm408, %v547, %v551
      %v554 = vshrl.u32 %v340, 16
      %v556 = vshll.u32 %v340, 16
      %v558 = vrot.slane %v556, 1
      %v559 = vor.u32 %v554, %v558
      %v561 = vshll.u32 %v404, 16
      %v563 = vrot.slane %v561, 1
      %v564 = vsel %vm408, %v559, %v563
      %v566 = vshrl.u32 %v341, 16
      %v568 = vshll.u32 %v341, 16
      %v570 = vrot.slane %v568, 1
      %v571 = vor.u32 %v566, %v570
      %v573 = vshll.u32 %v405, 16
      %v575 = vrot.slane %v573, 1
      %v576 = vsel %vm408, %v571, %v575
      %v578 = vshrl.u32 %v342, 16
      %v580 = vshll.u32 %v342, 16
      %v582 = vrot.slane %v580, 1
      %v583 = vor.u32 %v578, %v582
      %v585 = vshll.u32 %v406, 16
      %v587 = vrot.slane %v585, 1
      %v588 = vsel %vm408, %v583, %v587
      %v590 = vshrl.u32 %v343, 16
      %v592 = vshll.u32 %v343, 16
      %v594 = vrot.slane %v592, 1
      %v595 = vor.u32 %v590, %v594
      %v597 = vshll.u32 %v407, 16
      %v599 = vrot.slane %v597, 1
      %v600 = vsel %vm408, %v595, %v599
      %vm617 = vcmask 1046528
      %v618 = vrot.slane %v328, 1
      %v619 = vrot.slane %v392, 1
      %v620 = vsel %vm617, %v618, %v619
      %v621 = vrot.slane %v329, 1
      %v622 = vrot.slane %v393, 1
      %v623 = vsel %vm617, %v621, %v622
      %v624 = vrot.slane %v330, 1
      %v625 = vrot.slane %v394, 1
      %v626 = vsel %vm617, %v624, %v625
      %v627 = vrot.slane %v331, 1
      %v628 = vrot.slane %v395, 1
      %v629 = vsel %vm617, %v627, %v628
      %v630 = vrot.slane %v332, 1
      %v631 = vrot.slane %v396, 1
      %v632 = vsel %vm617, %v630, %v631
      %v633 = vrot.slane %v333, 1
      %v634 = vrot.slane %v397, 1
      %v635 = vsel %vm617, %v633, %v634
      %v636 = vrot.slane %v334, 1
      %v637 = vrot.slane %v398, 1
      %v638 = vsel %vm617, %v636, %v637
      %v639 = vrot.slane %v335, 1
      %v640 = vrot.slane %v399, 1
      %v641 = vsel %vm617, %v639, %v640
      %v642 = vrot.slane %v336, 1
      %v643 = vrot.slane %v400, 1
      %v644 = vsel %vm617, %v642, %v643
      %v645 = vrot.slane %v337, 1
      %v646 = vrot.slane %v401, 1
      %v647 = vsel %vm617, %v645, %v646
      %v648 = vrot.slane %v338, 1
      %v649 = vrot.slane %v402, 1
      %v650 = vsel %vm617, %v648, %v649
      %v651 = vrot.slane %v339, 1
      %v652 = vrot.slane %v403, 1
      %v653 = vsel %vm617, %v651, %v652
      %v654 = vrot.slane %v340, 1
      %v655 = vrot.slane %v404, 1
      %v656 = vsel %vm617, %v654, %v655
      %v657 = vrot.slane %v341, 1
      %v658 = vrot.slane %v405, 1
      %v659 = vsel %vm617, %v657, %v658
      %v660 = vrot.slane %v342, 1
      %v661 = vrot.slane %v406, 1
      %v662 = vsel %vm617, %v660, %v661
      %v663 = vrot.slane %v343, 1
      %v664 = vrot.slane %v407, 1
      %v665 = vsel %vm617, %v663, %v664
      %v682 = vld [vmem:[%s1] sm:$0xf]
      %v683 = vld [vmem:[%s1 + $0x4] sm:$0xf]
      %v684 = vld [vmem:[%s1 + $0x8] sm:$0xf]
      %v685 = vld [vmem:[%s1 + $0xc] sm:$0xf]
      %v686 = vld [vmem:[%s1 + $0x10] sm:$0xf]
      %v687 = vld [vmem:[%s1 + $0x14] sm:$0xf]
      %v688 = vld [vmem:[%s1 + $0x18] sm:$0xf]
      %v689 = vld [vmem:[%s1 + $0x1c] sm:$0xf]
      %v690 = vld [vmem:[%s1 + $0x20] sm:$0xf]
      %v691 = vld [vmem:[%s1 + $0x24] sm:$0xf]
      %v692 = vld [vmem:[%s1 + $0x28] sm:$0xf]
      %v693 = vld [vmem:[%s1 + $0x2c] sm:$0xf]
      %v694 = vld [vmem:[%s1 + $0x30] sm:$0xf]
      %v695 = vld [vmem:[%s1 + $0x34] sm:$0xf]
      %v696 = vld [vmem:[%s1 + $0x38] sm:$0xf]
      %v697 = vld [vmem:[%s1 + $0x3c] sm:$0xf]
      %v698 = vld [vmem:[%s1 + $0x40] sm:$0xf]
      %v699 = vld [vmem:[%s1 + $0x44] sm:$0xf]
      %v700 = vld [vmem:[%s1 + $0x48] sm:$0xf]
      %v701 = vld [vmem:[%s1 + $0x4c] sm:$0xf]
      %v702 = vld [vmem:[%s1 + $0x50] sm:$0xf]
      %v703 = vld [vmem:[%s1 + $0x54] sm:$0xf]
      %v704 = vld [vmem:[%s1 + $0x58] sm:$0xf]
      %v705 = vld [vmem:[%s1 + $0x5c] sm:$0xf]
      %v706 = vld [vmem:[%s1 + $0x60] sm:$0xf]
      %v707 = vld [vmem:[%s1 + $0x64] sm:$0xf]
      %v708 = vld [vmem:[%s1 + $0x68] sm:$0xf]
      %v709 = vld [vmem:[%s1 + $0x6c] sm:$0xf]
      %v710 = vld [vmem:[%s1 + $0x70] sm:$0xf]
      %v711 = vld [vmem:[%s1 + $0x74] sm:$0xf]
      %v712 = vld [vmem:[%s1 + $0x78] sm:$0xf]
      %v713 = vld [vmem:[%s1 + $0x7c] sm:$0xf]
      %v714 = vld [vmem:[%s1 + $0x80] sm:$0xf]
      %v715 = vld [vmem:[%s1 + $0x84] sm:$0xf]
      %v716 = vld [vmem:[%s1 + $0x88] sm:$0xf]
      %v717 = vld [vmem:[%s1 + $0x8c] sm:$0xf]
      %v718 = vld [vmem:[%s1 + $0x90] sm:$0xf]
      %v719 = vld [vmem:[%s1 + $0x94] sm:$0xf]
      %v720 = vld [vmem:[%s1 + $0x98] sm:$0xf]
      %v721 = vld [vmem:[%s1 + $0x9c] sm:$0xf]
      %v722 = vld [vmem:[%s1 + $0xa0] sm:$0xf]
      %v723 = vld [vmem:[%s1 + $0xa4] sm:$0xf]
      %v724 = vld [vmem:[%s1 + $0xa8] sm:$0xf]
      %v725 = vld [vmem:[%s1 + $0xac] sm:$0xf]
      %v726 = vld [vmem:[%s1 + $0xb0] sm:$0xf]
      %v727 = vld [vmem:[%s1 + $0xb4] sm:$0xf]
      %v728 = vld [vmem:[%s1 + $0xb8] sm:$0xf]
      %v729 = vld [vmem:[%s1 + $0xbc] sm:$0xf]
      %v732 = vunpack.c.l.b16 %v258
      %v733 = vunpack.c.l.b16 %v259
      %v734 = vpack.c.b16 %v733, %v732
      %v737 = vunpack.c.l.b16 %v260
      %v738 = vpack.c.b16 %v737, %v737
      %v740 = vshrl.u32 %v734, 16
      %v742 = vshll.u32 %v734, 16
      %v744 = vrot.slane %v742, 1
      %v745 = vor.u32 %v740, %v744
      %v747 = vshll.u32 %v738, 16
      %v749 = vrot.slane %v747, 1
      %v750 = vsel %vm408, %v745, %v749
      %v752 = vrot.slane %v734, 1
      %v753 = vrot.slane %v738, 1
      %v754 = vsel %vm617, %v752, %v753
      %s756 = scalar_lea.vmem %s1, 192
      %v757 = vld [vmem:[%s756] sm:$0xf]
      %v758 = vld [vmem:[%s756 + $0x4] sm:$0xf]
      %v759 = vld [vmem:[%s756 + $0x8] sm:$0xf]
      %v760 = vld [vmem:[%s756 + $0xc] sm:$0xf]
      %v761 = vld [vmem:[%s756 + $0x10] sm:$0xf]
      %v762 = vld [vmem:[%s756 + $0x14] sm:$0xf]
      %v763 = vld [vmem:[%s756 + $0x18] sm:$0xf]
      %v764 = vld [vmem:[%s756 + $0x1c] sm:$0xf]
      %v765 = vld [vmem:[%s756 + $0x20] sm:$0xf]
      %v766 = vld [vmem:[%s756 + $0x24] sm:$0xf]
      %v767 = vld [vmem:[%s756 + $0x28] sm:$0xf]
      %v768 = vld [vmem:[%s756 + $0x2c] sm:$0xf]
      %v769 = vld [vmem:[%s756 + $0x30] sm:$0xf]
      %v770 = vld [vmem:[%s756 + $0x34] sm:$0xf]
      %v771 = vld [vmem:[%s756 + $0x38] sm:$0xf]
      %v772 = vld [vmem:[%s756 + $0x3c] sm:$0xf]
      %v773 = vld [vmem:[%s756 + $0x40] sm:$0xf]
      %v774 = vld [vmem:[%s756 + $0x44] sm:$0xf]
      %v775 = vld [vmem:[%s756 + $0x48] sm:$0xf]
      %v776 = vld [vmem:[%s756 + $0x4c] sm:$0xf]
      %v777 = vld [vmem:[%s756 + $0x50] sm:$0xf]
      %v778 = vld [vmem:[%s756 + $0x54] sm:$0xf]
      %v779 = vld [vmem:[%s756 + $0x58] sm:$0xf]
      %v780 = vld [vmem:[%s756 + $0x5c] sm:$0xf]
      %v781 = vld [vmem:[%s756 + $0x60] sm:$0xf]
      %v782 = vld [vmem:[%s756 + $0x64] sm:$0xf]
      %v783 = vld [vmem:[%s756 + $0x68] sm:$0xf]
      %v784 = vld [vmem:[%s756 + $0x6c] sm:$0xf]
      %v785 = vld [vmem:[%s756 + $0x70] sm:$0xf]
      %v786 = vld [vmem:[%s756 + $0x74] sm:$0xf]
      %v787 = vld [vmem:[%s756 + $0x78] sm:$0xf]
      %v788 = vld [vmem:[%s756 + $0x7c] sm:$0xf]
      %v789 = vld [vmem:[%s756 + $0x80] sm:$0xf]
      %v790 = vld [vmem:[%s756 + $0x84] sm:$0xf]
      %v791 = vld [vmem:[%s756 + $0x88] sm:$0xf]
      %v792 = vld [vmem:[%s756 + $0x8c] sm:$0xf]
      %v793 = vld [vmem:[%s756 + $0x90] sm:$0xf]
      %v794 = vld [vmem:[%s756 + $0x94] sm:$0xf]
      %v795 = vld [vmem:[%s756 + $0x98] sm:$0xf]
      %v796 = vld [vmem:[%s756 + $0x9c] sm:$0xf]
      %v797 = vld [vmem:[%s756 + $0xa0] sm:$0xf]
      %v798 = vld [vmem:[%s756 + $0xa4] sm:$0xf]
      %v799 = vld [vmem:[%s756 + $0xa8] sm:$0xf]
      %v800 = vld [vmem:[%s756 + $0xac] sm:$0xf]
      %v801 = vld [vmem:[%s756 + $0xb0] sm:$0xf]
      %v802 = vld [vmem:[%s756 + $0xb4] sm:$0xf]
      %v803 = vld [vmem:[%s756 + $0xb8] sm:$0xf]
      %v804 = vld [vmem:[%s756 + $0xbc] sm:$0xf]
      %v853 = vunpack.c.l.b16 %v757
      %v854 = vunpack.c.l.b16 %v758
      %v855 = vunpack.c.l.b16 %v759
      %v856 = vunpack.c.l.b16 %v760
      %v857 = vunpack.c.l.b16 %v761
      %v858 = vunpack.c.l.b16 %v762
      %v859 = vunpack.c.l.b16 %v763
      %v860 = vunpack.c.l.b16 %v764
      %v861 = vunpack.c.l.b16 %v765
      %v862 = vunpack.c.l.b16 %v766
      %v863 = vunpack.c.l.b16 %v767
      %v864 = vunpack.c.l.b16 %v768
      %v865 = vunpack.c.l.b16 %v769
      %v866 = vunpack.c.l.b16 %v770
      %v867 = vunpack.c.l.b16 %v771
      %v868 = vunpack.c.l.b16 %v772
      %v869 = vunpack.c.l.b16 %v773
      %v870 = vunpack.c.l.b16 %v774
      %v871 = vunpack.c.l.b16 %v775
      %v872 = vunpack.c.l.b16 %v776
      %v873 = vunpack.c.l.b16 %v777
      %v874 = vunpack.c.l.b16 %v778
      %v875 = vunpack.c.l.b16 %v779
      %v876 = vunpack.c.l.b16 %v780
      %v877 = vunpack.c.l.b16 %v781
      %v878 = vunpack.c.l.b16 %v782
      %v879 = vunpack.c.l.b16 %v783
      %v880 = vunpack.c.l.b16 %v784
      %v881 = vunpack.c.l.b16 %v785
      %v882 = vunpack.c.l.b16 %v786
      %v883 = vunpack.c.l.b16 %v787
      %v884 = vunpack.c.l.b16 %v788
      %v885 = vunpack.c.l.b16 %v789
      %v886 = vunpack.c.l.b16 %v790
      %v887 = vunpack.c.l.b16 %v791
      %v888 = vunpack.c.l.b16 %v792
      %v889 = vunpack.c.l.b16 %v793
      %v890 = vunpack.c.l.b16 %v794
      %v891 = vunpack.c.l.b16 %v795
      %v892 = vunpack.c.l.b16 %v796
      %v893 = vunpack.c.l.b16 %v797
      %v894 = vunpack.c.l.b16 %v798
      %v895 = vunpack.c.l.b16 %v799
      %v896 = vunpack.c.l.b16 %v800
      %v897 = vunpack.c.l.b16 %v801
      %v898 = vunpack.c.l.b16 %v802
      %v899 = vunpack.c.l.b16 %v803
      %v900 = vunpack.c.l.b16 %v804
      %v901 = vpack.c.b16 %v854, %v853
      %v902 = vpack.c.b16 %v856, %v855
      %v903 = vpack.c.b16 %v858, %v857
      %v904 = vpack.c.b16 %v860, %v859
      %v905 = vpack.c.b16 %v862, %v861
      %v906 = vpack.c.b16 %v864, %v863
      %v907 = vpack.c.b16 %v866, %v865
      %v908 = vpack.c.b16 %v868, %v867
      %v909 = vpack.c.b16 %v870, %v869
      %v910 = vpack.c.b16 %v872, %v871
      %v911 = vpack.c.b16 %v874, %v873
      %v912 = vpack.c.b16 %v876, %v875
      %v913 = vpack.c.b16 %v878, %v877
      %v914 = vpack.c.b16 %v880, %v879
      %v915 = vpack.c.b16 %v882, %v881
      %v916 = vpack.c.b16 %v884, %v883
      %v917 = vpack.c.b16 %v886, %v885
      %v918 = vpack.c.b16 %v888, %v887
      %v919 = vpack.c.b16 %v890, %v889
      %v920 = vpack.c.b16 %v892, %v891
      %v921 = vpack.c.b16 %v894, %v893
      %v922 = vpack.c.b16 %v896, %v895
      %v923 = vpack.c.b16 %v898, %v897
      %v924 = vpack.c.b16 %v900, %v899
      %949 = vmatprep.subr.bf16.mxu0 0
      %950 = vmatpush1.bf16.msra.mxu0 %v901
      %951 = vmatprep.subr.bf16.mxu0 0
      %952 = vmatpush1.bf16.msra.mxu0 %v902
      %953 = vmatprep.subr.bf16.mxu0 0
      %954 = vmatpush1.bf16.msra.mxu0 %v903
      %955 = vmatprep.subr.bf16.mxu0 0
      %956 = vmatpush1.bf16.msra.mxu0 %v904
      %957 = vmatprep.subr.bf16.mxu0 0
      %958 = vmatpush1.bf16.msra.mxu0 %v905
      %959 = vmatprep.subr.bf16.mxu0 0
      %960 = vmatpush1.bf16.msra.mxu0 %v906
      %961 = vmatprep.subr.bf16.mxu0 0
      %962 = vmatpush1.bf16.msra.mxu0 %v907
      %963 = vmatprep.subr.bf16.mxu0 0
      %964 = vmatpush1.bf16.msra.mxu0 %v908
      %965 = vmatprep.subr.bf16.mxu0 0
      %966 = vmatpush1.bf16.msra.mxu0 %v909
      %967 = vmatprep.subr.bf16.mxu0 0
      %968 = vmatpush1.bf16.msra.mxu0 %v910
      %969 = vmatprep.subr.bf16.mxu0 0
      %970 = vmatpush1.bf16.msra.mxu0 %v911
      %971 = vmatprep.subr.bf16.mxu0 0
      %972 = vmatpush1.bf16.msra.mxu0 %v912
      %973 = vmatprep.subr.bf16.mxu0 0
      %974 = vmatpush1.bf16.msra.mxu0 %v913
      %975 = vmatprep.subr.bf16.mxu0 0
      %976 = vmatpush1.bf16.msra.mxu0 %v914
      %977 = vmatprep.subr.bf16.mxu0 0
      %978 = vmatpush1.bf16.msra.mxu0 %v915
      %979 = vmatprep.subr.bf16.mxu0 0
      %980 = vmatpush1.bf16.msra.mxu0 %v916
      %981 = vmatprep.mubr.bf16.mxu0 %v432
      %982 = vmatmul.mubr.bf16.gmra.mrb[0].mxu0 %v329
      %v983 = vpop.f32.mrb[0].mxu0
      %v984 = vadd.f32 0.0, %v983
      %v985 = vpop.f32.mrb[0].mxu0
      %v986 = vpop.f32.mrb[0].mxu0
      %v987 = vadd.f32 0.0, %v986
      %v988 = vpop.f32.mrb[0].mxu0
      %989 = vmatprep.mubr.bf16.mxu0 %v444
      %990 = vmatmul.mubr.bf16.gmra.mrb[0].mxu0 %v330
      %v991 = vpop.f32.mrb[0].mxu0
      %v992 = vadd.f32 0.0, %v991
      %v993 = vpop.f32.mrb[0].mxu0
      %v994 = vpop.f32.mrb[0].mxu0
      %v995 = vadd.f32 0.0, %v994
      %v996 = vpop.f32.mrb[0].mxu0
      %997 = vmatprep.mubr.bf16.mxu0 %v456
      %998 = vmatmul.mubr.bf16.gmra.mrb[0].mxu0 %v331
      %v999 = vpop.f32.mrb[0].mxu0
      %v1000 = vadd.f32 0.0, %v999
      %v1001 = vpop.f32.mrb[0].mxu0
      %v1002 = vpop.f32.mrb[0].mxu0
      %v1003 = vadd.f32 0.0, %v1002
      %v1004 = vpop.f32.mrb[0].mxu0
      %1005 = vmatprep.mubr.bf16.mxu0 %v468
      %1006 = vmatmul.mubr.bf16.gmra.mrb[0].mxu0 %v332
      %v1007 = vpop.f32.mrb[0].mxu0
      %v1008 = vadd.f32 0.0, %v1007
      %v1009 = vpop.f32.mrb[0].mxu0
      %v1010 = vpop.f32.mrb[0].mxu0
      %v1011 = vadd.f32 0.0, %v1010
      %v1012 = vpop.f32.mrb[0].mxu0
      %1013 = vmatprep.mubr.bf16.mxu0 %v480
      %1014 = vmatmul.mubr.bf16.gmra.mrb[0].mxu0 %v333
      %v1015 = vpop.f32.mrb[0].mxu0
      %v1016 = vadd.f32 0.0, %v1015
      %v1017 = vpop.f32.mrb[0].mxu0
      %v1018 = vpop.f32.mrb[0].mxu0
      %v1019 = vadd.f32 0.0, %v1018
      %v1020 = vpop.f32.mrb[0].mxu0
      %1021 = vmatprep.mubr.bf16.mxu0 %v492
      %1022 = vmatmul.mubr.bf16.gmra.mrb[0].mxu0 %v334
      %v1023 = vpop.f32.mrb[0].mxu0
      %v1024 = vadd.f32 0.0, %v1023
      %v1025 = vpop.f32.mrb[0].mxu0
      %v1026 = vpop.f32.mrb[0].mxu0
      %v1027 = vadd.f32 0.0, %v1026
      %v1028 = vpop.f32.mrb[0].mxu0
      %1029 = vmatprep.mubr.bf16.mxu0 %v504
      %1030 = vmatmul.mubr.bf16.gmra.mrb[0].mxu0 %v335
      %v1031 = vpop.f32.mrb[0].mxu0
      %v1032 = vadd.f32 0.0, %v1031
      %v1033 = vpop.f32.mrb[0].mxu0
      %v1034 = vpop.f32.mrb[0].mxu0
      %v1035 = vadd.f32 0.0, %v1034
      %v1036 = vpop.f32.mrb[0].mxu0
      %1037 = vmatprep.mubr.bf16.mxu0 %v516
      %1038 = vmatmul.mubr.bf16.gmra.mrb[0].mxu0 %v336
      %v1039 = vpop.f32.mrb[0].mxu0
      %v1040 = vadd.f32 0.0, %v1039
      %v1041 = vpop.f32.mrb[0].mxu0
      %v1042 = vpop.f32.mrb[0].mxu0
      %v1043 = vadd.f32 0.0, %v1042
      %v1044 = vpop.f32.mrb[0].mxu0
      %1045 = vmatprep.mubr.bf16.mxu0 %v528
      %1046 = vmatmul.mubr.bf16.gmra.mrb[0].mxu0 %v337
      %v1047 = vpop.f32.mrb[0].mxu0
      %v1048 = vadd.f32 0.0, %v1047
      %v1049 = vpop.f32.mrb[0].mxu0
      %v1050 = vpop.f32.mrb[0].mxu0
      %v1051 = vadd.f32 0.0, %v1050
      %v1052 = vpop.f32.mrb[0].mxu0
      %1053 = vmatprep.mubr.bf16.mxu0 %v540
      %1054 = vmatmul.mubr.bf16.gmra.mrb[0].mxu0 %v338
      %v1055 = vpop.f32.mrb[0].mxu0
      %v1056 = vadd.f32 0.0, %v1055
      %v1057 = vpop.f32.mrb[0].mxu0
      %v1058 = vpop.f32.mrb[0].mxu0
      %v1059 = vadd.f32 0.0, %v1058
      %v1060 = vpop.f32.mrb[0].mxu0
      %1061 = vmatprep.mubr.bf16.mxu0 %v552
      %1062 = vmatmul.mubr.bf16.gmra.mrb[0].mxu0 %v339
      %v1063 = vpop.f32.mrb[0].mxu0
      %v1064 = vadd.f32 0.0, %v1063
      %v1065 = vpop.f32.mrb[0].mxu0
      %v1066 = vpop.f32.mrb[0].mxu0
      %v1067 = vadd.f32 0.0, %v1066
      %v1068 = vpop.f32.mrb[0].mxu0
      %1069 = vmatprep.mubr.bf16.mxu0 %v564
      %1070 = vmatmul.mubr.bf16.gmra.mrb[0].mxu0 %v340
      %v1071 = vpop.f32.mrb[0].mxu0
      %v1072 = vadd.f32 0.0, %v1071
      %v1073 = vpop.f32.mrb[0].mxu0
      %v1074 = vpop.f32.mrb[0].mxu0
      %v1075 = vadd.f32 0.0, %v1074
      %v1076 = vpop.f32.mrb[0].mxu0
      %1077 = vmatprep.mubr.bf16.mxu0 %v576
      %1078 = vmatmul.mubr.bf16.gmra.mrb[0].mxu0 %v341
      %v1079 = vpop.f32.mrb[0].mxu0
      %v1080 = vadd.f32 0.0, %v1079
      %v1081 = vpop.f32.mrb[0].mxu0
      %v1082 = vpop.f32.mrb[0].mxu0
      %v1083 = vadd.f32 0.0, %v1082
      %v1084 = vpop.f32.mrb[0].mxu0
      %1085 = vmatprep.mubr.bf16.mxu0 %v588
      %1086 = vmatmul.mubr.bf16.gmra.mrb[0].mxu0 %v342
      %v1087 = vpop.f32.mrb[0].mxu0
      %v1088 = vadd.f32 0.0, %v1087
      %v1089 = vpop.f32.mrb[0].mxu0
      %v1090 = vpop.f32.mrb[0].mxu0
      %v1091 = vadd.f32 0.0, %v1090
      %v1092 = vpop.f32.mrb[0].mxu0
      %1093 = vmatprep.mubr.bf16.mxu0 %v600
      %1094 = vmatmul.mubr.bf16.gmra.mrb[0].mxu0 %v343
      %v1095 = vpop.f32.mrb[0].mxu0
      %v1096 = vadd.f32 0.0, %v1095
      %v1097 = vpop.f32.mrb[0].mxu0
      %v1098 = vpop.f32.mrb[0].mxu0
      %v1099 = vadd.f32 0.0, %v1098
      %v1100 = vpop.f32.mrb[0].mxu0
      %1101 = vmatprep.mubr.bf16.mxu0 %v750
      %1102 = vmatmul.mubr.bf16.gmra.mrb[0].mxu0 %v734
      %v1103 = vpop.f32.mrb[0].mxu0
      %v1104 = vadd.f32 0.0, %v1103
      %v1105 = vpop.f32.mrb[0].mxu0
      %v1106 = vpop.f32.mrb[0].mxu0
      %v1107 = vadd.f32 0.0, %v1106
      %v1108 = vpop.f32.mrb[0].mxu0
      %1109 = vdwg.mxu0
      %1110 = vmatprep.subr.bf16.mxu0 0
      %1111 = vmatpush1.bf16.msra.mxu0 %v917
      %1112 = vmatprep.subr.bf16.mxu0 0
      %1113 = vmatpush1.bf16.msra.mxu0 %v918
      %1114 = vmatprep.subr.bf16.mxu0 0
      %1115 = vmatpush1.bf16.msra.mxu0 %v919
      %1116 = vmatprep.subr.bf16.mxu0 0
      %1117 = vmatpush1.bf16.msra.mxu0 %v920
      %1118 = vmatprep.subr.bf16.mxu0 0
      %1119 = vmatpush1.bf16.msra.mxu0 %v921
      %1120 = vmatprep.subr.bf16.mxu0 0
      %1121 = vmatpush1.bf16.msra.mxu0 %v922
      %1122 = vmatprep.subr.bf16.mxu0 0
      %1123 = vmatpush1.bf16.msra.mxu0 %v923
      %1124 = vmatprep.subr.bf16.mxu0 0
      %1125 = vmatpush1.bf16.msra.mxu0 %v924
      %1126 = vmatprep.subr.bf16.mxu0 0
      %1127 = vmatpush1.bf16.msra.mxu0 0
      %1128 = vmatprep.subr.bf16.mxu0 0
      %1129 = vmatpush1.bf16.msra.mxu0 0
      %1130 = vmatprep.subr.bf16.mxu0 0
      %1131 = vmatpush1.bf16.msra.mxu0 0
      %1132 = vmatprep.subr.bf16.mxu0 0
      %1133 = vmatpush1.bf16.msra.mxu0 0
      %1134 = vmatprep.subr.bf16.mxu0 0
      %1135 = vmatpush1.bf16.msra.mxu0 0
      %1136 = vmatprep.subr.bf16.mxu0 0
      %1137 = vmatpush1.bf16.msra.mxu0 0
      %1138 = vmatprep.subr.bf16.mxu0 0
      %1139 = vmatpush1.bf16.msra.mxu0 0
      %1140 = vmatprep.subr.bf16.mxu0 0
      %1141 = vmatpush1.bf16.msra.mxu0 0
      %1142 = vmatprep.mubr.bf16.mxu0 0
      %1143 = vmatmul.mubr.bf16.gmra.mrb[0].mxu0 %v623
      %v1144 = vpop.f32.mrb[0].mxu0
      %v1145 = vadd.f32 %v984, %v1144
      %v1146 = vpop.f32.mrb[0].mxu0
      %v1147 = vpop.f32.mrb[0].mxu0
      %v1148 = vadd.f32 %v987, %v1147
      %v1149 = vpop.f32.mrb[0].mxu0
      %1150 = vmatprep.mubr.bf16.mxu0 0
      %1151 = vmatmul.mubr.bf16.gmra.mrb[0].mxu0 %v626
      %v1152 = vpop.f32.mrb[0].mxu0
      %v1153 = vadd.f32 %v992, %v1152
      %v1154 = vpop.f32.mrb[0].mxu0
      %v1155 = vpop.f32.mrb[0].mxu0
      %v1156 = vadd.f32 %v995, %v1155
      %v1157 = vpop.f32.mrb[0].mxu0
      %1158 = vmatprep.mubr.bf16.mxu0 0
      %1159 = vmatmul.mubr.bf16.gmra.mrb[0].mxu0 %v629
      %v1160 = vpop.f32.mrb[0].mxu0
      %v1161 = vadd.f32 %v1000, %v1160
      %v1162 = vpop.f32.mrb[0].mxu0
      %v1163 = vpop.f32.mrb[0].mxu0
      %v1164 = vadd.f32 %v1003, %v1163
      %v1165 = vpop.f32.mrb[0].mxu0
      %1166 = vmatprep.mubr.bf16.mxu0 0
      %1167 = vmatmul.mubr.bf16.gmra.mrb[0].mxu0 %v632
      %v1168 = vpop.f32.mrb[0].mxu0
      %v1169 = vadd.f32 %v1008, %v1168
      %v1170 = vpop.f32.mrb[0].mxu0
      %v1171 = vpop.f32.mrb[0].mxu0
      %v1172 = vadd.f32 %v1011, %v1171
      %v1173 = vpop.f32.mrb[0].mxu0
      %1174 = vmatprep.mubr.bf16.mxu0 0
      %1175 = vmatmul.mubr.bf16.gmra.mrb[0].mxu0 %v635
      %v1176 = vpop.f32.mrb[0].mxu0
      %v1177 = vadd.f32 %v1016, %v1176
      %v1178 = vpop.f32.mrb[0].mxu0
      %v1179 = vpop.f32.mrb[0].mxu0
      %v1180 = vadd.f32 %v1019, %v1179
      %v1181 = vpop.f32.mrb[0].mxu0
      %1182 = vmatprep.mubr.bf16.mxu0 0
      %1183 = vmatmul.mubr.bf16.gmra.mrb[0].mxu0 %v638
      %v1184 = vpop.f32.mrb[0].mxu0
      %v1185 = vadd.f32 %v1024, %v1184
      %v1186 = vpop.f32.mrb[0].mxu0
      %v1187 = vpop.f32.mrb[0].mxu0
      %v1188 = vadd.f32 %v1027, %v1187
      %v1189 = vpop.f32.mrb[0].mxu0
      %1190 = vmatprep.mubr.bf16.mxu0 0
      %1191 = vmatmul.mubr.bf16.gmra.mrb[0].mxu0 %v641
      %v1192 = vpop.f32.mrb[0].mxu0
      %v1193 = vadd.f32 %v1032, %v1192
      %v1194 = vpop.f32.mrb[0].mxu0
      %v1195 = vpop.f32.mrb[0].mxu0
      %v1196 = vadd.f32 %v1035, %v1195
      %v1197 = vpop.f32.mrb[0].mxu0
      %1198 = vmatprep.mubr.bf16.mxu0 0
      %1199 = vmatmul.mubr.bf16.gmra.mrb[0].mxu0 %v644
      %v1200 = vpop.f32.mrb[0].mxu0
      %v1201 = vadd.f32 %v1040, %v1200
      %v1202 = vpop.f32.mrb[0].mxu0
      %v1203 = vpop.f32.mrb[0].mxu0
      %v1204 = vadd.f32 %v1043, %v1203
      %v1205 = vpop.f32.mrb[0].mxu0
      %1206 = vmatprep.mubr.bf16.mxu0 0
      %1207 = vmatmul.mubr.bf16.gmra.mrb[0].mxu0 %v647
      %v1208 = vpop.f32.mrb[0].mxu0
      %v1209 = vadd.f32 %v1048, %v1208
      %v1210 = vpop.f32.mrb[0].mxu0
      %v1211 = vpop.f32.mrb[0].mxu0
      %v1212 = vadd.f32 %v1051, %v1211
      %v1213 = vpop.f32.mrb[0].mxu0
      %1214 = vmatprep.mubr.bf16.mxu0 0
      %1215 = vmatmul.mubr.bf16.gmra.mrb[0].mxu0 %v650
      %v1216 = vpop.f32.mrb[0].mxu0
      %v1217 = vadd.f32 %v1056, %v1216
      %v1218 = vpop.f32.mrb[0].mxu0
      %v1219 = vpop.f32.mrb[0].mxu0
      %v1220 = vadd.f32 %v1059, %v1219
      %v1221 = vpop.f32.mrb[0].mxu0
      %1222 = vmatprep.mubr.bf16.mxu0 0
      %1223 = vmatmul.mubr.bf16.gmra.mrb[0].mxu0 %v653
      %v1224 = vpop.f32.mrb[0].mxu0
      %v1225 = vadd.f32 %v1064, %v1224
      %v1226 = vpop.f32.mrb[0].mxu0
      %v1227 = vpop.f32.mrb[0].mxu0
      %v1228 = vadd.f32 %v1067, %v1227
      %v1229 = vpop.f32.mrb[0].mxu0
      %1230 = vmatprep.mubr.bf16.mxu0 0
      %1231 = vmatmul.mubr.bf16.gmra.mrb[0].mxu0 %v656
      %v1232 = vpop.f32.mrb[0].mxu0
      %v1233 = vadd.f32 %v1072, %v1232
      %v1234 = vpop.f32.mrb[0].mxu0
      %v1235 = vpop.f32.mrb[0].mxu0
      %v1236 = vadd.f32 %v1075, %v1235
      %v1237 = vpop.f32.mrb[0].mxu0
      %1238 = vmatprep.mubr.bf16.mxu0 0
      %1239 = vmatmul.mubr.bf16.gmra.mrb[0].mxu0 %v659
      %v1240 = vpop.f32.mrb[0].mxu0
      %v1241 = vadd.f32 %v1080, %v1240
      %v1242 = vpop.f32.mrb[0].mxu0
      %v1243 = vpop.f32.mrb[0].mxu0
      %v1244 = vadd.f32 %v1083, %v1243
      %v1245 = vpop.f32.mrb[0].mxu0
      %1246 = vmatprep.mubr.bf16.mxu0 0
      %1247 = vmatmul.mubr.bf16.gmra.mrb[0].mxu0 %v662
      %v1248 = vpop.f32.mrb[0].mxu0
      %v1249 = vadd.f32 %v1088, %v1248
      %v1250 = vpop.f32.mrb[0].mxu0
      %v1251 = vpop.f32.mrb[0].mxu0
      %v1252 = vadd.f32 %v1091, %v1251
      %v1253 = vpop.f32.mrb[0].mxu0
      %1254 = vmatprep.mubr.bf16.mxu0 0
      %1255 = vmatmul.mubr.bf16.gmra.mrb[0].mxu0 %v665
      %v1256 = vpop.f32.mrb[0].mxu0
      %v1257 = vadd.f32 %v1096, %v1256
      %v1258 = vpop.f32.mrb[0].mxu0
      %v1259 = vpop.f32.mrb[0].mxu0
      %v1260 = vadd.f32 %v1099, %v1259
      %v1261 = vpop.f32.mrb[0].mxu0
      %1262 = vmatprep.mubr.bf16.mxu0 0
      %1263 = vmatmul.mubr.bf16.gmra.mrb[0].mxu0 %v754
      %v1264 = vpop.f32.mrb[0].mxu0
      %v1265 = vadd.f32 %v1104, %v1264
      %v1266 = vpop.f32.mrb[0].mxu0
      %v1267 = vpop.f32.mrb[0].mxu0
      %v1268 = vadd.f32 %v1107, %v1267
      %v1269 = vpop.f32.mrb[0].mxu0
      %1270 = vdwg.mxu0
      %v1319 = vunpack.c.l.b16 %v682
      %v1320 = vunpack.c.l.b16 %v683
      %v1321 = vunpack.c.l.b16 %v684
      %v1322 = vunpack.c.l.b16 %v685
      %v1323 = vunpack.c.l.b16 %v686
      %v1324 = vunpack.c.l.b16 %v687
      %v1325 = vunpack.c.l.b16 %v688
      %v1326 = vunpack.c.l.b16 %v689
      %v1327 = vunpack.c.l.b16 %v690
      %v1328 = vunpack.c.l.b16 %v691
      %v1329 = vunpack.c.l.b16 %v692
      %v1330 = vunpack.c.l.b16 %v693
      %v1331 = vunpack.c.l.b16 %v694
      %v1332 = vunpack.c.l.b16 %v695
      %v1333 = vunpack.c.l.b16 %v696
      %v1334 = vunpack.c.l.b16 %v697
      %v1335 = vunpack.c.l.b16 %v698
      %v1336 = vunpack.c.l.b16 %v699
      %v1337 = vunpack.c.l.b16 %v700
      %v1338 = vunpack.c.l.b16 %v701
      %v1339 = vunpack.c.l.b16 %v702
      %v1340 = vunpack.c.l.b16 %v703
      %v1341 = vunpack.c.l.b16 %v704
      %v1342 = vunpack.c.l.b16 %v705
      %v1343 = vunpack.c.l.b16 %v706
      %v1344 = vunpack.c.l.b16 %v707
      %v1345 = vunpack.c.l.b16 %v708
      %v1346 = vunpack.c.l.b16 %v709
      %v1347 = vunpack.c.l.b16 %v710
      %v1348 = vunpack.c.l.b16 %v711
      %v1349 = vunpack.c.l.b16 %v712
      %v1350 = vunpack.c.l.b16 %v713
      %v1351 = vunpack.c.l.b16 %v714
      %v1352 = vunpack.c.l.b16 %v715
      %v1353 = vunpack.c.l.b16 %v716
      %v1354 = vunpack.c.l.b16 %v717
      %v1355 = vunpack.c.l.b16 %v718
      %v1356 = vunpack.c.l.b16 %v719
      %v1357 = vunpack.c.l.b16 %v720
      %v1358 = vunpack.c.l.b16 %v721
      %v1359 = vunpack.c.l.b16 %v722
      %v1360 = vunpack.c.l.b16 %v723
      %v1361 = vunpack.c.l.b16 %v724
      %v1362 = vunpack.c.l.b16 %v725
      %v1363 = vunpack.c.l.b16 %v726
      %v1364 = vunpack.c.l.b16 %v727
      %v1365 = vunpack.c.l.b16 %v728
      %v1366 = vunpack.c.l.b16 %v729
      %v1367 = vpack.c.b16 %v1320, %v1319
      %v1368 = vpack.c.b16 %v1322, %v1321
      %v1369 = vpack.c.b16 %v1324, %v1323
      %v1370 = vpack.c.b16 %v1326, %v1325
      %v1371 = vpack.c.b16 %v1328, %v1327
      %v1372 = vpack.c.b16 %v1330, %v1329
      %v1373 = vpack.c.b16 %v1332, %v1331
      %v1374 = vpack.c.b16 %v1334, %v1333
      %v1375 = vpack.c.b16 %v1336, %v1335
      %v1376 = vpack.c.b16 %v1338, %v1337
      %v1377 = vpack.c.b16 %v1340, %v1339
      %v1378 = vpack.c.b16 %v1342, %v1341
      %v1379 = vpack.c.b16 %v1344, %v1343
      %v1380 = vpack.c.b16 %v1346, %v1345
      %v1381 = vpack.c.b16 %v1348, %v1347
      %v1382 = vpack.c.b16 %v1350, %v1349
      %v1383 = vpack.c.b16 %v1352, %v1351
      %v1384 = vpack.c.b16 %v1354, %v1353
      %v1385 = vpack.c.b16 %v1356, %v1355
      %v1386 = vpack.c.b16 %v1358, %v1357
      %v1387 = vpack.c.b16 %v1360, %v1359
      %v1388 = vpack.c.b16 %v1362, %v1361
      %v1389 = vpack.c.b16 %v1364, %v1363
      %v1390 = vpack.c.b16 %v1366, %v1365
      %1415 = vmatprep.subr.bf16.mxu0 0
      %1416 = vmatpush1.bf16.msra.mxu0 %v1367
      %1417 = vmatprep.subr.bf16.mxu0 0
      %1418 = vmatpush1.bf16.msra.mxu0 %v1368
      %1419 = vmatprep.subr.bf16.mxu0 0
      %1420 = vmatpush1.bf16.msra.mxu0 %v1369
      %1421 = vmatprep.subr.bf16.mxu0 0
      %1422 = vmatpush1.bf16.msra.mxu0 %v1370
      %1423 = vmatprep.subr.bf16.mxu0 0
      %1424 = vmatpush1.bf16.msra.mxu0 %v1371
      %1425 = vmatprep.subr.bf16.mxu0 0
      %1426 = vmatpush1.bf16.msra.mxu0 %v1372
      %1427 = vmatprep.subr.bf16.mxu0 0
      %1428 = vmatpush1.bf16.msra.mxu0 %v1373
      %1429 = vmatprep.subr.bf16.mxu0 0
      %1430 = vmatpush1.bf16.msra.mxu0 %v1374
      %1431 = vmatprep.subr.bf16.mxu0 0
      %1432 = vmatpush1.bf16.msra.mxu0 %v1375
      %1433 = vmatprep.subr.bf16.mxu0 0
      %1434 = vmatpush1.bf16.msra.mxu0 %v1376
      %1435 = vmatprep.subr.bf16.mxu0 0
      %1436 = vmatpush1.bf16.msra.mxu0 %v1377
      %1437 = vmatprep.subr.bf16.mxu0 0
      %1438 = vmatpush1.bf16.msra.mxu0 %v1378
      %1439 = vmatprep.subr.bf16.mxu0 0
      %1440 = vmatpush1.bf16.msra.mxu0 %v1379
      %1441 = vmatprep.subr.bf16.mxu0 0
      %1442 = vmatpush1.bf16.msra.mxu0 %v1380
      %1443 = vmatprep.subr.bf16.mxu0 0
      %1444 = vmatpush1.bf16.msra.mxu0 %v1381
      %1445 = vmatprep.subr.bf16.mxu0 0
      %1446 = vmatpush1.bf16.msra.mxu0 %v1382
      %1447 = vmatprep.mubr.bf16.mxu0 %v420
      %1448 = vmatmul.mubr.bf16.gmra.mrb[0].mxu0 %v328
      %v1449 = vpop.f32.mrb[0].mxu0
      %v1450 = vadd.f32 %v1145, %v1449
      %v1451 = vpop.f32.mrb[0].mxu0
      %v1452 = vpop.f32.mrb[0].mxu0
      %v1453 = vadd.f32 %v1148, %v1452
      %v1454 = vpop.f32.mrb[0].mxu0
      %1455 = vmatprep.mubr.bf16.mxu0 %v432
      %1456 = vmatmul.mubr.bf16.gmra.mrb[0].mxu0 %v329
      %v1457 = vpop.f32.mrb[0].mxu0
      %v1458 = vadd.f32 %v1153, %v1457
      %v1459 = vpop.f32.mrb[0].mxu0
      %v1460 = vpop.f32.mrb[0].mxu0
      %v1461 = vadd.f32 %v1156, %v1460
      %v1462 = vpop.f32.mrb[0].mxu0
      %1463 = vmatprep.mubr.bf16.mxu0 %v444
      %1464 = vmatmul.mubr.bf16.gmra.mrb[0].mxu0 %v330
      %v1465 = vpop.f32.mrb[0].mxu0
      %v1466 = vadd.f32 %v1161, %v1465
      %v1467 = vpop.f32.mrb[0].mxu0
      %v1468 = vpop.f32.mrb[0].mxu0
      %v1469 = vadd.f32 %v1164, %v1468
      %v1470 = vpop.f32.mrb[0].mxu0
      %1471 = vmatprep.mubr.bf16.mxu0 %v456
      %1472 = vmatmul.mubr.bf16.gmra.mrb[0].mxu0 %v331
      %v1473 = vpop.f32.mrb[0].mxu0
      %v1474 = vadd.f32 %v1169, %v1473
      %v1475 = vpop.f32.mrb[0].mxu0
      %v1476 = vpop.f32.mrb[0].mxu0
      %v1477 = vadd.f32 %v1172, %v1476
      %v1478 = vpop.f32.mrb[0].mxu0
      %1479 = vmatprep.mubr.bf16.mxu0 %v468
      %1480 = vmatmul.mubr.bf16.gmra.mrb[0].mxu0 %v332
      %v1481 = vpop.f32.mrb[0].mxu0
      %v1482 = vadd.f32 %v1177, %v1481
      %v1483 = vpop.f32.mrb[0].mxu0
      %v1484 = vpop.f32.mrb[0].mxu0
      %v1485 = vadd.f32 %v1180, %v1484
      %v1486 = vpop.f32.mrb[0].mxu0
      %1487 = vmatprep.mubr.bf16.mxu0 %v480
      %1488 = vmatmul.mubr.bf16.gmra.mrb[0].mxu0 %v333
      %v1489 = vpop.f32.mrb[0].mxu0
      %v1490 = vadd.f32 %v1185, %v1489
      %v1491 = vpop.f32.mrb[0].mxu0
      %v1492 = vpop.f32.mrb[0].mxu0
      %v1493 = vadd.f32 %v1188, %v1492
      %v1494 = vpop.f32.mrb[0].mxu0
      %1495 = vmatprep.mubr.bf16.mxu0 %v492
      %1496 = vmatmul.mubr.bf16.gmra.mrb[0].mxu0 %v334
      %v1497 = vpop.f32.mrb[0].mxu0
      %v1498 = vadd.f32 %v1193, %v1497
      %v1499 = vpop.f32.mrb[0].mxu0
      %v1500 = vpop.f32.mrb[0].mxu0
      %v1501 = vadd.f32 %v1196, %v1500
      %v1502 = vpop.f32.mrb[0].mxu0
      %1503 = vmatprep.mubr.bf16.mxu0 %v504
      %1504 = vmatmul.mubr.bf16.gmra.mrb[0].mxu0 %v335
      %v1505 = vpop.f32.mrb[0].mxu0
      %v1506 = vadd.f32 %v1201, %v1505
      %v1507 = vpop.f32.mrb[0].mxu0
      %v1508 = vpop.f32.mrb[0].mxu0
      %v1509 = vadd.f32 %v1204, %v1508
      %v1510 = vpop.f32.mrb[0].mxu0
      %1511 = vmatprep.mubr.bf16.mxu0 %v516
      %1512 = vmatmul.mubr.bf16.gmra.mrb[0].mxu0 %v336
      %v1513 = vpop.f32.mrb[0].mxu0
      %v1514 = vadd.f32 %v1209, %v1513
      %v1515 = vpop.f32.mrb[0].mxu0
      %v1516 = vpop.f32.mrb[0].mxu0
      %v1517 = vadd.f32 %v1212, %v1516
      %v1518 = vpop.f32.mrb[0].mxu0
      %1519 = vmatprep.mubr.bf16.mxu0 %v528
      %1520 = vmatmul.mubr.bf16.gmra.mrb[0].mxu0 %v337
      %v1521 = vpop.f32.mrb[0].mxu0
      %v1522 = vadd.f32 %v1217, %v1521
      %v1523 = vpop.f32.mrb[0].mxu0
      %v1524 = vpop.f32.mrb[0].mxu0
      %v1525 = vadd.f32 %v1220, %v1524
      %v1526 = vpop.f32.mrb[0].mxu0
      %1527 = vmatprep.mubr.bf16.mxu0 %v540
      %1528 = vmatmul.mubr.bf16.gmra.mrb[0].mxu0 %v338
      %v1529 = vpop.f32.mrb[0].mxu0
      %v1530 = vadd.f32 %v1225, %v1529
      %v1531 = vpop.f32.mrb[0].mxu0
      %v1532 = vpop.f32.mrb[0].mxu0
      %v1533 = vadd.f32 %v1228, %v1532
      %v1534 = vpop.f32.mrb[0].mxu0
      %1535 = vmatprep.mubr.bf16.mxu0 %v552
      %1536 = vmatmul.mubr.bf16.gmra.mrb[0].mxu0 %v339
      %v1537 = vpop.f32.mrb[0].mxu0
      %v1538 = vadd.f32 %v1233, %v1537
      %v1539 = vpop.f32.mrb[0].mxu0
      %v1540 = vpop.f32.mrb[0].mxu0
      %v1541 = vadd.f32 %v1236, %v1540
      %v1542 = vpop.f32.mrb[0].mxu0
      %1543 = vmatprep.mubr.bf16.mxu0 %v564
      %1544 = vmatmul.mubr.bf16.gmra.mrb[0].mxu0 %v340
      %v1545 = vpop.f32.mrb[0].mxu0
      %v1546 = vadd.f32 %v1241, %v1545
      %v1547 = vpop.f32.mrb[0].mxu0
      %v1548 = vpop.f32.mrb[0].mxu0
      %v1549 = vadd.f32 %v1244, %v1548
      %v1550 = vpop.f32.mrb[0].mxu0
      %1551 = vmatprep.mubr.bf16.mxu0 %v576
      %1552 = vmatmul.mubr.bf16.gmra.mrb[0].mxu0 %v341
      %v1553 = vpop.f32.mrb[0].mxu0
      %v1554 = vadd.f32 %v1249, %v1553
      %v1555 = vpop.f32.mrb[0].mxu0
      %v1556 = vpop.f32.mrb[0].mxu0
      %v1557 = vadd.f32 %v1252, %v1556
      %v1558 = vpop.f32.mrb[0].mxu0
      %1559 = vmatprep.mubr.bf16.mxu0 %v588
      %1560 = vmatmul.mubr.bf16.gmra.mrb[0].mxu0 %v342
      %v1561 = vpop.f32.mrb[0].mxu0
      %v1562 = vadd.f32 %v1257, %v1561
      %v1563 = vpop.f32.mrb[0].mxu0
      %v1564 = vpop.f32.mrb[0].mxu0
      %v1565 = vadd.f32 %v1260, %v1564
      %v1566 = vpop.f32.mrb[0].mxu0
      %1567 = vmatprep.mubr.bf16.mxu0 %v600
      %1568 = vmatmul.mubr.bf16.gmra.mrb[0].mxu0 %v343
      %v1569 = vpop.f32.mrb[0].mxu0
      %v1570 = vadd.f32 %v1265, %v1569
      %v1571 = vpop.f32.mrb[0].mxu0
      %v1572 = vpop.f32.mrb[0].mxu0
      %v1573 = vadd.f32 %v1268, %v1572
      %v1574 = vpop.f32.mrb[0].mxu0
      %1575 = vdwg.mxu0
      %1576 = vmatprep.subr.bf16.mxu0 0
      %1577 = vmatpush1.bf16.msra.mxu0 %v1383
      %1578 = vmatprep.subr.bf16.mxu0 0
      %1579 = vmatpush1.bf16.msra.mxu0 %v1384
      %1580 = vmatprep.subr.bf16.mxu0 0
      %1581 = vmatpush1.bf16.msra.mxu0 %v1385
      %1582 = vmatprep.subr.bf16.mxu0 0
      %1583 = vmatpush1.bf16.msra.mxu0 %v1386
      %1584 = vmatprep.subr.bf16.mxu0 0
      %1585 = vmatpush1.bf16.msra.mxu0 %v1387
      %1586 = vmatprep.subr.bf16.mxu0 0
      %1587 = vmatpush1.bf16.msra.mxu0 %v1388
      %1588 = vmatprep.subr.bf16.mxu0 0
      %1589 = vmatpush1.bf16.msra.mxu0 %v1389
      %1590 = vmatprep.subr.bf16.mxu0 0
      %1591 = vmatpush1.bf16.msra.mxu0 %v1390
      %1592 = vmatprep.subr.bf16.mxu0 0
      %1593 = vmatpush1.bf16.msra.mxu0 0
      %1594 = vmatprep.subr.bf16.mxu0 0
      %1595 = vmatpush1.bf16.msra.mxu0 0
      %1596 = vmatprep.subr.bf16.mxu0 0
      %1597 = vmatpush1.bf16.msra.mxu0 0
      %1598 = vmatprep.subr.bf16.mxu0 0
      %1599 = vmatpush1.bf16.msra.mxu0 0
      %1600 = vmatprep.subr.bf16.mxu0 0
      %1601 = vmatpush1.bf16.msra.mxu0 0
      %1602 = vmatprep.subr.bf16.mxu0 0
      %1603 = vmatpush1.bf16.msra.mxu0 0
      %1604 = vmatprep.subr.bf16.mxu0 0
      %1605 = vmatpush1.bf16.msra.mxu0 0
      %1606 = vmatprep.subr.bf16.mxu0 0
      %1607 = vmatpush1.bf16.msra.mxu0 0
      %1608 = vmatprep.mubr.bf16.mxu0 0
      %1609 = vmatmul.mubr.bf16.gmra.mrb[0].mxu0 %v620
      %v1610 = vpop.f32.mrb[0].mxu0
      %v1611 = vadd.f32 %v1450, %v1610
      %v1612 = vpop.f32.mrb[0].mxu0
      %v1613 = vpop.f32.mrb[0].mxu0
      %v1614 = vadd.f32 %v1453, %v1613
      %v1615 = vpop.f32.mrb[0].mxu0
      %1616 = vmatprep.mubr.bf16.mxu0 0
      %1617 = vmatmul.mubr.bf16.gmra.mrb[0].mxu0 %v623
      %v1618 = vpop.f32.mrb[0].mxu0
      %v1619 = vadd.f32 %v1458, %v1618
      %v1620 = vpop.f32.mrb[0].mxu0
      %v1621 = vpop.f32.mrb[0].mxu0
      %v1622 = vadd.f32 %v1461, %v1621
      %v1623 = vpop.f32.mrb[0].mxu0
      %1624 = vmatprep.mubr.bf16.mxu0 0
      %1625 = vmatmul.mubr.bf16.gmra.mrb[0].mxu0 %v626
      %v1626 = vpop.f32.mrb[0].mxu0
      %v1627 = vadd.f32 %v1466, %v1626
      %v1628 = vpop.f32.mrb[0].mxu0
      %v1629 = vpop.f32.mrb[0].mxu0
      %v1630 = vadd.f32 %v1469, %v1629
      %v1631 = vpop.f32.mrb[0].mxu0
      %1632 = vmatprep.mubr.bf16.mxu0 0
      %1633 = vmatmul.mubr.bf16.gmra.mrb[0].mxu0 %v629
      %v1634 = vpop.f32.mrb[0].mxu0
      %v1635 = vadd.f32 %v1474, %v1634
      %v1636 = vpop.f32.mrb[0].mxu0
      %v1637 = vpop.f32.mrb[0].mxu0
      %v1638 = vadd.f32 %v1477, %v1637
      %v1639 = vpop.f32.mrb[0].mxu0
      %1640 = vmatprep.mubr.bf16.mxu0 0
      %1641 = vmatmul.mubr.bf16.gmra.mrb[0].mxu0 %v632
      %v1642 = vpop.f32.mrb[0].mxu0
      %v1643 = vadd.f32 %v1482, %v1642
      %v1644 = vpop.f32.mrb[0].mxu0
      %v1645 = vpop.f32.mrb[0].mxu0
      %v1646 = vadd.f32 %v1485, %v1645
      %v1647 = vpop.f32.mrb[0].mxu0
      %1648 = vmatprep.mubr.bf16.mxu0 0
      %1649 = vmatmul.mubr.bf16.gmra.mrb[0].mxu0 %v635
      %v1650 = vpop.f32.mrb[0].mxu0
      %v1651 = vadd.f32 %v1490, %v1650
      %v1652 = vpop.f32.mrb[0].mxu0
      %v1653 = vpop.f32.mrb[0].mxu0
      %v1654 = vadd.f32 %v1493, %v1653
      %v1655 = vpop.f32.mrb[0].mxu0
      %1656 = vmatprep.mubr.bf16.mxu0 0
      %1657 = vmatmul.mubr.bf16.gmra.mrb[0].mxu0 %v638
      %v1658 = vpop.f32.mrb[0].mxu0
      %v1659 = vadd.f32 %v1498, %v1658
      %v1660 = vpop.f32.mrb[0].mxu0
      %v1661 = vpop.f32.mrb[0].mxu0
      %v1662 = vadd.f32 %v1501, %v1661
      %v1663 = vpop.f32.mrb[0].mxu0
      %1664 = vmatprep.mubr.bf16.mxu0 0
      %1665 = vmatmul.mubr.bf16.gmra.mrb[0].mxu0 %v641
      %v1666 = vpop.f32.mrb[0].mxu0
      %v1667 = vadd.f32 %v1506, %v1666
      %v1668 = vpop.f32.mrb[0].mxu0
      %v1669 = vpop.f32.mrb[0].mxu0
      %v1670 = vadd.f32 %v1509, %v1669
      %v1671 = vpop.f32.mrb[0].mxu0
      %1672 = vmatprep.mubr.bf16.mxu0 0
      %1673 = vmatmul.mubr.bf16.gmra.mrb[0].mxu0 %v644
      %v1674 = vpop.f32.mrb[0].mxu0
      %v1675 = vadd.f32 %v1514, %v1674
      %v1676 = vpop.f32.mrb[0].mxu0
      %v1677 = vpop.f32.mrb[0].mxu0
      %v1678 = vadd.f32 %v1517, %v1677
      %v1679 = vpop.f32.mrb[0].mxu0
      %1680 = vmatprep.mubr.bf16.mxu0 0
      %1681 = vmatmul.mubr.bf16.gmra.mrb[0].mxu0 %v647
      %v1682 = vpop.f32.mrb[0].mxu0
      %v1683 = vadd.f32 %v1522, %v1682
      %v1684 = vpop.f32.mrb[0].mxu0
      %v1685 = vpop.f32.mrb[0].mxu0
      %v1686 = vadd.f32 %v1525, %v1685
      %v1687 = vpop.f32.mrb[0].mxu0
      %1688 = vmatprep.mubr.bf16.mxu0 0
      %1689 = vmatmul.mubr.bf16.gmra.mrb[0].mxu0 %v650
      %v1690 = vpop.f32.mrb[0].mxu0
      %v1691 = vadd.f32 %v1530, %v1690
      %v1692 = vpop.f32.mrb[0].mxu0
      %v1693 = vpop.f32.mrb[0].mxu0
      %v1694 = vadd.f32 %v1533, %v1693
      %v1695 = vpop.f32.mrb[0].mxu0
      %1696 = vmatprep.mubr.bf16.mxu0 0
      %1697 = vmatmul.mubr.bf16.gmra.mrb[0].mxu0 %v653
      %v1698 = vpop.f32.mrb[0].mxu0
      %v1699 = vadd.f32 %v1538, %v1698
      %v1700 = vpop.f32.mrb[0].mxu0
      %v1701 = vpop.f32.mrb[0].mxu0
      %v1702 = vadd.f32 %v1541, %v1701
      %v1703 = vpop.f32.mrb[0].mxu0
      %1704 = vmatprep.mubr.bf16.mxu0 0
      %1705 = vmatmul.mubr.bf16.gmra.mrb[0].mxu0 %v656
      %v1706 = vpop.f32.mrb[0].mxu0
      %v1707 = vadd.f32 %v1546, %v1706
      %v1708 = vpop.f32.mrb[0].mxu0
      %v1709 = vpop.f32.mrb[0].mxu0
      %v1710 = vadd.f32 %v1549, %v1709
      %v1711 = vpop.f32.mrb[0].mxu0
      %1712 = vmatprep.mubr.bf16.mxu0 0
      %1713 = vmatmul.mubr.bf16.gmra.mrb[0].mxu0 %v659
      %v1714 = vpop.f32.mrb[0].mxu0
      %v1715 = vadd.f32 %v1554, %v1714
      %v1716 = vpop.f32.mrb[0].mxu0
      %v1717 = vpop.f32.mrb[0].mxu0
      %v1718 = vadd.f32 %v1557, %v1717
      %v1719 = vpop.f32.mrb[0].mxu0
      %1720 = vmatprep.mubr.bf16.mxu0 0
      %1721 = vmatmul.mubr.bf16.gmra.mrb[0].mxu0 %v662
      %v1722 = vpop.f32.mrb[0].mxu0
      %v1723 = vadd.f32 %v1562, %v1722
      %v1724 = vpop.f32.mrb[0].mxu0
      %v1725 = vpop.f32.mrb[0].mxu0
      %v1726 = vadd.f32 %v1565, %v1725
      %v1727 = vpop.f32.mrb[0].mxu0
      %1728 = vmatprep.mubr.bf16.mxu0 0
      %1729 = vmatmul.mubr.bf16.gmra.mrb[0].mxu0 %v665
      %v1730 = vpop.f32.mrb[0].mxu0
      %v1731 = vadd.f32 %v1570, %v1730
      %v1732 = vpop.f32.mrb[0].mxu0
      %v1733 = vpop.f32.mrb[0].mxu0
      %v1734 = vadd.f32 %v1573, %v1733
      %v1735 = vpop.f32.mrb[0].mxu0
      %1736 = vdwg.mxu0
      %v1739 = vunpack.c.l.b16 %v261
      %v1740 = vunpack.c.l.b16 %v262
      %v1741 = vpack.c.b16 %v1740, %v1739
      %v1744 = vunpack.c.l.b16 %v263
      %v1745 = vpack.c.b16 %v1744, %v1744
      %v1747 = vshrl.u32 %v1741, 16
      %v1749 = vshll.u32 %v1741, 16
      %v1751 = vrot.slane %v1749, 1
      %v1752 = vor.u32 %v1747, %v1751
      %v1754 = vshll.u32 %v1745, 16
      %v1756 = vrot.slane %v1754, 1
      %v1757 = vsel %vm408, %v1752, %v1756
      %v1759 = vrot.slane %v1741, 1
      %v1760 = vrot.slane %v1745, 1
      %v1761 = vsel %vm617, %v1759, %v1760
      %s1763 = scalar_lea.vmem %s1, 384
      %v1764 = vld [vmem:[%s1763] sm:$0xf]
      %v1765 = vld [vmem:[%s1763 + $0x4] sm:$0xf]
      %v1766 = vld [vmem:[%s1763 + $0x8] sm:$0xf]
      %v1767 = vld [vmem:[%s1763 + $0xc] sm:$0xf]
      %v1768 = vld [vmem:[%s1763 + $0x10] sm:$0xf]
      %v1769 = vld [vmem:[%s1763 + $0x14] sm:$0xf]
      %v1770 = vld [vmem:[%s1763 + $0x18] sm:$0xf]
      %v1771 = vld [vmem:[%s1763 + $0x1c] sm:$0xf]
      %v1772 = vld [vmem:[%s1763 + $0x20] sm:$0xf]
      %v1773 = vld [vmem:[%s1763 + $0x24] sm:$0xf]
      %v1774 = vld [vmem:[%s1763 + $0x28] sm:$0xf]
      %v1775 = vld [vmem:[%s1763 + $0x2c] sm:$0xf]
      %v1776 = vld [vmem:[%s1763 + $0x30] sm:$0xf]
      %v1777 = vld [vmem:[%s1763 + $0x34] sm:$0xf]
      %v1778 = vld [vmem:[%s1763 + $0x38] sm:$0xf]
      %v1779 = vld [vmem:[%s1763 + $0x3c] sm:$0xf]
      %v1780 = vld [vmem:[%s1763 + $0x40] sm:$0xf]
      %v1781 = vld [vmem:[%s1763 + $0x44] sm:$0xf]
      %v1782 = vld [vmem:[%s1763 + $0x48] sm:$0xf]
      %v1783 = vld [vmem:[%s1763 + $0x4c] sm:$0xf]
      %v1784 = vld [vmem:[%s1763 + $0x50] sm:$0xf]
      %v1785 = vld [vmem:[%s1763 + $0x54] sm:$0xf]
      %v1786 = vld [vmem:[%s1763 + $0x58] sm:$0xf]
      %v1787 = vld [vmem:[%s1763 + $0x5c] sm:$0xf]
      %v1788 = vld [vmem:[%s1763 + $0x60] sm:$0xf]
      %v1789 = vld [vmem:[%s1763 + $0x64] sm:$0xf]
      %v1790 = vld [vmem:[%s1763 + $0x68] sm:$0xf]
      %v1791 = vld [vmem:[%s1763 + $0x6c] sm:$0xf]
      %v1792 = vld [vmem:[%s1763 + $0x70] sm:$0xf]
      %v1793 = vld [vmem:[%s1763 + $0x74] sm:$0xf]
      %v1794 = vld [vmem:[%s1763 + $0x78] sm:$0xf]
      %v1795 = vld [vmem:[%s1763 + $0x7c] sm:$0xf]
      %v1796 = vld [vmem:[%s1763 + $0x80] sm:$0xf]
      %v1797 = vld [vmem:[%s1763 + $0x84] sm:$0xf]
      %v1798 = vld [vmem:[%s1763 + $0x88] sm:$0xf]
      %v1799 = vld [vmem:[%s1763 + $0x8c] sm:$0xf]
      %v1800 = vld [vmem:[%s1763 + $0x90] sm:$0xf]
      %v1801 = vld [vmem:[%s1763 + $0x94] sm:$0xf]
      %v1802 = vld [vmem:[%s1763 + $0x98] sm:$0xf]
      %v1803 = vld [vmem:[%s1763 + $0x9c] sm:$0xf]
      %v1804 = vld [vmem:[%s1763 + $0xa0] sm:$0xf]
      %v1805 = vld [vmem:[%s1763 + $0xa4] sm:$0xf]
      %v1806 = vld [vmem:[%s1763 + $0xa8] sm:$0xf]
      %v1807 = vld [vmem:[%s1763 + $0xac] sm:$0xf]
      %v1808 = vld [vmem:[%s1763 + $0xb0] sm:$0xf]
      %v1809 = vld [vmem:[%s1763 + $0xb4] sm:$0xf]
      %v1810 = vld [vmem:[%s1763 + $0xb8] sm:$0xf]
      %v1811 = vld [vmem:[%s1763 + $0xbc] sm:$0xf]
      %v1860 = vunpack.c.l.b16 %v1764
      %v1861 = vunpack.c.l.b16 %v1765
      %v1862 = vunpack.c.l.b16 %v1766
      %v1863 = vunpack.c.l.b16 %v1767
      %v1864 = vunpack.c.l.b16 %v1768
      %v1865 = vunpack.c.l.b16 %v1769
      %v1866 = vunpack.c.l.b16 %v1770
      %v1867 = vunpack.c.l.b16 %v1771
      %v1868 = vunpack.c.l.b16 %v1772
      %v1869 = vunpack.c.l.b16 %v1773
      %v1870 = vunpack.c.l.b16 %v1774
      %v1871 = vunpack.c.l.b16 %v1775
      %v1872 = vunpack.c.l.b16 %v1776
      %v1873 = vunpack.c.l.b16 %v1777
      %v1874 = vunpack.c.l.b16 %v1778
      %v1875 = vunpack.c.l.b16 %v1779
      %v1876 = vunpack.c.l.b16 %v1780
      %v1877 = vunpack.c.l.b16 %v1781
      %v1878 = vunpack.c.l.b16 %v1782
      %v1879 = vunpack.c.l.b16 %v1783
      %v1880 = vunpack.c.l.b16 %v1784
      %v1881 = vunpack.c.l.b16 %v1785
      %v1882 = vunpack.c.l.b16 %v1786
      %v1883 = vunpack.c.l.b16 %v1787
      %v1884 = vunpack.c.l.b16 %v1788
      %v1885 = vunpack.c.l.b16 %v1789
      %v1886 = vunpack.c.l.b16 %v1790
      %v1887 = vunpack.c.l.b16 %v1791
      %v1888 = vunpack.c.l.b16 %v1792
      %v1889 = vunpack.c.l.b16 %v1793
      %v1890 = vunpack.c.l.b16 %v1794
      %v1891 = vunpack.c.l.b16 %v1795
      %v1892 = vunpack.c.l.b16 %v1796
      %v1893 = vunpack.c.l.b16 %v1797
      %v1894 = vunpack.c.l.b16 %v1798
      %v1895 = vunpack.c.l.b16 %v1799
      %v1896 = vunpack.c.l.b16 %v1800
      %v1897 = vunpack.c.l.b16 %v1801
      %v1898 = vunpack.c.l.b16 %v1802
      %v1899 = vunpack.c.l.b16 %v1803
      %v1900 = vunpack.c.l.b16 %v1804
      %v1901 = vunpack.c.l.b16 %v1805
      %v1902 = vunpack.c.l.b16 %v1806
      %v1903 = vunpack.c.l.b16 %v1807
      %v1904 = vunpack.c.l.b16 %v1808
      %v1905 = vunpack.c.l.b16 %v1809
      %v1906 = vunpack.c.l.b16 %v1810
      %v1907 = vunpack.c.l.b16 %v1811
      %v1908 = vpack.c.b16 %v1861, %v1860
      %v1909 = vpack.c.b16 %v1863, %v1862
      %v1910 = vpack.c.b16 %v1865, %v1864
      %v1911 = vpack.c.b16 %v1867, %v1866
      %v1912 = vpack.c.b16 %v1869, %v1868
      %v1913 = vpack.c.b16 %v1871, %v1870
      %v1914 = vpack.c.b16 %v1873, %v1872
      %v1915 = vpack.c.b16 %v1875, %v1874
      %v1916 = vpack.c.b16 %v1877, %v1876
      %v1917 = vpack.c.b16 %v1879, %v1878
      %v1918 = vpack.c.b16 %v1881, %v1880
      %v1919 = vpack.c.b16 %v1883, %v1882
      %v1920 = vpack.c.b16 %v1885, %v1884
      %v1921 = vpack.c.b16 %v1887, %v1886
      %v1922 = vpack.c.b16 %v1889, %v1888
      %v1923 = vpack.c.b16 %v1891, %v1890
      %v1924 = vpack.c.b16 %v1893, %v1892
      %v1925 = vpack.c.b16 %v1895, %v1894
      %v1926 = vpack.c.b16 %v1897, %v1896
      %v1927 = vpack.c.b16 %v1899, %v1898
      %v1928 = vpack.c.b16 %v1901, %v1900
      %v1929 = vpack.c.b16 %v1903, %v1902
      %v1930 = vpack.c.b16 %v1905, %v1904
      %v1931 = vpack.c.b16 %v1907, %v1906
      %1956 = vmatprep.subr.bf16.mxu0 0
      %1957 = vmatpush1.bf16.msra.mxu0 %v1908
      %1958 = vmatprep.subr.bf16.mxu0 0
      %1959 = vmatpush1.bf16.msra.mxu0 %v1909
      %1960 = vmatprep.subr.bf16.mxu0 0
      %1961 = vmatpush1.bf16.msra.mxu0 %v1910
      %1962 = vmatprep.subr.bf16.mxu0 0
      %1963 = vmatpush1.bf16.msra.mxu0 %v1911
      %1964 = vmatprep.subr.bf16.mxu0 0
      %1965 = vmatpush1.bf16.msra.mxu0 %v1912
      %1966 = vmatprep.subr.bf16.mxu0 0
      %1967 = vmatpush1.bf16.msra.mxu0 %v1913
      %1968 = vmatprep.subr.bf16.mxu0 0
      %1969 = vmatpush1.bf16.msra.mxu0 %v1914
      %1970 = vmatprep.subr.bf16.mxu0 0
      %1971 = vmatpush1.bf16.msra.mxu0 %v1915
      %1972 = vmatprep.subr.bf16.mxu0 0
      %1973 = vmatpush1.bf16.msra.mxu0 %v1916
      %1974 = vmatprep.subr.bf16.mxu0 0
      %1975 = vmatpush1.bf16.msra.mxu0 %v1917
      %1976 = vmatprep.subr.bf16.mxu0 0
      %1977 = vmatpush1.bf16.msra.mxu0 %v1918
      %1978 = vmatprep.subr.bf16.mxu0 0
      %1979 = vmatpush1.bf16.msra.mxu0 %v1919
      %1980 = vmatprep.subr.bf16.mxu0 0
      %1981 = vmatpush1.bf16.msra.mxu0 %v1920
      %1982 = vmatprep.subr.bf16.mxu0 0
      %1983 = vmatpush1.bf16.msra.mxu0 %v1921
      %1984 = vmatprep.subr.bf16.mxu0 0
      %1985 = vmatpush1.bf16.msra.mxu0 %v1922
      %1986 = vmatprep.subr.bf16.mxu0 0
      %1987 = vmatpush1.bf16.msra.mxu0 %v1923
      %1988 = vmatprep.mubr.bf16.mxu0 %v444
      %1989 = vmatmul.mubr.bf16.gmra.mrb[0].mxu0 %v330
      %v1990 = vpop.f32.mrb[0].mxu0
      %v1991 = vadd.f32 0.0, %v1990
      %v1992 = vpop.f32.mrb[0].mxu0
      %v1993 = vpop.f32.mrb[0].mxu0
      %v1994 = vadd.f32 0.0, %v1993
      %v1995 = vpop.f32.mrb[0].mxu0
      %1996 = vmatprep.mubr.bf16.mxu0 %v456
      %1997 = vmatmul.mubr.bf16.gmra.mrb[0].mxu0 %v331
      %v1998 = vpop.f32.mrb[0].mxu0
      %v1999 = vadd.f32 0.0, %v1998
      %v2000 = vpop.f32.mrb[0].mxu0
      %v2001 = vpop.f32.mrb[0].mxu0
      %v2002 = vadd.f32 0.0, %v2001
      %v2003 = vpop.f32.mrb[0].mxu0
      %2004 = vmatprep.mubr.bf16.mxu0 %v468
      %2005 = vmatmul.mubr.bf16.gmra.mrb[0].mxu0 %v332
      %v2006 = vpop.f32.mrb[0].mxu0
      %v2007 = vadd.f32 0.0, %v2006
      %v2008 = vpop.f32.mrb[0].mxu0
      %v2009 = vpop.f32.mrb[0].mxu0
      %v2010 = vadd.f32 0.0, %v2009
      %v2011 = vpop.f32.mrb[0].mxu0
      %2012 = vmatprep.mubr.bf16.mxu0 %v480
      %2013 = vmatmul.mubr.bf16.gmra.mrb[0].mxu0 %v333
      %v2014 = vpop.f32.mrb[0].mxu0
      %v2015 = vadd.f32 0.0, %v2014
      %v2016 = vpop.f32.mrb[0].mxu0
      %v2017 = vpop.f32.mrb[0].mxu0
      %v2018 = vadd.f32 0.0, %v2017
      %v2019 = vpop.f32.mrb[0].mxu0
      %2020 = vmatprep.mubr.bf16.mxu0 %v492
      %2021 = vmatmul.mubr.bf16.gmra.mrb[0].mxu0 %v334
      %v2022 = vpop.f32.mrb[0].mxu0
      %v2023 = vadd.f32 0.0, %v2022
      %v2024 = vpop.f32.mrb[0].mxu0
      %v2025 = vpop.f32.mrb[0].mxu0
      %v2026 = vadd.f32 0.0, %v2025
      %v2027 = vpop.f32.mrb[0].mxu0
      %2028 = vmatprep.mubr.bf16.mxu0 %v504
      %2029 = vmatmul.mubr.bf16.gmra.mrb[0].mxu0 %v335
      %v2030 = vpop.f32.mrb[0].mxu0
      %v2031 = vadd.f32 0.0, %v2030
      %v2032 = vpop.f32.mrb[0].mxu0
      %v2033 = vpop.f32.mrb[0].mxu0
      %v2034 = vadd.f32 0.0, %v2033
      %v2035 = vpop.f32.mrb[0].mxu0
      %2036 = vmatprep.mubr.bf16.mxu0 %v516
      %2037 = vmatmul.mubr.bf16.gmra.mrb[0].mxu0 %v336
      %v2038 = vpop.f32.mrb[0].mxu0
      %v2039 = vadd.f32 0.0, %v2038
      %v2040 = vpop.f32.mrb[0].mxu0
      %v2041 = vpop.f32.mrb[0].mxu0
      %v2042 = vadd.f32 0.0, %v2041
      %v2043 = vpop.f32.mrb[0].mxu0
      %2044 = vmatprep.mubr.bf16.mxu0 %v528
      %2045 = vmatmul.mubr.bf16.gmra.mrb[0].mxu0 %v337
      %v2046 = vpop.f32.mrb[0].mxu0
      %v2047 = vadd.f32 0.0, %v2046
      %v2048 = vpop.f32.mrb[0].mxu0
      %v2049 = vpop.f32.mrb[0].mxu0
      %v2050 = vadd.f32 0.0, %v2049
      %v2051 = vpop.f32.mrb[0].mxu0
      %2052 = vmatprep.mubr.bf16.mxu0 %v540
      %2053 = vmatmul.mubr.bf16.gmra.mrb[0].mxu0 %v338
      %v2054 = vpop.f32.mrb[0].mxu0
      %v2055 = vadd.f32 0.0, %v2054
      %v2056 = vpop.f32.mrb[0].mxu0
      %v2057 = vpop.f32.mrb[0].mxu0
      %v2058 = vadd.f32 0.0, %v2057
      %v2059 = vpop.f32.mrb[0].mxu0
      %2060 = vmatprep.mubr.bf16.mxu0 %v552
      %2061 = vmatmul.mubr.bf16.gmra.mrb[0].mxu0 %v339
      %v2062 = vpop.f32.mrb[0].mxu0
      %v2063 = vadd.f32 0.0, %v2062
      %v2064 = vpop.f32.mrb[0].mxu0
      %v2065 = vpop.f32.mrb[0].mxu0
      %v2066 = vadd.f32 0.0, %v2065
      %v2067 = vpop.f32.mrb[0].mxu0
      %2068 = vmatprep.mubr.bf16.mxu0 %v564
      %2069 = vmatmul.mubr.bf16.gmra.mrb[0].mxu0 %v340
      %v2070 = vpop.f32.mrb[0].mxu0
      %v2071 = vadd.f32 0.0, %v2070
      %v2072 = vpop.f32.mrb[0].mxu0
      %v2073 = vpop.f32.mrb[0].mxu0
      %v2074 = vadd.f32 0.0, %v2073
      %v2075 = vpop.f32.mrb[0].mxu0
      %2076 = vmatprep.mubr.bf16.mxu0 %v576
      %2077 = vmatmul.mubr.bf16.gmra.mrb[0].mxu0 %v341
      %v2078 = vpop.f32.mrb[0].mxu0
      %v2079 = vadd.f32 0.0, %v2078
      %v2080 = vpop.f32.mrb[0].mxu0
      %v2081 = vpop.f32.mrb[0].mxu0
      %v2082 = vadd.f32 0.0, %v2081
      %v2083 = vpop.f32.mrb[0].mxu0
      %2084 = vmatprep.mubr.bf16.mxu0 %v588
      %2085 = vmatmul.mubr.bf16.gmra.mrb[0].mxu0 %v342
      %v2086 = vpop.f32.mrb[0].mxu0
      %v2087 = vadd.f32 0.0, %v2086
      %v2088 = vpop.f32.mrb[0].mxu0
      %v2089 = vpop.f32.mrb[0].mxu0
      %v2090 = vadd.f32 0.0, %v2089
      %v2091 = vpop.f32.mrb[0].mxu0
      %2092 = vmatprep.mubr.bf16.mxu0 %v600
      %2093 = vmatmul.mubr.bf16.gmra.mrb[0].mxu0 %v343
      %v2094 = vpop.f32.mrb[0].mxu0
      %v2095 = vadd.f32 0.0, %v2094
      %v2096 = vpop.f32.mrb[0].mxu0
      %v2097 = vpop.f32.mrb[0].mxu0
      %v2098 = vadd.f32 0.0, %v2097
      %v2099 = vpop.f32.mrb[0].mxu0
      %2100 = vmatprep.mubr.bf16.mxu0 %v750
      %2101 = vmatmul.mubr.bf16.gmra.mrb[0].mxu0 %v734
      %v2102 = vpop.f32.mrb[0].mxu0
      %v2103 = vadd.f32 0.0, %v2102
      %v2104 = vpop.f32.mrb[0].mxu0
      %v2105 = vpop.f32.mrb[0].mxu0
      %v2106 = vadd.f32 0.0, %v2105
      %v2107 = vpop.f32.mrb[0].mxu0
      %2108 = vmatprep.mubr.bf16.mxu0 %v1757
      %2109 = vmatmul.mubr.bf16.gmra.mrb[0].mxu0 %v1741
      %v2110 = vpop.f32.mrb[0].mxu0
      %v2111 = vadd.f32 0.0, %v2110
      %v2112 = vpop.f32.mrb[0].mxu0
      %v2113 = vpop.f32.mrb[0].mxu0
      %v2114 = vadd.f32 0.0, %v2113
      %v2115 = vpop.f32.mrb[0].mxu0
      %2116 = vdwg.mxu0
      %2117 = vmatprep.subr.bf16.mxu0 0
      %2118 = vmatpush1.bf16.msra.mxu0 %v1924
      %2119 = vmatprep.subr.bf16.mxu0 0
      %2120 = vmatpush1.bf16.msra.mxu0 %v1925
      %2121 = vmatprep.subr.bf16.mxu0 0
      %2122 = vmatpush1.bf16.msra.mxu0 %v1926
      %2123 = vmatprep.subr.bf16.mxu0 0
      %2124 = vmatpush1.bf16.msra.mxu0 %v1927
      %2125 = vmatprep.subr.bf16.mxu0 0
      %2126 = vmatpush1.bf16.msra.mxu0 %v1928
      %2127 = vmatprep.subr.bf16.mxu0 0
      %2128 = vmatpush1.bf16.msra.mxu0 %v1929
      %2129 = vmatprep.subr.bf16.mxu0 0
      %2130 = vmatpush1.bf16.msra.mxu0 %v1930
      %2131 = vmatprep.subr.bf16.mxu0 0
      %2132 = vmatpush1.bf16.msra.mxu0 %v1931
      %2133 = vmatprep.subr.bf16.mxu0 0
      %2134 = vmatpush1.bf16.msra.mxu0 0
      %2135 = vmatprep.subr.bf16.mxu0 0
      %2136 = vmatpush1.bf16.msra.mxu0 0
      %2137 = vmatprep.subr.bf16.mxu0 0
      %2138 = vmatpush1.bf16.msra.mxu0 0
      %2139 = vmatprep.subr.bf16.mxu0 0
      %2140 = vmatpush1.bf16.msra.mxu0 0
      %2141 = vmatprep.subr.bf16.mxu0 0
      %2142 = vmatpush1.bf16.msra.mxu0 0
      %2143 = vmatprep.subr.bf16.mxu0 0
      %2144 = vmatpush1.bf16.msra.mxu0 0
      %2145 = vmatprep.subr.bf16.mxu0 0
      %2146 = vmatpush1.bf16.msra.mxu0 0
      %2147 = vmatprep.subr.bf16.mxu0 0
      %2148 = vmatpush1.bf16.msra.mxu0 0
      %2149 = vmatprep.mubr.bf16.mxu0 0
      %2150 = vmatmul.mubr.bf16.gmra.mrb[0].mxu0 %v626
      %v2151 = vpop.f32.mrb[0].mxu0
      %v2152 = vadd.f32 %v1991, %v2151
      %v2153 = vpop.f32.mrb[0].mxu0
      %v2154 = vpop.f32.mrb[0].mxu0
      %v2155 = vadd.f32 %v1994, %v2154
      %v2156 = vpop.f32.mrb[0].mxu0
      %2157 = vmatprep.mubr.bf16.mxu0 0
      %2158 = vmatmul.mubr.bf16.gmra.mrb[0].mxu0 %v629
      %v2159 = vpop.f32.mrb[0].mxu0
      %v2160 = vadd.f32 %v1999, %v2159
      %v2161 = vpop.f32.mrb[0].mxu0
      %v2162 = vpop.f32.mrb[0].mxu0
      %v2163 = vadd.f32 %v2002, %v2162
      %v2164 = vpop.f32.mrb[0].mxu0
      %2165 = vmatprep.mubr.bf16.mxu0 0
      %2166 = vmatmul.mubr.bf16.gmra.mrb[0].mxu0 %v632
      %v2167 = vpop.f32.mrb[0].mxu0
      %v2168 = vadd.f32 %v2007, %v2167
      %v2169 = vpop.f32.mrb[0].mxu0
      %v2170 = vpop.f32.mrb[0].mxu0
      %v2171 = vadd.f32 %v2010, %v2170
      %v2172 = vpop.f32.mrb[0].mxu0
      %2173 = vmatprep.mubr.bf16.mxu0 0
      %2174 = vmatmul.mubr.bf16.gmra.mrb[0].mxu0 %v635
      %v2175 = vpop.f32.mrb[0].mxu0
      %v2176 = vadd.f32 %v2015, %v2175
      %v2177 = vpop.f32.mrb[0].mxu0
      %v2178 = vpop.f32.mrb[0].mxu0
      %v2179 = vadd.f32 %v2018, %v2178
      %v2180 = vpop.f32.mrb[0].mxu0
      %2181 = vmatprep.mubr.bf16.mxu0 0
      %2182 = vmatmul.mubr.bf16.gmra.mrb[0].mxu0 %v638
      %v2183 = vpop.f32.mrb[0].mxu0
      %v2184 = vadd.f32 %v2023, %v2183
      %v2185 = vpop.f32.mrb[0].mxu0
      %v2186 = vpop.f32.mrb[0].mxu0
      %v2187 = vadd.f32 %v2026, %v2186
      %v2188 = vpop.f32.mrb[0].mxu0
      %2189 = vmatprep.mubr.bf16.mxu0 0
      %2190 = vmatmul.mubr.bf16.gmra.mrb[0].mxu0 %v641
      %v2191 = vpop.f32.mrb[0].mxu0
      %v2192 = vadd.f32 %v2031, %v2191
      %v2193 = vpop.f32.mrb[0].mxu0
      %v2194 = vpop.f32.mrb[0].mxu0
      %v2195 = vadd.f32 %v2034, %v2194
      %v2196 = vpop.f32.mrb[0].mxu0
      %2197 = vmatprep.mubr.bf16.mxu0 0
      %2198 = vmatmul.mubr.bf16.gmra.mrb[0].mxu0 %v644
      %v2199 = vpop.f32.mrb[0].mxu0
      %v2200 = vadd.f32 %v2039, %v2199
      %v2201 = vpop.f32.mrb[0].mxu0
      %v2202 = vpop.f32.mrb[0].mxu0
      %v2203 = vadd.f32 %v2042, %v2202
      %v2204 = vpop.f32.mrb[0].mxu0
      %2205 = vmatprep.mubr.bf16.mxu0 0
      %2206 = vmatmul.mubr.bf16.gmra.mrb[0].mxu0 %v647
      %v2207 = vpop.f32.mrb[0].mxu0
      %v2208 = vadd.f32 %v2047, %v2207
      %v2209 = vpop.f32.mrb[0].mxu0
      %v2210 = vpop.f32.mrb[0].mxu0
      %v2211 = vadd.f32 %v2050, %v2210
      %v2212 = vpop.f32.mrb[0].mxu0
      %2213 = vmatprep.mubr.bf16.mxu0 0
      %2214 = vmatmul.mubr.bf16.gmra.mrb[0].mxu0 %v650
      %v2215 = vpop.f32.mrb[0].mxu0
      %v2216 = vadd.f32 %v2055, %v2215
      %v2217 = vpop.f32.mrb[0].mxu0
      %v2218 = vpop.f32.mrb[0].mxu0
      %v2219 = vadd.f32 %v2058, %v2218
      %v2220 = vpop.f32.mrb[0].mxu0
      %2221 = vmatprep.mubr.bf16.mxu0 0
      %2222 = vmatmul.mubr.bf16.gmra.mrb[0].mxu0 %v653
      %v2223 = vpop.f32.mrb[0].mxu0
      %v2224 = vadd.f32 %v2063, %v2223
      %v2225 = vpop.f32.mrb[0].mxu0
      %v2226 = vpop.f32.mrb[0].mxu0
      %v2227 = vadd.f32 %v2066, %v2226
      %v2228 = vpop.f32.mrb[0].mxu0
      %2229 = vmatprep.mubr.bf16.mxu0 0
      %2230 = vmatmul.mubr.bf16.gmra.mrb[0].mxu0 %v656
      %v2231 = vpop.f32.mrb[0].mxu0
      %v2232 = vadd.f32 %v2071, %v2231
      %v2233 = vpop.f32.mrb[0].mxu0
      %v2234 = vpop.f32.mrb[0].mxu0
      %v2235 = vadd.f32 %v2074, %v2234
      %v2236 = vpop.f32.mrb[0].mxu0
      %2237 = vmatprep.mubr.bf16.mxu0 0
      %2238 = vmatmul.mubr.bf16.gmra.mrb[0].mxu0 %v659
      %v2239 = vpop.f32.mrb[0].mxu0
      %v2240 = vadd.f32 %v2079, %v2239
      %v2241 = vpop.f32.mrb[0].mxu0
      %v2242 = vpop.f32.mrb[0].mxu0
      %v2243 = vadd.f32 %v2082, %v2242
      %v2244 = vpop.f32.mrb[0].mxu0
      %2245 = vmatprep.mubr.bf16.mxu0 0
      %2246 = vmatmul.mubr.bf16.gmra.mrb[0].mxu0 %v662
      %v2247 = vpop.f32.mrb[0].mxu0
      %v2248 = vadd.f32 %v2087, %v2247
      %v2249 = vpop.f32.mrb[0].mxu0
      %v2250 = vpop.f32.mrb[0].mxu0
      %v2251 = vadd.f32 %v2090, %v2250
      %v2252 = vpop.f32.mrb[0].mxu0
      %2253 = vmatprep.mubr.bf16.mxu0 0
      %2254 = vmatmul.mubr.bf16.gmra.mrb[0].mxu0 %v665
      %v2255 = vpop.f32.mrb[0].mxu0
      %v2256 = vadd.f32 %v2095, %v2255
      %v2257 = vpop.f32.mrb[0].mxu0
      %v2258 = vpop.f32.mrb[0].mxu0
      %v2259 = vadd.f32 %v2098, %v2258
      %v2260 = vpop.f32.mrb[0].mxu0
      %2261 = vmatprep.mubr.bf16.mxu0 0
      %2262 = vmatmul.mubr.bf16.gmra.mrb[0].mxu0 %v754
      %v2263 = vpop.f32.mrb[0].mxu0
      %v2264 = vadd.f32 %v2103, %v2263
      %v2265 = vpop.f32.mrb[0].mxu0
      %v2266 = vpop.f32.mrb[0].mxu0
      %v2267 = vadd.f32 %v2106, %v2266
      %v2268 = vpop.f32.mrb[0].mxu0
      %2269 = vmatprep.mubr.bf16.mxu0 0
      %2270 = vmatmul.mubr.bf16.gmra.mrb[0].mxu0 %v1761
      %v2271 = vpop.f32.mrb[0].mxu0
      %v2272 = vadd.f32 %v2111, %v2271
      %v2273 = vpop.f32.mrb[0].mxu0
      %v2274 = vpop.f32.mrb[0].mxu0
      %v2275 = vadd.f32 %v2114, %v2274
      %v2276 = vpop.f32.mrb[0].mxu0
      %2277 = vdwg.mxu0
      %v2278 = vadd.f32 %v1611, %v2152
      %v2279 = vadd.f32 %v1614, %v2155
      %v2280 = vadd.f32 %v1619, %v2160
      %v2281 = vadd.f32 %v1622, %v2163
      %v2282 = vadd.f32 %v1627, %v2168
      %v2283 = vadd.f32 %v1630, %v2171
      %v2284 = vadd.f32 %v1635, %v2176
      %v2285 = vadd.f32 %v1638, %v2179
      %v2286 = vadd.f32 %v1643, %v2184
      %v2287 = vadd.f32 %v1646, %v2187
      %v2288 = vadd.f32 %v1651, %v2192
      %v2289 = vadd.f32 %v1654, %v2195
      %v2290 = vadd.f32 %v1659, %v2200
      %v2291 = vadd.f32 %v1662, %v2203
      %v2292 = vadd.f32 %v1667, %v2208
      %v2293 = vadd.f32 %v1670, %v2211
      %v2294 = vadd.f32 %v1675, %v2216
      %v2295 = vadd.f32 %v1678, %v2219
      %v2296 = vadd.f32 %v1683, %v2224
      %v2297 = vadd.f32 %v1686, %v2227
      %v2298 = vadd.f32 %v1691, %v2232
      %v2299 = vadd.f32 %v1694, %v2235
      %v2300 = vadd.f32 %v1699, %v2240
      %v2301 = vadd.f32 %v1702, %v2243
      %v2302 = vadd.f32 %v1707, %v2248
      %v2303 = vadd.f32 %v1710, %v2251
      %v2304 = vadd.f32 %v1715, %v2256
      %v2305 = vadd.f32 %v1718, %v2259
      %v2306 = vadd.f32 %v1723, %v2264
      %v2307 = vadd.f32 %v1726, %v2267
      %v2308 = vadd.f32 %v1731, %v2272
      %v2309 = vadd.f32 %v1734, %v2275
      %v2310 = vld [vmem:[%s2] sm:$0x1]
      %v2312 = vlaneseq
      %v2313 = vshrl.u32 %v2312, 7
      %v2314 = vsub.s32 0, %v2313
      %v2315 = vrot.slane %v2310, %v2314
      %v2317 = vadd.f32 %v2278, %v2315
      %v2318 = vadd.f32 %v2279, %v2315
      %v2319 = vadd.f32 %v2280, %v2315
      %v2320 = vadd.f32 %v2281, %v2315
      %v2321 = vadd.f32 %v2282, %v2315
      %v2322 = vadd.f32 %v2283, %v2315
      %v2323 = vadd.f32 %v2284, %v2315
      %v2324 = vadd.f32 %v2285, %v2315
      %v2325 = vadd.f32 %v2286, %v2315
      %v2326 = vadd.f32 %v2287, %v2315
      %v2327 = vadd.f32 %v2288, %v2315
      %v2328 = vadd.f32 %v2289, %v2315
      %v2329 = vadd.f32 %v2290, %v2315
      %v2330 = vadd.f32 %v2291, %v2315
      %v2331 = vadd.f32 %v2292, %v2315
      %v2332 = vadd.f32 %v2293, %v2315
      %v2333 = vadd.f32 %v2294, %v2315
      %v2334 = vadd.f32 %v2295, %v2315
      %v2335 = vadd.f32 %v2296, %v2315
      %v2336 = vadd.f32 %v2297, %v2315
      %v2337 = vadd.f32 %v2298, %v2315
      %v2338 = vadd.f32 %v2299, %v2315
      %v2339 = vadd.f32 %v2300, %v2315
      %v2340 = vadd.f32 %v2301, %v2315
      %v2341 = vadd.f32 %v2302, %v2315
      %v2342 = vadd.f32 %v2303, %v2315
      %v2343 = vadd.f32 %v2304, %v2315
      %v2344 = vadd.f32 %v2305, %v2315
      %v2345 = vadd.f32 %v2306, %v2315
      %v2346 = vadd.f32 %v2307, %v2315
      %v2347 = vadd.f32 %v2308, %v2315
      %v2348 = vadd.f32 %v2309, %v2315
      %v2349 = vadd.f32 %v2317, %v2318
      %v2350 = vadd.f32 %v2349, %v2319
      %v2351 = vadd.f32 %v2350, %v2320
      %v2352 = vadd.f32 %v2351, %v2321
      %v2353 = vadd.f32 %v2352, %v2322
      %v2354 = vadd.f32 %v2353, %v2323
      %v2355 = vadd.f32 %v2354, %v2324
      %v2356 = vadd.f32 %v2355, %v2325
      %v2357 = vadd.f32 %v2356, %v2326
      %v2358 = vadd.f32 %v2357, %v2327
      %v2359 = vadd.f32 %v2358, %v2328
      %v2360 = vadd.f32 %v2359, %v2329
      %v2361 = vadd.f32 %v2360, %v2330
      %v2362 = vadd.f32 %v2361, %v2331
      %v2363 = vadd.f32 %v2362, %v2332
      %v2364 = vadd.f32 %v2363, %v2333
      %v2365 = vadd.f32 %v2364, %v2334
      %v2366 = vadd.f32 %v2365, %v2335
      %v2367 = vadd.f32 %v2366, %v2336
      %v2368 = vadd.f32 %v2367, %v2337
      %v2369 = vadd.f32 %v2368, %v2338
      %v2370 = vadd.f32 %v2369, %v2339
      %v2371 = vadd.f32 %v2370, %v2340
      %v2372 = vadd.f32 %v2371, %v2341
      %v2373 = vadd.f32 %v2372, %v2342
      %v2374 = vadd.f32 %v2373, %v2343
      %v2375 = vadd.f32 %v2374, %v2344
      %v2376 = vadd.f32 %v2375, %v2345
      %v2377 = vadd.f32 %v2376, %v2346
      %v2378 = vadd.f32 %v2377, %v2347
      %v2379 = vadd.f32 %v2378, %v2348
      %v2380 = vrot.slane %v2379, 4
      %v2381 = vadd.f32 %v2379, %v2380
      %v2382 = vrot.slane %v2381, 2
      %v2383 = vadd.f32 %v2381, %v2382
      %v2384 = vrot.slane %v2383, 1
      %v2385 = vadd.f32 %v2383, %v2384
      %v2386 = vmul.f32 %v2317, %v2317
      %v2387 = vmul.f32 %v2318, %v2318
      %v2388 = vmul.f32 %v2319, %v2319
      %v2389 = vmul.f32 %v2320, %v2320
      %v2390 = vmul.f32 %v2321, %v2321
      %v2391 = vmul.f32 %v2322, %v2322
      %v2392 = vmul.f32 %v2323, %v2323
      %v2393 = vmul.f32 %v2324, %v2324
      %v2394 = vmul.f32 %v2325, %v2325
      %v2395 = vmul.f32 %v2326, %v2326
      %v2396 = vmul.f32 %v2327, %v2327
      %v2397 = vmul.f32 %v2328, %v2328
      %v2398 = vmul.f32 %v2329, %v2329
      %v2399 = vmul.f32 %v2330, %v2330
      %v2400 = vmul.f32 %v2331, %v2331
      %v2401 = vmul.f32 %v2332, %v2332
      %v2402 = vmul.f32 %v2333, %v2333
      %v2403 = vmul.f32 %v2334, %v2334
      %v2404 = vmul.f32 %v2335, %v2335
      %v2405 = vmul.f32 %v2336, %v2336
      %v2406 = vmul.f32 %v2337, %v2337
      %v2407 = vmul.f32 %v2338, %v2338
      %v2408 = vmul.f32 %v2339, %v2339
      %v2409 = vmul.f32 %v2340, %v2340
      %v2410 = vmul.f32 %v2341, %v2341
      %v2411 = vmul.f32 %v2342, %v2342
      %v2412 = vmul.f32 %v2343, %v2343
      %v2413 = vmul.f32 %v2344, %v2344
      %v2414 = vmul.f32 %v2345, %v2345
      %v2415 = vmul.f32 %v2346, %v2346
      %v2416 = vmul.f32 %v2347, %v2347
      %v2417 = vmul.f32 %v2348, %v2348
      %v2418 = vadd.f32 %v2386, %v2387
      %v2419 = vadd.f32 %v2418, %v2388
      %v2420 = vadd.f32 %v2419, %v2389
      %v2421 = vadd.f32 %v2420, %v2390
      %v2422 = vadd.f32 %v2421, %v2391
      %v2423 = vadd.f32 %v2422, %v2392
      %v2424 = vadd.f32 %v2423, %v2393
      %v2425 = vadd.f32 %v2424, %v2394
      %v2426 = vadd.f32 %v2425, %v2395
      %v2427 = vadd.f32 %v2426, %v2396
      %v2428 = vadd.f32 %v2427, %v2397
      %v2429 = vadd.f32 %v2428, %v2398
      %v2430 = vadd.f32 %v2429, %v2399
      %v2431 = vadd.f32 %v2430, %v2400
      %v2432 = vadd.f32 %v2431, %v2401
      %v2433 = vadd.f32 %v2432, %v2402
      %v2434 = vadd.f32 %v2433, %v2403
      %v2435 = vadd.f32 %v2434, %v2404
      %v2436 = vadd.f32 %v2435, %v2405
      %v2437 = vadd.f32 %v2436, %v2406
      %v2438 = vadd.f32 %v2437, %v2407
      %v2439 = vadd.f32 %v2438, %v2408
      %v2440 = vadd.f32 %v2439, %v2409
      %v2441 = vadd.f32 %v2440, %v2410
      %v2442 = vadd.f32 %v2441, %v2411
      %v2443 = vadd.f32 %v2442, %v2412
      %v2444 = vadd.f32 %v2443, %v2413
      %v2445 = vadd.f32 %v2444, %v2414
      %v2446 = vadd.f32 %v2445, %v2415
      %v2447 = vadd.f32 %v2446, %v2416
      %v2448 = vadd.f32 %v2447, %v2417
      %v2449 = vrot.slane %v2448, 4
      %v2450 = vadd.f32 %v2448, %v2449
      %v2451 = vrot.slane %v2450, 2
      %v2452 = vadd.f32 %v2450, %v2451
      %v2453 = vrot.slane %v2452, 1
      %v2454 = vadd.f32 %v2452, %v2453
      %vm2455 = vcmask 1040384
      %v2456 = vsel %vm2455, %v2385, %v2454
      %2457 = vst [vmem:[%s208] sm:$0x3] %v2456
      %v2458 = vpack.c.bf16 %v2318, %v2317
      %v2459 = vpack.c.bf16 %v2320, %v2319
      %v2460 = vpack.c.bf16 %v2322, %v2321
      %v2461 = vpack.c.bf16 %v2324, %v2323
      %v2462 = vpack.c.bf16 %v2326, %v2325
      %v2463 = vpack.c.bf16 %v2328, %v2327
      %v2464 = vpack.c.bf16 %v2330, %v2329
      %v2465 = vpack.c.bf16 %v2332, %v2331
      %v2466 = vpack.c.bf16 %v2334, %v2333
      %v2467 = vpack.c.bf16 %v2336, %v2335
      %v2468 = vpack.c.bf16 %v2338, %v2337
      %v2469 = vpack.c.bf16 %v2340, %v2339
      %v2470 = vpack.c.bf16 %v2342, %v2341
      %v2471 = vpack.c.bf16 %v2344, %v2343
      %v2472 = vpack.c.bf16 %v2346, %v2345
      %v2473 = vpack.c.bf16 %v2348, %v2347
      %v2475 = vshrl.u32 0, 16
      %v2477 = vrot.slane %v2475, 7
      %v2478 = vshll.u32 0, 16
      %v2480 = vor.u32 %v2477, %v2478
      %v2482 = vshrl.u32 %v2458, 16
      %v2484 = vrot.slane %v2482, 7
      %v2485 = vshll.u32 %v2458, 16
      %v2487 = vor.u32 %v2484, %v2485
      %v2489 = vshrl.u32 %v2459, 16
      %v2491 = vrot.slane %v2489, 7
      %v2492 = vshll.u32 %v2459, 16
      %v2494 = vor.u32 %v2491, %v2492
      %v2496 = vshrl.u32 %v2460, 16
      %v2498 = vrot.slane %v2496, 7
      %v2499 = vshll.u32 %v2460, 16
      %v2501 = vor.u32 %v2498, %v2499
      %v2503 = vshrl.u32 %v2461, 16
      %v2505 = vrot.slane %v2503, 7
      %v2506 = vshll.u32 %v2461, 16
      %v2508 = vor.u32 %v2505, %v2506
      %v2510 = vshrl.u32 %v2462, 16
      %v2512 = vrot.slane %v2510, 7
      %v2513 = vshll.u32 %v2462, 16
      %v2515 = vor.u32 %v2512, %v2513
      %v2517 = vshrl.u32 %v2463, 16
      %v2519 = vrot.slane %v2517, 7
      %v2520 = vshll.u32 %v2463, 16
      %v2522 = vor.u32 %v2519, %v2520
      %v2524 = vshrl.u32 %v2464, 16
      %v2526 = vrot.slane %v2524, 7
      %v2527 = vshll.u32 %v2464, 16
      %v2529 = vor.u32 %v2526, %v2527
      %v2531 = vshrl.u32 %v2465, 16
      %v2533 = vrot.slane %v2531, 7
      %v2534 = vshll.u32 %v2465, 16
      %v2536 = vor.u32 %v2533, %v2534
      %v2538 = vshrl.u32 %v2466, 16
      %v2540 = vrot.slane %v2538, 7
      %v2541 = vshll.u32 %v2466, 16
      %v2543 = vor.u32 %v2540, %v2541
      %v2545 = vshrl.u32 %v2467, 16
      %v2547 = vrot.slane %v2545, 7
      %v2548 = vshll.u32 %v2467, 16
      %v2550 = vor.u32 %v2547, %v2548
      %v2552 = vshrl.u32 %v2468, 16
      %v2554 = vrot.slane %v2552, 7
      %v2555 = vshll.u32 %v2468, 16
      %v2557 = vor.u32 %v2554, %v2555
      %v2559 = vshrl.u32 %v2469, 16
      %v2561 = vrot.slane %v2559, 7
      %v2562 = vshll.u32 %v2469, 16
      %v2564 = vor.u32 %v2561, %v2562
      %v2566 = vshrl.u32 %v2470, 16
      %v2568 = vrot.slane %v2566, 7
      %v2569 = vshll.u32 %v2470, 16
      %v2571 = vor.u32 %v2568, %v2569
      %v2573 = vshrl.u32 %v2471, 16
      %v2575 = vrot.slane %v2573, 7
      %v2576 = vshll.u32 %v2471, 16
      %v2578 = vor.u32 %v2575, %v2576
      %v2580 = vshrl.u32 %v2472, 16
      %v2582 = vrot.slane %v2580, 7
      %v2583 = vshll.u32 %v2472, 16
      %v2585 = vor.u32 %v2582, %v2583
      %v2587 = vshrl.u32 %v2473, 16
      %v2589 = vrot.slane %v2587, 7
      %v2590 = vshll.u32 %v2473, 16
      %v2592 = vor.u32 %v2589, %v2590
      %vm2627 = vcmask 1040384
      %vm2628 = vsmask.f32 256
      %vm2629 = vmand %vm2627, %vm2628
      %v2630 = vsel %vm2629, 0, %v2480
      %v2631 = vsel %vm2629, 0, %v2487
      %v2632 = vsel %vm2629, 0, %v2494
      %v2633 = vsel %vm2629, 0, %v2501
      %v2634 = vsel %vm2629, 0, %v2508
      %v2635 = vsel %vm2629, 0, %v2515
      %v2636 = vsel %vm2629, 0, %v2522
      %v2637 = vsel %vm2629, 0, %v2529
      %v2638 = vsel %vm2629, 0, %v2536
      %v2639 = vsel %vm2629, 0, %v2543
      %v2640 = vsel %vm2629, 0, %v2550
      %v2641 = vsel %vm2629, 0, %v2557
      %v2642 = vsel %vm2629, 0, %v2564
      %v2643 = vsel %vm2629, 0, %v2571
      %v2644 = vsel %vm2629, 0, %v2578
      %v2645 = vsel %vm2629, 0, %v2585
      %v2646 = vsel %vm2629, 0, %v2592
      %v2647 = vsel %vm2629, %v2477, 0
      %v2648 = vsel %vm2629, %v2484, 0
      %v2649 = vsel %vm2629, %v2491, 0
      %v2650 = vsel %vm2629, %v2498, 0
      %v2651 = vsel %vm2629, %v2505, 0
      %v2652 = vsel %vm2629, %v2512, 0
      %v2653 = vsel %vm2629, %v2519, 0
      %v2654 = vsel %vm2629, %v2526, 0
      %v2655 = vsel %vm2629, %v2533, 0
      %v2656 = vsel %vm2629, %v2540, 0
      %v2657 = vsel %vm2629, %v2547, 0
      %v2658 = vsel %vm2629, %v2554, 0
      %v2659 = vsel %vm2629, %v2561, 0
      %v2660 = vsel %vm2629, %v2568, 0
      %v2661 = vsel %vm2629, %v2575, 0
      %v2662 = vsel %vm2629, %v2582, 0
      %v2663 = vsel %vm2629, %v2589, 0
      %v2698 = vunpack.c.l.b16 %v2630
      %v2699 = vunpack.c.h.b16 %v2630
      %v2700 = vunpack.c.l.b16 %v2647
      %v2701 = vunpack.c.l.b16 %v2631
      %v2702 = vunpack.c.h.b16 %v2631
      %v2703 = vunpack.c.l.b16 %v2648
      %v2704 = vunpack.c.l.b16 %v2632
      %v2705 = vunpack.c.h.b16 %v2632
      %v2706 = vunpack.c.l.b16 %v2649
      %v2707 = vunpack.c.l.b16 %v2633
      %v2708 = vunpack.c.h.b16 %v2633
      %v2709 = vunpack.c.l.b16 %v2650
      %v2710 = vunpack.c.l.b16 %v2634
      %v2711 = vunpack.c.h.b16 %v2634
      %v2712 = vunpack.c.l.b16 %v2651
      %v2713 = vunpack.c.l.b16 %v2635
      %v2714 = vunpack.c.h.b16 %v2635
      %v2715 = vunpack.c.l.b16 %v2652
      %v2716 = vunpack.c.l.b16 %v2636
      %v2717 = vunpack.c.h.b16 %v2636
      %v2718 = vunpack.c.l.b16 %v2653
      %v2719 = vunpack.c.l.b16 %v2637
      %v2720 = vunpack.c.h.b16 %v2637
      %v2721 = vunpack.c.l.b16 %v2654
      %v2722 = vunpack.c.l.b16 %v2638
      %v2723 = vunpack.c.h.b16 %v2638
      %v2724 = vunpack.c.l.b16 %v2655
      %v2725 = vunpack.c.l.b16 %v2639
      %v2726 = vunpack.c.h.b16 %v2639
      %v2727 = vunpack.c.l.b16 %v2656
      %v2728 = vunpack.c.l.b16 %v2640
      %v2729 = vunpack.c.h.b16 %v2640
      %v2730 = vunpack.c.l.b16 %v2657
      %v2731 = vunpack.c.l.b16 %v2641
      %v2732 = vunpack.c.h.b16 %v2641
      %v2733 = vunpack.c.l.b16 %v2658
      %v2734 = vunpack.c.l.b16 %v2642
      %v2735 = vunpack.c.h.b16 %v2642
      %v2736 = vunpack.c.l.b16 %v2659
      %v2737 = vunpack.c.l.b16 %v2643
      %v2738 = vunpack.c.h.b16 %v2643
      %v2739 = vunpack.c.l.b16 %v2660
      %v2740 = vunpack.c.l.b16 %v2644
      %v2741 = vunpack.c.h.b16 %v2644
      %v2742 = vunpack.c.l.b16 %v2661
      %v2743 = vunpack.c.l.b16 %v2645
      %v2744 = vunpack.c.h.b16 %v2645
      %v2745 = vunpack.c.l.b16 %v2662
      %v2746 = vunpack.c.l.b16 %v2646
      %v2747 = vunpack.c.h.b16 %v2646
      %v2748 = vunpack.c.l.b16 %v2663
      %v2749 = vpack.c.b16 %v2698, %v2698
      %v2750 = vpack.c.b16 %v2699, %v2699
      %v2751 = vpack.c.b16 %v2700, %v2700
      %v2752 = vpack.c.b16 %v2701, %v2701
      %v2753 = vpack.c.b16 %v2702, %v2702
      %v2754 = vpack.c.b16 %v2703, %v2703
      %v2755 = vpack.c.b16 %v2704, %v2704
      %v2756 = vpack.c.b16 %v2705, %v2705
      %v2757 = vpack.c.b16 %v2706, %v2706
      %v2758 = vpack.c.b16 %v2707, %v2707
      %v2759 = vpack.c.b16 %v2708, %v2708
      %v2760 = vpack.c.b16 %v2709, %v2709
      %v2761 = vpack.c.b16 %v2710, %v2710
      %v2762 = vpack.c.b16 %v2711, %v2711
      %v2763 = vpack.c.b16 %v2712, %v2712
      %v2764 = vpack.c.b16 %v2713, %v2713
      %v2765 = vpack.c.b16 %v2714, %v2714
      %v2766 = vpack.c.b16 %v2715, %v2715
      %v2767 = vpack.c.b16 %v2716, %v2716
      %v2768 = vpack.c.b16 %v2717, %v2717
      %v2769 = vpack.c.b16 %v2718, %v2718
      %v2770 = vpack.c.b16 %v2719, %v2719
      %v2771 = vpack.c.b16 %v2720, %v2720
      %v2772 = vpack.c.b16 %v2721, %v2721
      %v2773 = vpack.c.b16 %v2722, %v2722
      %v2774 = vpack.c.b16 %v2723, %v2723
      %v2775 = vpack.c.b16 %v2724, %v2724
      %v2776 = vpack.c.b16 %v2725, %v2725
      %v2777 = vpack.c.b16 %v2726, %v2726
      %v2778 = vpack.c.b16 %v2727, %v2727
      %v2779 = vpack.c.b16 %v2728, %v2728
      %v2780 = vpack.c.b16 %v2729, %v2729
      %v2781 = vpack.c.b16 %v2730, %v2730
      %v2782 = vpack.c.b16 %v2731, %v2731
      %v2783 = vpack.c.b16 %v2732, %v2732
      %v2784 = vpack.c.b16 %v2733, %v2733
      %v2785 = vpack.c.b16 %v2734, %v2734
      %v2786 = vpack.c.b16 %v2735, %v2735
      %v2787 = vpack.c.b16 %v2736, %v2736
      %v2788 = vpack.c.b16 %v2737, %v2737
      %v2789 = vpack.c.b16 %v2738, %v2738
      %v2790 = vpack.c.b16 %v2739, %v2739
      %v2791 = vpack.c.b16 %v2740, %v2740
      %v2792 = vpack.c.b16 %v2741, %v2741
      %v2793 = vpack.c.b16 %v2742, %v2742
      %v2794 = vpack.c.b16 %v2743, %v2743
      %v2795 = vpack.c.b16 %v2744, %v2744
      %v2796 = vpack.c.b16 %v2745, %v2745
      %v2797 = vpack.c.b16 %v2746, %v2746
      %v2798 = vpack.c.b16 %v2747, %v2747
      %v2799 = vpack.c.b16 %v2748, %v2748
      %2851 = vst [vmem:[%s204] sm:$0xf] %v2749
      %2852 = vst [vmem:[%s204 + $0x4] sm:$0xf] %v2750
      %2853 = vst [vmem:[%s204 + $0x8] sm:$0x1] %v2751
      %2854 = vst [vmem:[%s204 + $0xc] sm:$0xf] %v2752
      %2855 = vst [vmem:[%s204 + $0x10] sm:$0xf] %v2753
      %2856 = vst [vmem:[%s204 + $0x14] sm:$0x1] %v2754
      %2857 = vst [vmem:[%s204 + $0x18] sm:$0xf] %v2755
      %2858 = vst [vmem:[%s204 + $0x1c] sm:$0xf] %v2756
      %2859 = vst [vmem:[%s204 + $0x20] sm:$0x1] %v2757
      %2860 = vst [vmem:[%s204 + $0x24] sm:$0xf] %v2758
      %2861 = vst [vmem:[%s204 + $0x28] sm:$0xf] %v2759
      %2862 = vst [vmem:[%s204 + $0x2c] sm:$0x1] %v2760
      %2863 = vst [vmem:[%s204 + $0x30] sm:$0xf] %v2761
      %2864 = vst [vmem:[%s204 + $0x34] sm:$0xf] %v2762
      %2865 = vst [vmem:[%s204 + $0x38] sm:$0x1] %v2763
      %2866 = vst [vmem:[%s204 + $0x3c] sm:$0xf] %v2764
      %2867 = vst [vmem:[%s204 + $0x40] sm:$0xf] %v2765
      %2868 = vst [vmem:[%s204 + $0x44] sm:$0x1] %v2766
      %2869 = vst [vmem:[%s204 + $0x48] sm:$0xf] %v2767
      %2870 = vst [vmem:[%s204 + $0x4c] sm:$0xf] %v2768
      %2871 = vst [vmem:[%s204 + $0x50] sm:$0x1] %v2769
      %2872 = vst [vmem:[%s204 + $0x54] sm:$0xf] %v2770
      %2873 = vst [vmem:[%s204 + $0x58] sm:$0xf] %v2771
      %2874 = vst [vmem:[%s204 + $0x5c] sm:$0x1] %v2772
      %2875 = vst [vmem:[%s204 + $0x60] sm:$0xf] %v2773
      %2876 = vst [vmem:[%s204 + $0x64] sm:$0xf] %v2774
      %2877 = vst [vmem:[%s204 + $0x68] sm:$0x1] %v2775
      %2878 = vst [vmem:[%s204 + $0x6c] sm:$0xf] %v2776
      %2879 = vst [vmem:[%s204 + $0x70] sm:$0xf] %v2777
      %2880 = vst [vmem:[%s204 + $0x74] sm:$0x1] %v2778
      %2881 = vst [vmem:[%s204 + $0x78] sm:$0xf] %v2779
      %2882 = vst [vmem:[%s204 + $0x7c] sm:$0xf] %v2780
      %2883 = vst [vmem:[%s204 + $0x80] sm:$0x1] %v2781
      %2884 = vst [vmem:[%s204 + $0x84] sm:$0xf] %v2782
      %2885 = vst [vmem:[%s204 + $0x88] sm:$0xf] %v2783
      %2886 = vst [vmem:[%s204 + $0x8c] sm:$0x1] %v2784
      %2887 = vst [vmem:[%s204 + $0x90] sm:$0xf] %v2785
      %2888 = vst [vmem:[%s204 + $0x94] sm:$0xf] %v2786
      %2889 = vst [vmem:[%s204 + $0x98] sm:$0x1] %v2787
      %2890 = vst [vmem:[%s204 + $0x9c] sm:$0xf] %v2788
      %2891 = vst [vmem:[%s204 + $0xa0] sm:$0xf] %v2789
      %2892 = vst [vmem:[%s204 + $0xa4] sm:$0x1] %v2790
      %2893 = vst [vmem:[%s204 + $0xa8] sm:$0xf] %v2791
      %2894 = vst [vmem:[%s204 + $0xac] sm:$0xf] %v2792
      %2895 = vst [vmem:[%s204 + $0xb0] sm:$0x1] %v2793
      %2896 = vst [vmem:[%s204 + $0xb4] sm:$0xf] %v2794
      %2897 = vst [vmem:[%s204 + $0xb8] sm:$0xf] %v2795
      %2898 = vst [vmem:[%s204 + $0xbc] sm:$0x1] %v2796
      %2899 = vst [vmem:[%s204 + $0xc0] sm:$0xf] %v2797
      %2900 = vst [vmem:[%s204 + $0xc4] sm:$0xf] %v2798
      %2901 = vst [vmem:[%s204 + $0xc8] sm:$0x1] %v2799
      %2902 = vst [vmem:[%s204 + $0xcc] sm:$0xf] %v2749
      %2903 = vst [vmem:[%s204 + $0xd0] sm:$0xf] %v2750
      %2904 = vst [vmem:[%s204 + $0xd4] sm:$0x1] %v2751
      %p2905 = scmp.lt.s32.totalorder %s16, 1
      %s2906 = scalar_select %p2905, %s16, 1
      %s2907 = smul.addr %s2906, 54
      %s2908 = smul.addr %s2907, 4
      %s2909 = scalar_lea.vmem %s3, %s2908
      %p2910 = scmp.lt.s32.totalorder %s16, 1
      %s2911 = scalar_select %p2910, %s16, 1
      %s2912 = smul.addr %s2911, 2
      %s2913 = scalar_lea.vmem %s4, %s2912
      // Predicated region
      $region33: #{residual_block_forward.3} parent=31 // pred_check
        %p2914 = pneg %p102
      $region34: #{residual_block_forward.3} parent=31 // pred_check_branch
        %2916 = sbr.rel (%p2914) target = $region36
      $region35: #{residual_block_forward.3} parent=31 // pred_region
        _
      $region36: #{residual_block_forward.3} parent=31 // pred_fallthru
        _
      // Predicated region
      $region37: #{residual_block_forward.3} parent=31 // pred_check
        %p2917 = pneg %p128
      $region38: #{residual_block_forward.3} parent=31 // pred_check_branch
        %2919 = sbr.rel (%p2917) target = $region40
      $region39: #{residual_block_forward.3} parent=31 // pred_region
        _
      $region40: #{residual_block_forward.3} parent=31 // pred_fallthru
        _
    $region32: #{residual_block_forward.3} parent=5 // pred_fallthru
      _
    %p2920 = scmp.le.s32.totalorder 2, %s11
    // Predicated region
    $region41: #{residual_block_forward.3} parent=5 // pred_check
      %p2921 = pneg %p2920
    $region42: #{residual_block_forward.3} parent=5 // pred_check_branch
      %2923 = sbr.rel (%p2921) target = $region44
    $region43: #{residual_block_forward.3} parent=5 // pred_region
      %s2924 = ssub.s32 %s11, 2
      // Predicated region
      $region45: #{residual_block_forward.3} parent=43 // pred_check
        %p2925 = pneg %p108
      $region46: #{residual_block_forward.3} parent=43 // pred_check_branch
        %2927 = sbr.rel (%p2925) target = $region48
      $region47: #{residual_block_forward.3} parent=43 // pred_region
        %p2928 = scmp.lt.s32.totalorder %s17, 1
        %s2929 = scalar_select %p2928, %s17, 1
        %s2930 = smul.addr %s2929, 54
        %s2931 = smul.addr %s2930, 4
        %s2932 = scalar_lea.vmem %s3, %s2931
      $region48: #{residual_block_forward.3} parent=43 // pred_fallthru
        _
      // Predicated region
      $region49: #{residual_block_forward.3} parent=43 // pred_check
        %p2933 = pneg %p134
      $region50: #{residual_block_forward.3} parent=43 // pred_check_branch
        %2935 = sbr.rel (%p2933) target = $region52
      $region51: #{residual_block_forward.3} parent=43 // pred_region
        %p2936 = scmp.lt.s32.totalorder %s17, 1
        %s2937 = scalar_select %p2936, %s17, 1
        %s2938 = smul.addr %s2937, 2
        %s2939 = scalar_lea.vmem %s4, %s2938
      $region52: #{residual_block_forward.3} parent=43 // pred_fallthru
        _
    $region44: #{residual_block_forward.3} parent=5 // pred_fallthru
      _
  $region6: #{residual_block_forward.3} parent=0 // loop_footer
    %s15 = sadd.s32 1, %s11
  $region7: #{residual_block_forward.3} parent=0 // loop_footer_branch
    %10 = sbr.rel target = $region3
  $region8: #{residual_block_forward.3} parent=0 // loop_exit
    _

</llo_original>
